<compile_context>
chip_gen: v5e
topology: v5e:2x2
jax: 0.10.0
libtpu: 0.0.40
codegen_flags: <defaults>
</compile_context>

<pallas_src>
import math
import numpy as np
import jax
import jax.numpy as jnp
from jax import lax
from jax.experimental import pallas as pl
from jax.experimental.pallas import tpu as pltpu

_INV_SQRT2 = 1.0 / math.sqrt(2.0)
_SQRT_2_OVER_PI = math.sqrt(2.0 / math.pi)


def _round_up(v, m):
    return ((v + m - 1) // m) * m


def _gelu_exact(v):
    # torch.nn.functional.gelu default (erf-based); used by the JAX reference.
    return 0.5 * v * (1.0 + lax.erf(v * _INV_SQRT2))


def _gelu_tanh(v):
    # tanh-approximation GELU: transcendental -> EUP slot (review item 8).
    return 0.5 * v * (1.0 + jnp.tanh(_SQRT_2_OVER_PI * (v + 0.044715 * v * v * v)))


def _vmem_limit_bytes():
    """Generation-aware scoped-VMEM limit (~half of physical VMEM)."""
    try:
        cap = int(getattr(pltpu.get_tpu_info(), "vmem_capacity_bytes", 0))
    except Exception:
        cap = 0
    if cap <= 0:
        cap = 64 * 1024 * 1024          # conservative fallback (v7x physical)
    return max(32 * 1024 * 1024, cap // 2)


# ---------------------------------------------------------------------------
# Kernel 1: complex mode mixing of SpectralConv2d (einsum 'bixy,ioxy->boxy'),
# lane-dense layout: retained modes (padded to a multiple of 128) in lanes.
#   x_ref: (1, 2*Ci, T) f32   packed [Re(x) ; Im(x)] along channels
#   w_ref: (2*Ci, tco, T) f32 packed [[wr | wi], [-wi | wr]]
#   o_ref: (1, tco, T) f32    packed [Re(out) ; Im(out)] along channels
# out[o, t] = sum_i x[i, t] * w[i, o, t]  -- per-lane channel contraction on
# the VPU (the per-mode matrices are far too small for the MXU).
# ---------------------------------------------------------------------------
def _spectral_mul_kernel(x_ref, w_ref, o_ref):
    x = x_ref[0]                                          # (2*Ci, T) f32
    acc = jnp.zeros(o_ref.shape[1:], jnp.float32)         # (tco, T) f32
    for i in range(x.shape[0]):                           # static unroll over 2*Ci
        acc = acc + x[i][None, :] * w_ref[i]              # sublane-bcast MAC
    o_ref[0] = acc


def _pick_co_tile(ci2, co2, budget):
    # double-buffered f32 blocks for one 128-lane mode tile
    per = lambda tco: 2 * 128 * 4 * (ci2 + ci2 * tco + tco)
    cands = [d for d in range(8, co2, 8) if co2 % d == 0] + [co2]
    best = cands[0]
    for d in cands:
        if per(d) <= budget:
            best = d
    return best


def spectral_mode_mul(xcat, wcat):
    # xcat: (B, 2*Ci, Mp) f32 ; wcat: (2*Ci, 2*Co, Mp) f32 ; Mp % 128 == 0
    B, ci2, Mp = xcat.shape
    co2 = wcat.shape[1]
    T = 128                       # one full lane tile per step (bounds vreg use)
    limit = _vmem_limit_bytes()
    tco = _pick_co_tile(ci2, co2, int(limit * 0.75))
    grid = (co2 // tco, Mp // T, B)   # B innermost -> weights stay resident

    out = pl.pallas_call(
        _spectral_mul_kernel,
        grid=grid,
        in_specs=[
            pl.BlockSpec((1, ci2, T), lambda c, t, b: (b, 0, t)),
            pl.BlockSpec((ci2, tco, T), lambda c, t, b: (0, c, t)),
        ],
        out_specs=pl.BlockSpec((1, tco, T), lambda c, t, b: (b, c, t)),
        out_shape=jax.ShapeDtypeStruct((B, co2, Mp), jnp.float32),
        compiler_params=pltpu.CompilerParams(
            dimension_semantics=("parallel", "parallel", "parallel"),
            vmem_limit_bytes=limit),
    )(xcat, wcat)
    return out


# ---------------------------------------------------------------------------
# Kernel 2: fused FRNN cell update, channels-in-sublane / pixels-in-lane.
#   blocks: x/h/x1 (1, C, T) f32 ; wx/wh (C, C) bf16 ; bx/bh (C, 1) f32
#   h2 = Wh @ h + bh ; hg = gelu(h2)
#   x2 = Wx @ x + bx ; xs = gelu(x1 + x2)
#   hn = hg + xs     ; y  = tanh(hn)
# bf16 casts happen in-kernel (MXU operands only); all elementwise math f32.
# ---------------------------------------------------------------------------
def _cell_kernel(x_ref, h_ref, x1_ref, wx_ref, bx_ref, wh_ref, bh_ref,
                 y_ref, hn_ref):
    hb = h_ref[0].astype(jnp.bfloat16)
    xb = x_ref[0].astype(jnp.bfloat16)
    h2 = jnp.dot(wh_ref[...], hb, preferred_element_type=jnp.float32) + bh_ref[...]
    hg = _gelu_tanh(h2)
    x2 = jnp.dot(wx_ref[...], xb, preferred_element_type=jnp.float32) + bx_ref[...]
    xs = _gelu_tanh(x1_ref[0] + x2)                       # x1 stays f32
    hn = hg + xs
    y_ref[0] = jnp.tanh(hn)
    hn_ref[0] = hn


def _pick_pixel_tile(hwp, C, budget, cap=8192):
    # largest multiple-of-128 divisor of hwp under both the VMEM budget and cap
    per_col = 5 * C * 4 * 2           # 3 f32 inputs + 2 f32 outputs, 2 buffers
    t_max = max(128, min(cap, hwp, (budget // per_col) // 128 * 128))
    best = 128
    t = 128
    while t <= t_max:
        if hwp % t == 0:
            best = t
        t += 128
    return best


def fused_cell(x3, h3, x13, wx, bx, wh, bh):
    # x3/h3/x13: (B, C, HW) f32 ; wx/wh: (C, C) (out, in) ; bx/bh: (C,)
    B, C, HW = x3.shape
    limit = _vmem_limit_bytes()

    # pad the pixel axis to a multiple of 128 -> lane-dense, unmasked stores
    HWp = _round_up(HW, 128)
    if HWp != HW:
        pad = ((0, 0), (0, 0), (0, HWp - HW))
        x3 = jnp.pad(x3, pad)
        h3 = jnp.pad(h3, pad)
        x13 = jnp.pad(x13, pad)

    tile_hw = _pick_pixel_tile(HWp, C, int(limit * 0.6))
    n_hw = HWp // tile_hw
    # guarantee >= 2 grid steps for 2-TensorCore chips (v7x) when B == 1
    if B == 1 and n_hw == 1 and tile_hw % 256 == 0:
        tile_hw //= 2
        n_hw = 2
    grid = (B, n_hw)

    data_spec = pl.BlockSpec((1, C, tile_hw), lambda b, p: (b, 0, p))
    w_spec = pl.BlockSpec((C, C), lambda b, p: (0, 0))
    b_spec = pl.BlockSpec((C, 1), lambda b, p: (0, 0))

    y, hn = pl.pallas_call(
        _cell_kernel,
        grid=grid,
        in_specs=[data_spec, data_spec, data_spec,
                  w_spec, b_spec, w_spec, b_spec],
        out_specs=[data_spec, data_spec],
        out_shape=[
            jax.ShapeDtypeStruct((B, C, HWp), jnp.float32),
            jax.ShapeDtypeStruct((B, C, HWp), jnp.float32),
        ],
        compiler_params=pltpu.CompilerParams(
            dimension_semantics=("parallel", "parallel"),
            vmem_limit_bytes=limit),
    )(x3, h3, x13,
      wx.astype(jnp.bfloat16), bx.reshape(C, 1).astype(jnp.float32),
      wh.astype(jnp.bfloat16), bh.reshape(C, 1).astype(jnp.float32))
    if HWp != HW:
        y = y[..., :HW]
        hn = hn[..., :HW]
    return y, hn


# ---------------------------------------------------------------------------
# One-time spectral weight repacking (hoisted out of the forward pass).
# (Ci, Co, m, m) complex x2 -> (2*Ci, 2*Co, Mp) f32 packed [[wr|wi],[-wi|wr]],
# modes last (lane-dense), zero-padded to a multiple of 128 modes.
# ---------------------------------------------------------------------------
def pack_spectral_weights(w1, w2, modes):
    m = modes
    Ci, Co = w1.shape[0], w1.shape[1]
    w = jnp.concatenate([w1.reshape(Ci, Co, m * m),
                         w2.reshape(Ci, Co, m * m)], axis=-1)   # (Ci, Co, M)
    wr, wi = jnp.real(w), jnp.imag(w)
    top = jnp.concatenate([wr, wi], axis=1)                     # (Ci, 2Co, M)
    bot = jnp.concatenate([-wi, wr], axis=1)                    # (Ci, 2Co, M)
    wcat = jnp.concatenate([top, bot], axis=0).astype(jnp.float32)
    M = 2 * m * m
    Mp = _round_up(M, 128)
    if Mp != M:
        wcat = jnp.pad(wcat, ((0, 0), (0, 0), (0, Mp - M)))
    return wcat                                                  # (2Ci, 2Co, Mp)


# ---------------------------------------------------------------------------
# FRNN_Cell forward (glue in plain JAX, hot paths in the kernels above).
# ---------------------------------------------------------------------------
def frnn_cell_forward(x, h, params, *, modes):
    # x, h: (B, C, H, W) float32 (NCHW, as in the PyTorch module)
    B, C, H, W = x.shape
    m = modes       # as in the reference, mode blocks overlap if H < 2*modes
    M = 2 * m * m

    # --- SpectralConv2d: FFT in JAX, mode mixing in Pallas, iFFT in JAX ---
    x_ft = jnp.fft.rfft2(x)                                     # (B,C,H,W//2+1)
    blk = jnp.concatenate(
        [x_ft[:, :, :m, :m].reshape(B, C, m * m),
         x_ft[:, :, H - m:, :m].reshape(B, C, m * m)], axis=-1)  # (B, C, M) c64
    xcat = jnp.concatenate([jnp.real(blk), jnp.imag(blk)], axis=1)  # (B,2C,M) f32
    Mp = params["w_spec"].shape[-1]
    if Mp != M:
        xcat = jnp.pad(xcat, ((0, 0), (0, 0), (0, Mp - M)))

    out = spectral_mode_mul(xcat, params["w_spec"])[..., :M]     # (B, 2C, M) f32
    out_c = out[:, :C, :] + 1j * out[:, C:, :]                   # (B, C, M) c64
    out_ft = jnp.zeros((B, C, H, W // 2 + 1), dtype=jnp.complex64)
    out_ft = out_ft.at[:, :, :m, :m].set(out_c[..., :m * m].reshape(B, C, m, m))
    out_ft = out_ft.at[:, :, H - m:, :m].set(out_c[..., m * m:].reshape(B, C, m, m))
    x1 = jnp.fft.irfft2(out_ft, s=(H, W))                        # (B, C, H, W) f32

    # --- fused 1x1 convs + activations, channels-in-sublane layout ---
    HW = H * W
    y, hn = fused_cell(
        x.reshape(B, C, HW), h.reshape(B, C, HW), x1.reshape(B, C, HW),
        params["wx"], params["bx"], params["wh"], params["bh"])
    return y.reshape(B, C, H, W), hn.reshape(B, C, H, W)


# ---------------------------------------------------------------------------
# Deterministic parameter init (mirrors the PyTorch module's __init__ shapes).
# ---------------------------------------------------------------------------
def init_params(key, modes, width):
    C = width
    ks = jax.random.split(key, 8)
    scale = 1.0 / (C * C)
    w1 = (scale * (jax.random.uniform(ks[0], (C, C, modes, modes))
                   + 1j * jax.random.uniform(ks[1], (C, C, modes, modes)))
          ).astype(jnp.complex64)
    w2 = (scale * (jax.random.uniform(ks[2], (C, C, modes, modes))
                   + 1j * jax.random.uniform(ks[3], (C, C, modes, modes)))
          ).astype(jnp.complex64)
    k = 1.0 / math.sqrt(C)   # nn.Conv2d default init bound (fan_in = C*1*1)
    wx = jax.random.uniform(ks[4], (C, C), minval=-k, maxval=k)  # (out, in)
    bx = jax.random.uniform(ks[5], (C,), minval=-k, maxval=k)
    wh = jax.random.uniform(ks[6], (C, C), minval=-k, maxval=k)
    bh = jax.random.uniform(ks[7], (C,), minval=-k, maxval=k)
    return {"w1": w1, "w2": w2, "wx": wx, "bx": bx, "wh": wh, "bh": bh,
            # static-across-steps packed spectral weights for the kernel
            "w_spec": pack_spectral_weights(w1, w2, modes)}


# ---------------------------------------------------------------------------
# Pure-JAX reference of the PyTorch forward (for correctness checking).
# ---------------------------------------------------------------------------
def reference_forward(x, h, p, modes):
    B, C, H, W = x.shape
    m = modes
    h2 = jnp.einsum("oi,bihw->bohw", p["wh"], h) + p["bh"][None, :, None, None]
    hg = _gelu_exact(h2)
    x_ft = jnp.fft.rfft2(x)
    out_ft = jnp.zeros((B, C, H, W // 2 + 1), dtype=jnp.complex64)
    out_ft = out_ft.at[:, :, :m, :m].set(
        jnp.einsum("bixy,ioxy->boxy", x_ft[:, :, :m, :m], p["w1"]))
    out_ft = out_ft.at[:, :, H - m:, :m].set(
        jnp.einsum("bixy,ioxy->boxy", x_ft[:, :, H - m:, :m], p["w2"]))
    x1 = jnp.fft.irfft2(out_ft, s=(H, W))
    x2 = jnp.einsum("oi,bihw->bohw", p["wx"], x) + p["bx"][None, :, None, None]
    xs = _gelu_exact(x1 + x2)
    hn = hg + xs
    return jnp.tanh(hn), hn


if __name__ == "__main__":
    # configuration from the original module: Modes=8, Width=32, Batch=2
    B, width, modes, H, W = 2, 32, 8, 16, 16

    key = jax.random.PRNGKey(0)
    kp, kx, kh = jax.random.split(key, 3)
    params = init_params(kp, modes, width)
    x = jax.random.normal(kx, (B, width, H, W), dtype=jnp.float32)
    h = jax.random.normal(kh, (B, width, H, W), dtype=jnp.float32)

    fwd = jax.jit(frnn_cell_forward, static_argnames="modes")
    y, h_new = fwd(x, h, params, modes=modes)
    y = jax.block_until_ready(y)
    h_new = jax.block_until_ready(h_new)

    # Tolerance note: kernel uses bf16 MXU operands for the 1x1 convs and the
    # tanh-approximation GELU (both documented, deliberate perf trades); the
    # spectral path is exact f32.
    y_ref, h_ref = reference_forward(x, h, params, modes)
    np.testing.assert_allclose(np.asarray(y), np.asarray(y_ref),
                               atol=3e-2, rtol=2e-2)
    np.testing.assert_allclose(np.asarray(h_new), np.asarray(h_ref),
                               atol=3e-2, rtol=2e-2)

    print("KERNEL_OK")
</pallas_src>

<mosaic_0001>
module attributes {stable_mosaic.version = 11 : i64} {
  func.func @_spectral_mul_kernel(%arg0: i32, %arg1: i32, %arg2: i32, %arg3: memref<1x64x128xf32, #tpu.memory_space<vmem>>, %arg4: memref<64x64x128xf32, #tpu.memory_space<vmem>>, %arg5: memref<1x64x128xf32, #tpu.memory_space<vmem>>) attributes {dimension_semantics = [#tpu.dimension_semantics<parallel>, #tpu.dimension_semantics<parallel>, #tpu.dimension_semantics<parallel>], iteration_bounds = array<i64: 1, 1, 2>, scalar_prefetch = 0 : i64, scratch_operands = 0 : i64, tpu.core_type = #tpu.core_type<tc>, window_params = [{transform_indices = @transform_0, window_bounds = array<i64: 1, 64, 128>}, {transform_indices = @transform_1, window_bounds = array<i64: 64, 64, 128>}, {transform_indices = @transform_2, window_bounds = array<i64: 1, 64, 128>}]} {
    %c0 = arith.constant 0 : index
    %c0_0 = arith.constant 0 : index
    %c0_1 = arith.constant 0 : index
    %0 = vector.load %arg3[%c0, %c0_0, %c0_1] : memref<1x64x128xf32, #tpu.memory_space<vmem>>, vector<1x64x128xf32>
    %1 = vector.shape_cast %0 : vector<1x64x128xf32> to vector<64x128xf32>
    %cst = arith.constant 0.000000e+00 : f32
    %2 = vector.broadcast %cst : f32 to vector<64x128xf32>
    %3 = vector.extract_strided_slice %1 {offsets = [0, 0], sizes = [1, 128], strides = [1, 1]} : vector<64x128xf32> to vector<1x128xf32>
    %4 = vector.shape_cast %3 : vector<1x128xf32> to vector<128xf32>
    %5 = vector.shape_cast %4 : vector<128xf32> to vector<1x128xf32>
    %c0_2 = arith.constant 0 : index
    %c0_3 = arith.constant 0 : index
    %c0_4 = arith.constant 0 : index
    %6 = vector.load %arg4[%c0_2, %c0_3, %c0_4] : memref<64x64x128xf32, #tpu.memory_space<vmem>>, vector<1x64x128xf32>
    %7 = vector.shape_cast %6 : vector<1x64x128xf32> to vector<64x128xf32>
    %8 = vector.broadcast %5 : vector<1x128xf32> to vector<64x128xf32>
    %9 = arith.mulf %8, %7 : vector<64x128xf32>
    %10 = arith.addf %2, %9 : vector<64x128xf32>
    %11 = vector.extract_strided_slice %1 {offsets = [1, 0], sizes = [1, 128], strides = [1, 1]} : vector<64x128xf32> to vector<1x128xf32>
    %12 = vector.shape_cast %11 : vector<1x128xf32> to vector<128xf32>
    %13 = vector.shape_cast %12 : vector<128xf32> to vector<1x128xf32>
    %c1 = arith.constant 1 : index
    %c0_5 = arith.constant 0 : index
    %c0_6 = arith.constant 0 : index
    %14 = vector.load %arg4[%c1, %c0_5, %c0_6] : memref<64x64x128xf32, #tpu.memory_space<vmem>>, vector<1x64x128xf32>
    %15 = vector.shape_cast %14 : vector<1x64x128xf32> to vector<64x128xf32>
    %16 = vector.broadcast %13 : vector<1x128xf32> to vector<64x128xf32>
    %17 = arith.mulf %16, %15 : vector<64x128xf32>
    %18 = arith.addf %10, %17 : vector<64x128xf32>
    %19 = vector.extract_strided_slice %1 {offsets = [2, 0], sizes = [1, 128], strides = [1, 1]} : vector<64x128xf32> to vector<1x128xf32>
    %20 = vector.shape_cast %19 : vector<1x128xf32> to vector<128xf32>
    %21 = vector.shape_cast %20 : vector<128xf32> to vector<1x128xf32>
    %c2 = arith.constant 2 : index
    %c0_7 = arith.constant 0 : index
    %c0_8 = arith.constant 0 : index
    %22 = vector.load %arg4[%c2, %c0_7, %c0_8] : memref<64x64x128xf32, #tpu.memory_space<vmem>>, vector<1x64x128xf32>
    %23 = vector.shape_cast %22 : vector<1x64x128xf32> to vector<64x128xf32>
    %24 = vector.broadcast %21 : vector<1x128xf32> to vector<64x128xf32>
    %25 = arith.mulf %24, %23 : vector<64x128xf32>
    %26 = arith.addf %18, %25 : vector<64x128xf32>
    %27 = vector.extract_strided_slice %1 {offsets = [3, 0], sizes = [1, 128], strides = [1, 1]} : vector<64x128xf32> to vector<1x128xf32>
    %28 = vector.shape_cast %27 : vector<1x128xf32> to vector<128xf32>
    %29 = vector.shape_cast %28 : vector<128xf32> to vector<1x128xf32>
    %c3 = arith.constant 3 : index
    %c0_9 = arith.constant 0 : index
    %c0_10 = arith.constant 0 : index
    %30 = vector.load %arg4[%c3, %c0_9, %c0_10] : memref<64x64x128xf32, #tpu.memory_space<vmem>>, vector<1x64x128xf32>
    %31 = vector.shape_cast %30 : vector<1x64x128xf32> to vector<64x128xf32>
    %32 = vector.broadcast %29 : vector<1x128xf32> to vector<64x128xf32>
    %33 = arith.mulf %32, %31 : vector<64x128xf32>
    %34 = arith.addf %26, %33 : vector<64x128xf32>
    %35 = vector.extract_strided_slice %1 {offsets = [4, 0], sizes = [1, 128], strides = [1, 1]} : vector<64x128xf32> to vector<1x128xf32>
    %36 = vector.shape_cast %35 : vector<1x128xf32> to vector<128xf32>
    %37 = vector.shape_cast %36 : vector<128xf32> to vector<1x128xf32>
    %c4 = arith.constant 4 : index
    %c0_11 = arith.constant 0 : index
    %c0_12 = arith.constant 0 : index
    %38 = vector.load %arg4[%c4, %c0_11, %c0_12] : memref<64x64x128xf32, #tpu.memory_space<vmem>>, vector<1x64x128xf32>
    %39 = vector.shape_cast %38 : vector<1x64x128xf32> to vector<64x128xf32>
    %40 = vector.broadcast %37 : vector<1x128xf32> to vector<64x128xf32>
    %41 = arith.mulf %40, %39 : vector<64x128xf32>
    %42 = arith.addf %34, %41 : vector<64x128xf32>
    %43 = vector.extract_strided_slice %1 {offsets = [5, 0], sizes = [1, 128], strides = [1, 1]} : vector<64x128xf32> to vector<1x128xf32>
    %44 = vector.shape_cast %43 : vector<1x128xf32> to vector<128xf32>
    %45 = vector.shape_cast %44 : vector<128xf32> to vector<1x128xf32>
    %c5 = arith.constant 5 : index
    %c0_13 = arith.constant 0 : index
    %c0_14 = arith.constant 0 : index
    %46 = vector.load %arg4[%c5, %c0_13, %c0_14] : memref<64x64x128xf32, #tpu.memory_space<vmem>>, vector<1x64x128xf32>
    %47 = vector.shape_cast %46 : vector<1x64x128xf32> to vector<64x128xf32>
    %48 = vector.broadcast %45 : vector<1x128xf32> to vector<64x128xf32>
    %49 = arith.mulf %48, %47 : vector<64x128xf32>
    %50 = arith.addf %42, %49 : vector<64x128xf32>
    %51 = vector.extract_strided_slice %1 {offsets = [6, 0], sizes = [1, 128], strides = [1, 1]} : vector<64x128xf32> to vector<1x128xf32>
    %52 = vector.shape_cast %51 : vector<1x128xf32> to vector<128xf32>
    %53 = vector.shape_cast %52 : vector<128xf32> to vector<1x128xf32>
    %c6 = arith.constant 6 : index
    %c0_15 = arith.constant 0 : index
    %c0_16 = arith.constant 0 : index
    %54 = vector.load %arg4[%c6, %c0_15, %c0_16] : memref<64x64x128xf32, #tpu.memory_space<vmem>>, vector<1x64x128xf32>
    %55 = vector.shape_cast %54 : vector<1x64x128xf32> to vector<64x128xf32>
    %56 = vector.broadcast %53 : vector<1x128xf32> to vector<64x128xf32>
    %57 = arith.mulf %56, %55 : vector<64x128xf32>
    %58 = arith.addf %50, %57 : vector<64x128xf32>
    %59 = vector.extract_strided_slice %1 {offsets = [7, 0], sizes = [1, 128], strides = [1, 1]} : vector<64x128xf32> to vector<1x128xf32>
    %60 = vector.shape_cast %59 : vector<1x128xf32> to vector<128xf32>
    %61 = vector.shape_cast %60 : vector<128xf32> to vector<1x128xf32>
    %c7 = arith.constant 7 : index
    %c0_17 = arith.constant 0 : index
    %c0_18 = arith.constant 0 : index
    %62 = vector.load %arg4[%c7, %c0_17, %c0_18] : memref<64x64x128xf32, #tpu.memory_space<vmem>>, vector<1x64x128xf32>
    %63 = vector.shape_cast %62 : vector<1x64x128xf32> to vector<64x128xf32>
    %64 = vector.broadcast %61 : vector<1x128xf32> to vector<64x128xf32>
    %65 = arith.mulf %64, %63 : vector<64x128xf32>
    %66 = arith.addf %58, %65 : vector<64x128xf32>
    %67 = vector.extract_strided_slice %1 {offsets = [8, 0], sizes = [1, 128], strides = [1, 1]} : vector<64x128xf32> to vector<1x128xf32>
    %68 = vector.shape_cast %67 : vector<1x128xf32> to vector<128xf32>
    %69 = vector.shape_cast %68 : vector<128xf32> to vector<1x128xf32>
    %c8 = arith.constant 8 : index
    %c0_19 = arith.constant 0 : index
    %c0_20 = arith.constant 0 : index
    %70 = vector.load %arg4[%c8, %c0_19, %c0_20] : memref<64x64x128xf32, #tpu.memory_space<vmem>>, vector<1x64x128xf32>
    %71 = vector.shape_cast %70 : vector<1x64x128xf32> to vector<64x128xf32>
    %72 = vector.broadcast %69 : vector<1x128xf32> to vector<64x128xf32>
    %73 = arith.mulf %72, %71 : vector<64x128xf32>
    %74 = arith.addf %66, %73 : vector<64x128xf32>
    %75 = vector.extract_strided_slice %1 {offsets = [9, 0], sizes = [1, 128], strides = [1, 1]} : vector<64x128xf32> to vector<1x128xf32>
    %76 = vector.shape_cast %75 : vector<1x128xf32> to vector<128xf32>
    %77 = vector.shape_cast %76 : vector<128xf32> to vector<1x128xf32>
    %c9 = arith.constant 9 : index
    %c0_21 = arith.constant 0 : index
    %c0_22 = arith.constant 0 : index
    %78 = vector.load %arg4[%c9, %c0_21, %c0_22] : memref<64x64x128xf32, #tpu.memory_space<vmem>>, vector<1x64x128xf32>
    %79 = vector.shape_cast %78 : vector<1x64x128xf32> to vector<64x128xf32>
    %80 = vector.broadcast %77 : vector<1x128xf32> to vector<64x128xf32>
    %81 = arith.mulf %80, %79 : vector<64x128xf32>
    %82 = arith.addf %74, %81 : vector<64x128xf32>
    %83 = vector.extract_strided_slice %1 {offsets = [10, 0], sizes = [1, 128], strides = [1, 1]} : vector<64x128xf32> to vector<1x128xf32>
    %84 = vector.shape_cast %83 : vector<1x128xf32> to vector<128xf32>
    %85 = vector.shape_cast %84 : vector<128xf32> to vector<1x128xf32>
    %c10 = arith.constant 10 : index
    %c0_23 = arith.constant 0 : index
    %c0_24 = arith.constant 0 : index
    %86 = vector.load %arg4[%c10, %c0_23, %c0_24] : memref<64x64x128xf32, #tpu.memory_space<vmem>>, vector<1x64x128xf32>
    %87 = vector.shape_cast %86 : vector<1x64x128xf32> to vector<64x128xf32>
    %88 = vector.broadcast %85 : vector<1x128xf32> to vector<64x128xf32>
    %89 = arith.mulf %88, %87 : vector<64x128xf32>
    %90 = arith.addf %82, %89 : vector<64x128xf32>
    %91 = vector.extract_strided_slice %1 {offsets = [11, 0], sizes = [1, 128], strides = [1, 1]} : vector<64x128xf32> to vector<1x128xf32>
    %92 = vector.shape_cast %91 : vector<1x128xf32> to vector<128xf32>
    %93 = vector.shape_cast %92 : vector<128xf32> to vector<1x128xf32>
    %c11 = arith.constant 11 : index
    %c0_25 = arith.constant 0 : index
    %c0_26 = arith.constant 0 : index
    %94 = vector.load %arg4[%c11, %c0_25, %c0_26] : memref<64x64x128xf32, #tpu.memory_space<vmem>>, vector<1x64x128xf32>
    %95 = vector.shape_cast %94 : vector<1x64x128xf32> to vector<64x128xf32>
    %96 = vector.broadcast %93 : vector<1x128xf32> to vector<64x128xf32>
    %97 = arith.mulf %96, %95 : vector<64x128xf32>
    %98 = arith.addf %90, %97 : vector<64x128xf32>
    %99 = vector.extract_strided_slice %1 {offsets = [12, 0], sizes = [1, 128], strides = [1, 1]} : vector<64x128xf32> to vector<1x128xf32>
    %100 = vector.shape_cast %99 : vector<1x128xf32> to vector<128xf32>
    %101 = vector.shape_cast %100 : vector<128xf32> to vector<1x128xf32>
    %c12 = arith.constant 12 : index
    %c0_27 = arith.constant 0 : index
    %c0_28 = arith.constant 0 : index
    %102 = vector.load %arg4[%c12, %c0_27, %c0_28] : memref<64x64x128xf32, #tpu.memory_space<vmem>>, vector<1x64x128xf32>
    %103 = vector.shape_cast %102 : vector<1x64x128xf32> to vector<64x128xf32>
    %104 = vector.broadcast %101 : vector<1x128xf32> to vector<64x128xf32>
    %105 = arith.mulf %104, %103 : vector<64x128xf32>
    %106 = arith.addf %98, %105 : vector<64x128xf32>
    %107 = vector.extract_strided_slice %1 {offsets = [13, 0], sizes = [1, 128], strides = [1, 1]} : vector<64x128xf32> to vector<1x128xf32>
    %108 = vector.shape_cast %107 : vector<1x128xf32> to vector<128xf32>
    %109 = vector.shape_cast %108 : vector<128xf32> to vector<1x128xf32>
    %c13 = arith.constant 13 : index
    %c0_29 = arith.constant 0 : index
    %c0_30 = arith.constant 0 : index
    %110 = vector.load %arg4[%c13, %c0_29, %c0_30] : memref<64x64x128xf32, #tpu.memory_space<vmem>>, vector<1x64x128xf32>
    %111 = vector.shape_cast %110 : vector<1x64x128xf32> to vector<64x128xf32>
    %112 = vector.broadcast %109 : vector<1x128xf32> to vector<64x128xf32>
    %113 = arith.mulf %112, %111 : vector<64x128xf32>
    %114 = arith.addf %106, %113 : vector<64x128xf32>
    %115 = vector.extract_strided_slice %1 {offsets = [14, 0], sizes = [1, 128], strides = [1, 1]} : vector<64x128xf32> to vector<1x128xf32>
    %116 = vector.shape_cast %115 : vector<1x128xf32> to vector<128xf32>
    %117 = vector.shape_cast %116 : vector<128xf32> to vector<1x128xf32>
    %c14 = arith.constant 14 : index
    %c0_31 = arith.constant 0 : index
    %c0_32 = arith.constant 0 : index
    %118 = vector.load %arg4[%c14, %c0_31, %c0_32] : memref<64x64x128xf32, #tpu.memory_space<vmem>>, vector<1x64x128xf32>
    %119 = vector.shape_cast %118 : vector<1x64x128xf32> to vector<64x128xf32>
    %120 = vector.broadcast %117 : vector<1x128xf32> to vector<64x128xf32>
    %121 = arith.mulf %120, %119 : vector<64x128xf32>
    %122 = arith.addf %114, %121 : vector<64x128xf32>
    %123 = vector.extract_strided_slice %1 {offsets = [15, 0], sizes = [1, 128], strides = [1, 1]} : vector<64x128xf32> to vector<1x128xf32>
    %124 = vector.shape_cast %123 : vector<1x128xf32> to vector<128xf32>
    %125 = vector.shape_cast %124 : vector<128xf32> to vector<1x128xf32>
    %c15 = arith.constant 15 : index
    %c0_33 = arith.constant 0 : index
    %c0_34 = arith.constant 0 : index
    %126 = vector.load %arg4[%c15, %c0_33, %c0_34] : memref<64x64x128xf32, #tpu.memory_space<vmem>>, vector<1x64x128xf32>
    %127 = vector.shape_cast %126 : vector<1x64x128xf32> to vector<64x128xf32>
    %128 = vector.broadcast %125 : vector<1x128xf32> to vector<64x128xf32>
    %129 = arith.mulf %128, %127 : vector<64x128xf32>
    %130 = arith.addf %122, %129 : vector<64x128xf32>
    %131 = vector.extract_strided_slice %1 {offsets = [16, 0], sizes = [1, 128], strides = [1, 1]} : vector<64x128xf32> to vector<1x128xf32>
    %132 = vector.shape_cast %131 : vector<1x128xf32> to vector<128xf32>
    %133 = vector.shape_cast %132 : vector<128xf32> to vector<1x128xf32>
    %c16 = arith.constant 16 : index
    %c0_35 = arith.constant 0 : index
    %c0_36 = arith.constant 0 : index
    %134 = vector.load %arg4[%c16, %c0_35, %c0_36] : memref<64x64x128xf32, #tpu.memory_space<vmem>>, vector<1x64x128xf32>
    %135 = vector.shape_cast %134 : vector<1x64x128xf32> to vector<64x128xf32>
    %136 = vector.broadcast %133 : vector<1x128xf32> to vector<64x128xf32>
    %137 = arith.mulf %136, %135 : vector<64x128xf32>
    %138 = arith.addf %130, %137 : vector<64x128xf32>
    %139 = vector.extract_strided_slice %1 {offsets = [17, 0], sizes = [1, 128], strides = [1, 1]} : vector<64x128xf32> to vector<1x128xf32>
    %140 = vector.shape_cast %139 : vector<1x128xf32> to vector<128xf32>
    %141 = vector.shape_cast %140 : vector<128xf32> to vector<1x128xf32>
    %c17 = arith.constant 17 : index
    %c0_37 = arith.constant 0 : index
    %c0_38 = arith.constant 0 : index
    %142 = vector.load %arg4[%c17, %c0_37, %c0_38] : memref<64x64x128xf32, #tpu.memory_space<vmem>>, vector<1x64x128xf32>
    %143 = vector.shape_cast %142 : vector<1x64x128xf32> to vector<64x128xf32>
    %144 = vector.broadcast %141 : vector<1x128xf32> to vector<64x128xf32>
    %145 = arith.mulf %144, %143 : vector<64x128xf32>
    %146 = arith.addf %138, %145 : vector<64x128xf32>
    %147 = vector.extract_strided_slice %1 {offsets = [18, 0], sizes = [1, 128], strides = [1, 1]} : vector<64x128xf32> to vector<1x128xf32>
    %148 = vector.shape_cast %147 : vector<1x128xf32> to vector<128xf32>
    %149 = vector.shape_cast %148 : vector<128xf32> to vector<1x128xf32>
    %c18 = arith.constant 18 : index
    %c0_39 = arith.constant 0 : index
    %c0_40 = arith.constant 0 : index
    %150 = vector.load %arg4[%c18, %c0_39, %c0_40] : memref<64x64x128xf32, #tpu.memory_space<vmem>>, vector<1x64x128xf32>
    %151 = vector.shape_cast %150 : vector<1x64x128xf32> to vector<64x128xf32>
    %152 = vector.broadcast %149 : vector<1x128xf32> to vector<64x128xf32>
    %153 = arith.mulf %152, %151 : vector<64x128xf32>
    %154 = arith.addf %146, %153 : vector<64x128xf32>
    %155 = vector.extract_strided_slice %1 {offsets = [19, 0], sizes = [1, 128], strides = [1, 1]} : vector<64x128xf32> to vector<1x128xf32>
    %156 = vector.shape_cast %155 : vector<1x128xf32> to vector<128xf32>
    %157 = vector.shape_cast %156 : vector<128xf32> to vector<1x128xf32>
    %c19 = arith.constant 19 : index
    %c0_41 = arith.constant 0 : index
    %c0_42 = arith.constant 0 : index
    %158 = vector.load %arg4[%c19, %c0_41, %c0_42] : memref<64x64x128xf32, #tpu.memory_space<vmem>>, vector<1x64x128xf32>
    %159 = vector.shape_cast %158 : vector<1x64x128xf32> to vector<64x128xf32>
    %160 = vector.broadcast %157 : vector<1x128xf32> to vector<64x128xf32>
    %161 = arith.mulf %160, %159 : vector<64x128xf32>
    %162 = arith.addf %154, %161 : vector<64x128xf32>
    %163 = vector.extract_strided_slice %1 {offsets = [20, 0], sizes = [1, 128], strides = [1, 1]} : vector<64x128xf32> to vector<1x128xf32>
    %164 = vector.shape_cast %163 : vector<1x128xf32> to vector<128xf32>
    %165 = vector.shape_cast %164 : vector<128xf32> to vector<1x128xf32>
    %c20 = arith.constant 20 : index
    %c0_43 = arith.constant 0 : index
    %c0_44 = arith.constant 0 : index
    %166 = vector.load %arg4[%c20, %c0_43, %c0_44] : memref<64x64x128xf32, #tpu.memory_space<vmem>>, vector<1x64x128xf32>
    %167 = vector.shape_cast %166 : vector<1x64x128xf32> to vector<64x128xf32>
    %168 = vector.broadcast %165 : vector<1x128xf32> to vector<64x128xf32>
    %169 = arith.mulf %168, %167 : vector<64x128xf32>
    %170 = arith.addf %162, %169 : vector<64x128xf32>
    %171 = vector.extract_strided_slice %1 {offsets = [21, 0], sizes = [1, 128], strides = [1, 1]} : vector<64x128xf32> to vector<1x128xf32>
    %172 = vector.shape_cast %171 : vector<1x128xf32> to vector<128xf32>
    %173 = vector.shape_cast %172 : vector<128xf32> to vector<1x128xf32>
    %c21 = arith.constant 21 : index
    %c0_45 = arith.constant 0 : index
    %c0_46 = arith.constant 0 : index
    %174 = vector.load %arg4[%c21, %c0_45, %c0_46] : memref<64x64x128xf32, #tpu.memory_space<vmem>>, vector<1x64x128xf32>
    %175 = vector.shape_cast %174 : vector<1x64x128xf32> to vector<64x128xf32>
    %176 = vector.broadcast %173 : vector<1x128xf32> to vector<64x128xf32>
    %177 = arith.mulf %176, %175 : vector<64x128xf32>
    %178 = arith.addf %170, %177 : vector<64x128xf32>
    %179 = vector.extract_strided_slice %1 {offsets = [22, 0], sizes = [1, 128], strides = [1, 1]} : vector<64x128xf32> to vector<1x128xf32>
    %180 = vector.shape_cast %179 : vector<1x128xf32> to vector<128xf32>
    %181 = vector.shape_cast %180 : vector<128xf32> to vector<1x128xf32>
    %c22 = arith.constant 22 : index
    %c0_47 = arith.constant 0 : index
    %c0_48 = arith.constant 0 : index
    %182 = vector.load %arg4[%c22, %c0_47, %c0_48] : memref<64x64x128xf32, #tpu.memory_space<vmem>>, vector<1x64x128xf32>
    %183 = vector.shape_cast %182 : vector<1x64x128xf32> to vector<64x128xf32>
    %184 = vector.broadcast %181 : vector<1x128xf32> to vector<64x128xf32>
    %185 = arith.mulf %184, %183 : vector<64x128xf32>
    %186 = arith.addf %178, %185 : vector<64x128xf32>
    %187 = vector.extract_strided_slice %1 {offsets = [23, 0], sizes = [1, 128], strides = [1, 1]} : vector<64x128xf32> to vector<1x128xf32>
    %188 = vector.shape_cast %187 : vector<1x128xf32> to vector<128xf32>
    %189 = vector.shape_cast %188 : vector<128xf32> to vector<1x128xf32>
    %c23 = arith.constant 23 : index
    %c0_49 = arith.constant 0 : index
    %c0_50 = arith.constant 0 : index
    %190 = vector.load %arg4[%c23, %c0_49, %c0_50] : memref<64x64x128xf32, #tpu.memory_space<vmem>>, vector<1x64x128xf32>
    %191 = vector.shape_cast %190 : vector<1x64x128xf32> to vector<64x128xf32>
    %192 = vector.broadcast %189 : vector<1x128xf32> to vector<64x128xf32>
    %193 = arith.mulf %192, %191 : vector<64x128xf32>
    %194 = arith.addf %186, %193 : vector<64x128xf32>
    %195 = vector.extract_strided_slice %1 {offsets = [24, 0], sizes = [1, 128], strides = [1, 1]} : vector<64x128xf32> to vector<1x128xf32>
    %196 = vector.shape_cast %195 : vector<1x128xf32> to vector<128xf32>
    %197 = vector.shape_cast %196 : vector<128xf32> to vector<1x128xf32>
    %c24 = arith.constant 24 : index
    %c0_51 = arith.constant 0 : index
    %c0_52 = arith.constant 0 : index
    %198 = vector.load %arg4[%c24, %c0_51, %c0_52] : memref<64x64x128xf32, #tpu.memory_space<vmem>>, vector<1x64x128xf32>
    %199 = vector.shape_cast %198 : vector<1x64x128xf32> to vector<64x128xf32>
    %200 = vector.broadcast %197 : vector<1x128xf32> to vector<64x128xf32>
    %201 = arith.mulf %200, %199 : vector<64x128xf32>
    %202 = arith.addf %194, %201 : vector<64x128xf32>
    %203 = vector.extract_strided_slice %1 {offsets = [25, 0], sizes = [1, 128], strides = [1, 1]} : vector<64x128xf32> to vector<1x128xf32>
    %204 = vector.shape_cast %203 : vector<1x128xf32> to vector<128xf32>
    %205 = vector.shape_cast %204 : vector<128xf32> to vector<1x128xf32>
    %c25 = arith.constant 25 : index
    %c0_53 = arith.constant 0 : index
    %c0_54 = arith.constant 0 : index
    %206 = vector.load %arg4[%c25, %c0_53, %c0_54] : memref<64x64x128xf32, #tpu.memory_space<vmem>>, vector<1x64x128xf32>
    %207 = vector.shape_cast %206 : vector<1x64x128xf32> to vector<64x128xf32>
    %208 = vector.broadcast %205 : vector<1x128xf32> to vector<64x128xf32>
    %209 = arith.mulf %208, %207 : vector<64x128xf32>
    %210 = arith.addf %202, %209 : vector<64x128xf32>
    %211 = vector.extract_strided_slice %1 {offsets = [26, 0], sizes = [1, 128], strides = [1, 1]} : vector<64x128xf32> to vector<1x128xf32>
    %212 = vector.shape_cast %211 : vector<1x128xf32> to vector<128xf32>
    %213 = vector.shape_cast %212 : vector<128xf32> to vector<1x128xf32>
    %c26 = arith.constant 26 : index
    %c0_55 = arith.constant 0 : index
    %c0_56 = arith.constant 0 : index
    %214 = vector.load %arg4[%c26, %c0_55, %c0_56] : memref<64x64x128xf32, #tpu.memory_space<vmem>>, vector<1x64x128xf32>
    %215 = vector.shape_cast %214 : vector<1x64x128xf32> to vector<64x128xf32>
    %216 = vector.broadcast %213 : vector<1x128xf32> to vector<64x128xf32>
    %217 = arith.mulf %216, %215 : vector<64x128xf32>
    %218 = arith.addf %210, %217 : vector<64x128xf32>
    %219 = vector.extract_strided_slice %1 {offsets = [27, 0], sizes = [1, 128], strides = [1, 1]} : vector<64x128xf32> to vector<1x128xf32>
    %220 = vector.shape_cast %219 : vector<1x128xf32> to vector<128xf32>
    %221 = vector.shape_cast %220 : vector<128xf32> to vector<1x128xf32>
    %c27 = arith.constant 27 : index
    %c0_57 = arith.constant 0 : index
    %c0_58 = arith.constant 0 : index
    %222 = vector.load %arg4[%c27, %c0_57, %c0_58] : memref<64x64x128xf32, #tpu.memory_space<vmem>>, vector<1x64x128xf32>
    %223 = vector.shape_cast %222 : vector<1x64x128xf32> to vector<64x128xf32>
    %224 = vector.broadcast %221 : vector<1x128xf32> to vector<64x128xf32>
    %225 = arith.mulf %224, %223 : vector<64x128xf32>
    %226 = arith.addf %218, %225 : vector<64x128xf32>
    %227 = vector.extract_strided_slice %1 {offsets = [28, 0], sizes = [1, 128], strides = [1, 1]} : vector<64x128xf32> to vector<1x128xf32>
    %228 = vector.shape_cast %227 : vector<1x128xf32> to vector<128xf32>
    %229 = vector.shape_cast %228 : vector<128xf32> to vector<1x128xf32>
    %c28 = arith.constant 28 : index
    %c0_59 = arith.constant 0 : index
    %c0_60 = arith.constant 0 : index
    %230 = vector.load %arg4[%c28, %c0_59, %c0_60] : memref<64x64x128xf32, #tpu.memory_space<vmem>>, vector<1x64x128xf32>
    %231 = vector.shape_cast %230 : vector<1x64x128xf32> to vector<64x128xf32>
    %232 = vector.broadcast %229 : vector<1x128xf32> to vector<64x128xf32>
    %233 = arith.mulf %232, %231 : vector<64x128xf32>
    %234 = arith.addf %226, %233 : vector<64x128xf32>
    %235 = vector.extract_strided_slice %1 {offsets = [29, 0], sizes = [1, 128], strides = [1, 1]} : vector<64x128xf32> to vector<1x128xf32>
    %236 = vector.shape_cast %235 : vector<1x128xf32> to vector<128xf32>
    %237 = vector.shape_cast %236 : vector<128xf32> to vector<1x128xf32>
    %c29 = arith.constant 29 : index
    %c0_61 = arith.constant 0 : index
    %c0_62 = arith.constant 0 : index
    %238 = vector.load %arg4[%c29, %c0_61, %c0_62] : memref<64x64x128xf32, #tpu.memory_space<vmem>>, vector<1x64x128xf32>
    %239 = vector.shape_cast %238 : vector<1x64x128xf32> to vector<64x128xf32>
    %240 = vector.broadcast %237 : vector<1x128xf32> to vector<64x128xf32>
    %241 = arith.mulf %240, %239 : vector<64x128xf32>
    %242 = arith.addf %234, %241 : vector<64x128xf32>
    %243 = vector.extract_strided_slice %1 {offsets = [30, 0], sizes = [1, 128], strides = [1, 1]} : vector<64x128xf32> to vector<1x128xf32>
    %244 = vector.shape_cast %243 : vector<1x128xf32> to vector<128xf32>
    %245 = vector.shape_cast %244 : vector<128xf32> to vector<1x128xf32>
    %c30 = arith.constant 30 : index
    %c0_63 = arith.constant 0 : index
    %c0_64 = arith.constant 0 : index
    %246 = vector.load %arg4[%c30, %c0_63, %c0_64] : memref<64x64x128xf32, #tpu.memory_space<vmem>>, vector<1x64x128xf32>
    %247 = vector.shape_cast %246 : vector<1x64x128xf32> to vector<64x128xf32>
    %248 = vector.broadcast %245 : vector<1x128xf32> to vector<64x128xf32>
    %249 = arith.mulf %248, %247 : vector<64x128xf32>
    %250 = arith.addf %242, %249 : vector<64x128xf32>
    %251 = vector.extract_strided_slice %1 {offsets = [31, 0], sizes = [1, 128], strides = [1, 1]} : vector<64x128xf32> to vector<1x128xf32>
    %252 = vector.shape_cast %251 : vector<1x128xf32> to vector<128xf32>
    %253 = vector.shape_cast %252 : vector<128xf32> to vector<1x128xf32>
    %c31 = arith.constant 31 : index
    %c0_65 = arith.constant 0 : index
    %c0_66 = arith.constant 0 : index
    %254 = vector.load %arg4[%c31, %c0_65, %c0_66] : memref<64x64x128xf32, #tpu.memory_space<vmem>>, vector<1x64x128xf32>
    %255 = vector.shape_cast %254 : vector<1x64x128xf32> to vector<64x128xf32>
    %256 = vector.broadcast %253 : vector<1x128xf32> to vector<64x128xf32>
    %257 = arith.mulf %256, %255 : vector<64x128xf32>
    %258 = arith.addf %250, %257 : vector<64x128xf32>
    %259 = vector.extract_strided_slice %1 {offsets = [32, 0], sizes = [1, 128], strides = [1, 1]} : vector<64x128xf32> to vector<1x128xf32>
    %260 = vector.shape_cast %259 : vector<1x128xf32> to vector<128xf32>
    %261 = vector.shape_cast %260 : vector<128xf32> to vector<1x128xf32>
    %c32 = arith.constant 32 : index
    %c0_67 = arith.constant 0 : index
    %c0_68 = arith.constant 0 : index
    %262 = vector.load %arg4[%c32, %c0_67, %c0_68] : memref<64x64x128xf32, #tpu.memory_space<vmem>>, vector<1x64x128xf32>
    %263 = vector.shape_cast %262 : vector<1x64x128xf32> to vector<64x128xf32>
    %264 = vector.broadcast %261 : vector<1x128xf32> to vector<64x128xf32>
    %265 = arith.mulf %264, %263 : vector<64x128xf32>
    %266 = arith.addf %258, %265 : vector<64x128xf32>
    %267 = vector.extract_strided_slice %1 {offsets = [33, 0], sizes = [1, 128], strides = [1, 1]} : vector<64x128xf32> to vector<1x128xf32>
    %268 = vector.shape_cast %267 : vector<1x128xf32> to vector<128xf32>
    %269 = vector.shape_cast %268 : vector<128xf32> to vector<1x128xf32>
    %c33 = arith.constant 33 : index
    %c0_69 = arith.constant 0 : index
    %c0_70 = arith.constant 0 : index
    %270 = vector.load %arg4[%c33, %c0_69, %c0_70] : memref<64x64x128xf32, #tpu.memory_space<vmem>>, vector<1x64x128xf32>
    %271 = vector.shape_cast %270 : vector<1x64x128xf32> to vector<64x128xf32>
    %272 = vector.broadcast %269 : vector<1x128xf32> to vector<64x128xf32>
    %273 = arith.mulf %272, %271 : vector<64x128xf32>
    %274 = arith.addf %266, %273 : vector<64x128xf32>
    %275 = vector.extract_strided_slice %1 {offsets = [34, 0], sizes = [1, 128], strides = [1, 1]} : vector<64x128xf32> to vector<1x128xf32>
    %276 = vector.shape_cast %275 : vector<1x128xf32> to vector<128xf32>
    %277 = vector.shape_cast %276 : vector<128xf32> to vector<1x128xf32>
    %c34 = arith.constant 34 : index
    %c0_71 = arith.constant 0 : index
    %c0_72 = arith.constant 0 : index
    %278 = vector.load %arg4[%c34, %c0_71, %c0_72] : memref<64x64x128xf32, #tpu.memory_space<vmem>>, vector<1x64x128xf32>
    %279 = vector.shape_cast %278 : vector<1x64x128xf32> to vector<64x128xf32>
    %280 = vector.broadcast %277 : vector<1x128xf32> to vector<64x128xf32>
    %281 = arith.mulf %280, %279 : vector<64x128xf32>
    %282 = arith.addf %274, %281 : vector<64x128xf32>
    %283 = vector.extract_strided_slice %1 {offsets = [35, 0], sizes = [1, 128], strides = [1, 1]} : vector<64x128xf32> to vector<1x128xf32>
    %284 = vector.shape_cast %283 : vector<1x128xf32> to vector<128xf32>
    %285 = vector.shape_cast %284 : vector<128xf32> to vector<1x128xf32>
    %c35 = arith.constant 35 : index
    %c0_73 = arith.constant 0 : index
    %c0_74 = arith.constant 0 : index
    %286 = vector.load %arg4[%c35, %c0_73, %c0_74] : memref<64x64x128xf32, #tpu.memory_space<vmem>>, vector<1x64x128xf32>
    %287 = vector.shape_cast %286 : vector<1x64x128xf32> to vector<64x128xf32>
    %288 = vector.broadcast %285 : vector<1x128xf32> to vector<64x128xf32>
    %289 = arith.mulf %288, %287 : vector<64x128xf32>
    %290 = arith.addf %282, %289 : vector<64x128xf32>
    %291 = vector.extract_strided_slice %1 {offsets = [36, 0], sizes = [1, 128], strides = [1, 1]} : vector<64x128xf32> to vector<1x128xf32>
    %292 = vector.shape_cast %291 : vector<1x128xf32> to vector<128xf32>
    %293 = vector.shape_cast %292 : vector<128xf32> to vector<1x128xf32>
    %c36 = arith.constant 36 : index
    %c0_75 = arith.constant 0 : index
    %c0_76 = arith.constant 0 : index
    %294 = vector.load %arg4[%c36, %c0_75, %c0_76] : memref<64x64x128xf32, #tpu.memory_space<vmem>>, vector<1x64x128xf32>
    %295 = vector.shape_cast %294 : vector<1x64x128xf32> to vector<64x128xf32>
    %296 = vector.broadcast %293 : vector<1x128xf32> to vector<64x128xf32>
    %297 = arith.mulf %296, %295 : vector<64x128xf32>
    %298 = arith.addf %290, %297 : vector<64x128xf32>
    %299 = vector.extract_strided_slice %1 {offsets = [37, 0], sizes = [1, 128], strides = [1, 1]} : vector<64x128xf32> to vector<1x128xf32>
    %300 = vector.shape_cast %299 : vector<1x128xf32> to vector<128xf32>
    %301 = vector.shape_cast %300 : vector<128xf32> to vector<1x128xf32>
    %c37 = arith.constant 37 : index
    %c0_77 = arith.constant 0 : index
    %c0_78 = arith.constant 0 : index
    %302 = vector.load %arg4[%c37, %c0_77, %c0_78] : memref<64x64x128xf32, #tpu.memory_space<vmem>>, vector<1x64x128xf32>
    %303 = vector.shape_cast %302 : vector<1x64x128xf32> to vector<64x128xf32>
    %304 = vector.broadcast %301 : vector<1x128xf32> to vector<64x128xf32>
    %305 = arith.mulf %304, %303 : vector<64x128xf32>
    %306 = arith.addf %298, %305 : vector<64x128xf32>
    %307 = vector.extract_strided_slice %1 {offsets = [38, 0], sizes = [1, 128], strides = [1, 1]} : vector<64x128xf32> to vector<1x128xf32>
    %308 = vector.shape_cast %307 : vector<1x128xf32> to vector<128xf32>
    %309 = vector.shape_cast %308 : vector<128xf32> to vector<1x128xf32>
    %c38 = arith.constant 38 : index
    %c0_79 = arith.constant 0 : index
    %c0_80 = arith.constant 0 : index
    %310 = vector.load %arg4[%c38, %c0_79, %c0_80] : memref<64x64x128xf32, #tpu.memory_space<vmem>>, vector<1x64x128xf32>
    %311 = vector.shape_cast %310 : vector<1x64x128xf32> to vector<64x128xf32>
    %312 = vector.broadcast %309 : vector<1x128xf32> to vector<64x128xf32>
    %313 = arith.mulf %312, %311 : vector<64x128xf32>
    %314 = arith.addf %306, %313 : vector<64x128xf32>
    %315 = vector.extract_strided_slice %1 {offsets = [39, 0], sizes = [1, 128], strides = [1, 1]} : vector<64x128xf32> to vector<1x128xf32>
    %316 = vector.shape_cast %315 : vector<1x128xf32> to vector<128xf32>
    %317 = vector.shape_cast %316 : vector<128xf32> to vector<1x128xf32>
    %c39 = arith.constant 39 : index
    %c0_81 = arith.constant 0 : index
    %c0_82 = arith.constant 0 : index
    %318 = vector.load %arg4[%c39, %c0_81, %c0_82] : memref<64x64x128xf32, #tpu.memory_space<vmem>>, vector<1x64x128xf32>
    %319 = vector.shape_cast %318 : vector<1x64x128xf32> to vector<64x128xf32>
    %320 = vector.broadcast %317 : vector<1x128xf32> to vector<64x128xf32>
    %321 = arith.mulf %320, %319 : vector<64x128xf32>
    %322 = arith.addf %314, %321 : vector<64x128xf32>
    %323 = vector.extract_strided_slice %1 {offsets = [40, 0], sizes = [1, 128], strides = [1, 1]} : vector<64x128xf32> to vector<1x128xf32>
    %324 = vector.shape_cast %323 : vector<1x128xf32> to vector<128xf32>
    %325 = vector.shape_cast %324 : vector<128xf32> to vector<1x128xf32>
    %c40 = arith.constant 40 : index
    %c0_83 = arith.constant 0 : index
    %c0_84 = arith.constant 0 : index
    %326 = vector.load %arg4[%c40, %c0_83, %c0_84] : memref<64x64x128xf32, #tpu.memory_space<vmem>>, vector<1x64x128xf32>
    %327 = vector.shape_cast %326 : vector<1x64x128xf32> to vector<64x128xf32>
    %328 = vector.broadcast %325 : vector<1x128xf32> to vector<64x128xf32>
    %329 = arith.mulf %328, %327 : vector<64x128xf32>
    %330 = arith.addf %322, %329 : vector<64x128xf32>
    %331 = vector.extract_strided_slice %1 {offsets = [41, 0], sizes = [1, 128], strides = [1, 1]} : vector<64x128xf32> to vector<1x128xf32>
    %332 = vector.shape_cast %331 : vector<1x128xf32> to vector<128xf32>
    %333 = vector.shape_cast %332 : vector<128xf32> to vector<1x128xf32>
    %c41 = arith.constant 41 : index
    %c0_85 = arith.constant 0 : index
    %c0_86 = arith.constant 0 : index
    %334 = vector.load %arg4[%c41, %c0_85, %c0_86] : memref<64x64x128xf32, #tpu.memory_space<vmem>>, vector<1x64x128xf32>
    %335 = vector.shape_cast %334 : vector<1x64x128xf32> to vector<64x128xf32>
    %336 = vector.broadcast %333 : vector<1x128xf32> to vector<64x128xf32>
    %337 = arith.mulf %336, %335 : vector<64x128xf32>
    %338 = arith.addf %330, %337 : vector<64x128xf32>
    %339 = vector.extract_strided_slice %1 {offsets = [42, 0], sizes = [1, 128], strides = [1, 1]} : vector<64x128xf32> to vector<1x128xf32>
    %340 = vector.shape_cast %339 : vector<1x128xf32> to vector<128xf32>
    %341 = vector.shape_cast %340 : vector<128xf32> to vector<1x128xf32>
    %c42 = arith.constant 42 : index
    %c0_87 = arith.constant 0 : index
    %c0_88 = arith.constant 0 : index
    %342 = vector.load %arg4[%c42, %c0_87, %c0_88] : memref<64x64x128xf32, #tpu.memory_space<vmem>>, vector<1x64x128xf32>
    %343 = vector.shape_cast %342 : vector<1x64x128xf32> to vector<64x128xf32>
    %344 = vector.broadcast %341 : vector<1x128xf32> to vector<64x128xf32>
    %345 = arith.mulf %344, %343 : vector<64x128xf32>
    %346 = arith.addf %338, %345 : vector<64x128xf32>
    %347 = vector.extract_strided_slice %1 {offsets = [43, 0], sizes = [1, 128], strides = [1, 1]} : vector<64x128xf32> to vector<1x128xf32>
    %348 = vector.shape_cast %347 : vector<1x128xf32> to vector<128xf32>
    %349 = vector.shape_cast %348 : vector<128xf32> to vector<1x128xf32>
    %c43 = arith.constant 43 : index
    %c0_89 = arith.constant 0 : index
    %c0_90 = arith.constant 0 : index
    %350 = vector.load %arg4[%c43, %c0_89, %c0_90] : memref<64x64x128xf32, #tpu.memory_space<vmem>>, vector<1x64x128xf32>
    %351 = vector.shape_cast %350 : vector<1x64x128xf32> to vector<64x128xf32>
    %352 = vector.broadcast %349 : vector<1x128xf32> to vector<64x128xf32>
    %353 = arith.mulf %352, %351 : vector<64x128xf32>
    %354 = arith.addf %346, %353 : vector<64x128xf32>
    %355 = vector.extract_strided_slice %1 {offsets = [44, 0], sizes = [1, 128], strides = [1, 1]} : vector<64x128xf32> to vector<1x128xf32>
    %356 = vector.shape_cast %355 : vector<1x128xf32> to vector<128xf32>
    %357 = vector.shape_cast %356 : vector<128xf32> to vector<1x128xf32>
    %c44 = arith.constant 44 : index
    %c0_91 = arith.constant 0 : index
    %c0_92 = arith.constant 0 : index
    %358 = vector.load %arg4[%c44, %c0_91, %c0_92] : memref<64x64x128xf32, #tpu.memory_space<vmem>>, vector<1x64x128xf32>
    %359 = vector.shape_cast %358 : vector<1x64x128xf32> to vector<64x128xf32>
    %360 = vector.broadcast %357 : vector<1x128xf32> to vector<64x128xf32>
    %361 = arith.mulf %360, %359 : vector<64x128xf32>
    %362 = arith.addf %354, %361 : vector<64x128xf32>
    %363 = vector.extract_strided_slice %1 {offsets = [45, 0], sizes = [1, 128], strides = [1, 1]} : vector<64x128xf32> to vector<1x128xf32>
    %364 = vector.shape_cast %363 : vector<1x128xf32> to vector<128xf32>
    %365 = vector.shape_cast %364 : vector<128xf32> to vector<1x128xf32>
    %c45 = arith.constant 45 : index
    %c0_93 = arith.constant 0 : index
    %c0_94 = arith.constant 0 : index
    %366 = vector.load %arg4[%c45, %c0_93, %c0_94] : memref<64x64x128xf32, #tpu.memory_space<vmem>>, vector<1x64x128xf32>
    %367 = vector.shape_cast %366 : vector<1x64x128xf32> to vector<64x128xf32>
    %368 = vector.broadcast %365 : vector<1x128xf32> to vector<64x128xf32>
    %369 = arith.mulf %368, %367 : vector<64x128xf32>
    %370 = arith.addf %362, %369 : vector<64x128xf32>
    %371 = vector.extract_strided_slice %1 {offsets = [46, 0], sizes = [1, 128], strides = [1, 1]} : vector<64x128xf32> to vector<1x128xf32>
    %372 = vector.shape_cast %371 : vector<1x128xf32> to vector<128xf32>
    %373 = vector.shape_cast %372 : vector<128xf32> to vector<1x128xf32>
    %c46 = arith.constant 46 : index
    %c0_95 = arith.constant 0 : index
    %c0_96 = arith.constant 0 : index
    %374 = vector.load %arg4[%c46, %c0_95, %c0_96] : memref<64x64x128xf32, #tpu.memory_space<vmem>>, vector<1x64x128xf32>
    %375 = vector.shape_cast %374 : vector<1x64x128xf32> to vector<64x128xf32>
    %376 = vector.broadcast %373 : vector<1x128xf32> to vector<64x128xf32>
    %377 = arith.mulf %376, %375 : vector<64x128xf32>
    %378 = arith.addf %370, %377 : vector<64x128xf32>
    %379 = vector.extract_strided_slice %1 {offsets = [47, 0], sizes = [1, 128], strides = [1, 1]} : vector<64x128xf32> to vector<1x128xf32>
    %380 = vector.shape_cast %379 : vector<1x128xf32> to vector<128xf32>
    %381 = vector.shape_cast %380 : vector<128xf32> to vector<1x128xf32>
    %c47 = arith.constant 47 : index
    %c0_97 = arith.constant 0 : index
    %c0_98 = arith.constant 0 : index
    %382 = vector.load %arg4[%c47, %c0_97, %c0_98] : memref<64x64x128xf32, #tpu.memory_space<vmem>>, vector<1x64x128xf32>
    %383 = vector.shape_cast %382 : vector<1x64x128xf32> to vector<64x128xf32>
    %384 = vector.broadcast %381 : vector<1x128xf32> to vector<64x128xf32>
    %385 = arith.mulf %384, %383 : vector<64x128xf32>
    %386 = arith.addf %378, %385 : vector<64x128xf32>
    %387 = vector.extract_strided_slice %1 {offsets = [48, 0], sizes = [1, 128], strides = [1, 1]} : vector<64x128xf32> to vector<1x128xf32>
    %388 = vector.shape_cast %387 : vector<1x128xf32> to vector<128xf32>
    %389 = vector.shape_cast %388 : vector<128xf32> to vector<1x128xf32>
    %c48 = arith.constant 48 : index
    %c0_99 = arith.constant 0 : index
    %c0_100 = arith.constant 0 : index
    %390 = vector.load %arg4[%c48, %c0_99, %c0_100] : memref<64x64x128xf32, #tpu.memory_space<vmem>>, vector<1x64x128xf32>
    %391 = vector.shape_cast %390 : vector<1x64x128xf32> to vector<64x128xf32>
    %392 = vector.broadcast %389 : vector<1x128xf32> to vector<64x128xf32>
    %393 = arith.mulf %392, %391 : vector<64x128xf32>
    %394 = arith.addf %386, %393 : vector<64x128xf32>
    %395 = vector.extract_strided_slice %1 {offsets = [49, 0], sizes = [1, 128], strides = [1, 1]} : vector<64x128xf32> to vector<1x128xf32>
    %396 = vector.shape_cast %395 : vector<1x128xf32> to vector<128xf32>
    %397 = vector.shape_cast %396 : vector<128xf32> to vector<1x128xf32>
    %c49 = arith.constant 49 : index
    %c0_101 = arith.constant 0 : index
    %c0_102 = arith.constant 0 : index
    %398 = vector.load %arg4[%c49, %c0_101, %c0_102] : memref<64x64x128xf32, #tpu.memory_space<vmem>>, vector<1x64x128xf32>
    %399 = vector.shape_cast %398 : vector<1x64x128xf32> to vector<64x128xf32>
    %400 = vector.broadcast %397 : vector<1x128xf32> to vector<64x128xf32>
    %401 = arith.mulf %400, %399 : vector<64x128xf32>
    %402 = arith.addf %394, %401 : vector<64x128xf32>
    %403 = vector.extract_strided_slice %1 {offsets = [50, 0], sizes = [1, 128], strides = [1, 1]} : vector<64x128xf32> to vector<1x128xf32>
    %404 = vector.shape_cast %403 : vector<1x128xf32> to vector<128xf32>
    %405 = vector.shape_cast %404 : vector<128xf32> to vector<1x128xf32>
    %c50 = arith.constant 50 : index
    %c0_103 = arith.constant 0 : index
    %c0_104 = arith.constant 0 : index
    %406 = vector.load %arg4[%c50, %c0_103, %c0_104] : memref<64x64x128xf32, #tpu.memory_space<vmem>>, vector<1x64x128xf32>
    %407 = vector.shape_cast %406 : vector<1x64x128xf32> to vector<64x128xf32>
    %408 = vector.broadcast %405 : vector<1x128xf32> to vector<64x128xf32>
    %409 = arith.mulf %408, %407 : vector<64x128xf32>
    %410 = arith.addf %402, %409 : vector<64x128xf32>
    %411 = vector.extract_strided_slice %1 {offsets = [51, 0], sizes = [1, 128], strides = [1, 1]} : vector<64x128xf32> to vector<1x128xf32>
    %412 = vector.shape_cast %411 : vector<1x128xf32> to vector<128xf32>
    %413 = vector.shape_cast %412 : vector<128xf32> to vector<1x128xf32>
    %c51 = arith.constant 51 : index
    %c0_105 = arith.constant 0 : index
    %c0_106 = arith.constant 0 : index
    %414 = vector.load %arg4[%c51, %c0_105, %c0_106] : memref<64x64x128xf32, #tpu.memory_space<vmem>>, vector<1x64x128xf32>
    %415 = vector.shape_cast %414 : vector<1x64x128xf32> to vector<64x128xf32>
    %416 = vector.broadcast %413 : vector<1x128xf32> to vector<64x128xf32>
    %417 = arith.mulf %416, %415 : vector<64x128xf32>
    %418 = arith.addf %410, %417 : vector<64x128xf32>
    %419 = vector.extract_strided_slice %1 {offsets = [52, 0], sizes = [1, 128], strides = [1, 1]} : vector<64x128xf32> to vector<1x128xf32>
    %420 = vector.shape_cast %419 : vector<1x128xf32> to vector<128xf32>
    %421 = vector.shape_cast %420 : vector<128xf32> to vector<1x128xf32>
    %c52 = arith.constant 52 : index
    %c0_107 = arith.constant 0 : index
    %c0_108 = arith.constant 0 : index
    %422 = vector.load %arg4[%c52, %c0_107, %c0_108] : memref<64x64x128xf32, #tpu.memory_space<vmem>>, vector<1x64x128xf32>
    %423 = vector.shape_cast %422 : vector<1x64x128xf32> to vector<64x128xf32>
    %424 = vector.broadcast %421 : vector<1x128xf32> to vector<64x128xf32>
    %425 = arith.mulf %424, %423 : vector<64x128xf32>
    %426 = arith.addf %418, %425 : vector<64x128xf32>
    %427 = vector.extract_strided_slice %1 {offsets = [53, 0], sizes = [1, 128], strides = [1, 1]} : vector<64x128xf32> to vector<1x128xf32>
    %428 = vector.shape_cast %427 : vector<1x128xf32> to vector<128xf32>
    %429 = vector.shape_cast %428 : vector<128xf32> to vector<1x128xf32>
    %c53 = arith.constant 53 : index
    %c0_109 = arith.constant 0 : index
    %c0_110 = arith.constant 0 : index
    %430 = vector.load %arg4[%c53, %c0_109, %c0_110] : memref<64x64x128xf32, #tpu.memory_space<vmem>>, vector<1x64x128xf32>
    %431 = vector.shape_cast %430 : vector<1x64x128xf32> to vector<64x128xf32>
    %432 = vector.broadcast %429 : vector<1x128xf32> to vector<64x128xf32>
    %433 = arith.mulf %432, %431 : vector<64x128xf32>
    %434 = arith.addf %426, %433 : vector<64x128xf32>
    %435 = vector.extract_strided_slice %1 {offsets = [54, 0], sizes = [1, 128], strides = [1, 1]} : vector<64x128xf32> to vector<1x128xf32>
    %436 = vector.shape_cast %435 : vector<1x128xf32> to vector<128xf32>
    %437 = vector.shape_cast %436 : vector<128xf32> to vector<1x128xf32>
    %c54 = arith.constant 54 : index
    %c0_111 = arith.constant 0 : index
    %c0_112 = arith.constant 0 : index
    %438 = vector.load %arg4[%c54, %c0_111, %c0_112] : memref<64x64x128xf32, #tpu.memory_space<vmem>>, vector<1x64x128xf32>
    %439 = vector.shape_cast %438 : vector<1x64x128xf32> to vector<64x128xf32>
    %440 = vector.broadcast %437 : vector<1x128xf32> to vector<64x128xf32>
    %441 = arith.mulf %440, %439 : vector<64x128xf32>
    %442 = arith.addf %434, %441 : vector<64x128xf32>
    %443 = vector.extract_strided_slice %1 {offsets = [55, 0], sizes = [1, 128], strides = [1, 1]} : vector<64x128xf32> to vector<1x128xf32>
    %444 = vector.shape_cast %443 : vector<1x128xf32> to vector<128xf32>
    %445 = vector.shape_cast %444 : vector<128xf32> to vector<1x128xf32>
    %c55 = arith.constant 55 : index
    %c0_113 = arith.constant 0 : index
    %c0_114 = arith.constant 0 : index
    %446 = vector.load %arg4[%c55, %c0_113, %c0_114] : memref<64x64x128xf32, #tpu.memory_space<vmem>>, vector<1x64x128xf32>
    %447 = vector.shape_cast %446 : vector<1x64x128xf32> to vector<64x128xf32>
    %448 = vector.broadcast %445 : vector<1x128xf32> to vector<64x128xf32>
    %449 = arith.mulf %448, %447 : vector<64x128xf32>
    %450 = arith.addf %442, %449 : vector<64x128xf32>
    %451 = vector.extract_strided_slice %1 {offsets = [56, 0], sizes = [1, 128], strides = [1, 1]} : vector<64x128xf32> to vector<1x128xf32>
    %452 = vector.shape_cast %451 : vector<1x128xf32> to vector<128xf32>
    %453 = vector.shape_cast %452 : vector<128xf32> to vector<1x128xf32>
    %c56 = arith.constant 56 : index
    %c0_115 = arith.constant 0 : index
    %c0_116 = arith.constant 0 : index
    %454 = vector.load %arg4[%c56, %c0_115, %c0_116] : memref<64x64x128xf32, #tpu.memory_space<vmem>>, vector<1x64x128xf32>
    %455 = vector.shape_cast %454 : vector<1x64x128xf32> to vector<64x128xf32>
    %456 = vector.broadcast %453 : vector<1x128xf32> to vector<64x128xf32>
    %457 = arith.mulf %456, %455 : vector<64x128xf32>
    %458 = arith.addf %450, %457 : vector<64x128xf32>
    %459 = vector.extract_strided_slice %1 {offsets = [57, 0], sizes = [1, 128], strides = [1, 1]} : vector<64x128xf32> to vector<1x128xf32>
    %460 = vector.shape_cast %459 : vector<1x128xf32> to vector<128xf32>
    %461 = vector.shape_cast %460 : vector<128xf32> to vector<1x128xf32>
    %c57 = arith.constant 57 : index
    %c0_117 = arith.constant 0 : index
    %c0_118 = arith.constant 0 : index
    %462 = vector.load %arg4[%c57, %c0_117, %c0_118] : memref<64x64x128xf32, #tpu.memory_space<vmem>>, vector<1x64x128xf32>
    %463 = vector.shape_cast %462 : vector<1x64x128xf32> to vector<64x128xf32>
    %464 = vector.broadcast %461 : vector<1x128xf32> to vector<64x128xf32>
    %465 = arith.mulf %464, %463 : vector<64x128xf32>
    %466 = arith.addf %458, %465 : vector<64x128xf32>
    %467 = vector.extract_strided_slice %1 {offsets = [58, 0], sizes = [1, 128], strides = [1, 1]} : vector<64x128xf32> to vector<1x128xf32>
    %468 = vector.shape_cast %467 : vector<1x128xf32> to vector<128xf32>
    %469 = vector.shape_cast %468 : vector<128xf32> to vector<1x128xf32>
    %c58 = arith.constant 58 : index
    %c0_119 = arith.constant 0 : index
    %c0_120 = arith.constant 0 : index
    %470 = vector.load %arg4[%c58, %c0_119, %c0_120] : memref<64x64x128xf32, #tpu.memory_space<vmem>>, vector<1x64x128xf32>
    %471 = vector.shape_cast %470 : vector<1x64x128xf32> to vector<64x128xf32>
    %472 = vector.broadcast %469 : vector<1x128xf32> to vector<64x128xf32>
    %473 = arith.mulf %472, %471 : vector<64x128xf32>
    %474 = arith.addf %466, %473 : vector<64x128xf32>
    %475 = vector.extract_strided_slice %1 {offsets = [59, 0], sizes = [1, 128], strides = [1, 1]} : vector<64x128xf32> to vector<1x128xf32>
    %476 = vector.shape_cast %475 : vector<1x128xf32> to vector<128xf32>
    %477 = vector.shape_cast %476 : vector<128xf32> to vector<1x128xf32>
    %c59 = arith.constant 59 : index
    %c0_121 = arith.constant 0 : index
    %c0_122 = arith.constant 0 : index
    %478 = vector.load %arg4[%c59, %c0_121, %c0_122] : memref<64x64x128xf32, #tpu.memory_space<vmem>>, vector<1x64x128xf32>
    %479 = vector.shape_cast %478 : vector<1x64x128xf32> to vector<64x128xf32>
    %480 = vector.broadcast %477 : vector<1x128xf32> to vector<64x128xf32>
    %481 = arith.mulf %480, %479 : vector<64x128xf32>
    %482 = arith.addf %474, %481 : vector<64x128xf32>
    %483 = vector.extract_strided_slice %1 {offsets = [60, 0], sizes = [1, 128], strides = [1, 1]} : vector<64x128xf32> to vector<1x128xf32>
    %484 = vector.shape_cast %483 : vector<1x128xf32> to vector<128xf32>
    %485 = vector.shape_cast %484 : vector<128xf32> to vector<1x128xf32>
    %c60 = arith.constant 60 : index
    %c0_123 = arith.constant 0 : index
    %c0_124 = arith.constant 0 : index
    %486 = vector.load %arg4[%c60, %c0_123, %c0_124] : memref<64x64x128xf32, #tpu.memory_space<vmem>>, vector<1x64x128xf32>
    %487 = vector.shape_cast %486 : vector<1x64x128xf32> to vector<64x128xf32>
    %488 = vector.broadcast %485 : vector<1x128xf32> to vector<64x128xf32>
    %489 = arith.mulf %488, %487 : vector<64x128xf32>
    %490 = arith.addf %482, %489 : vector<64x128xf32>
    %491 = vector.extract_strided_slice %1 {offsets = [61, 0], sizes = [1, 128], strides = [1, 1]} : vector<64x128xf32> to vector<1x128xf32>
    %492 = vector.shape_cast %491 : vector<1x128xf32> to vector<128xf32>
    %493 = vector.shape_cast %492 : vector<128xf32> to vector<1x128xf32>
    %c61 = arith.constant 61 : index
    %c0_125 = arith.constant 0 : index
    %c0_126 = arith.constant 0 : index
    %494 = vector.load %arg4[%c61, %c0_125, %c0_126] : memref<64x64x128xf32, #tpu.memory_space<vmem>>, vector<1x64x128xf32>
    %495 = vector.shape_cast %494 : vector<1x64x128xf32> to vector<64x128xf32>
    %496 = vector.broadcast %493 : vector<1x128xf32> to vector<64x128xf32>
    %497 = arith.mulf %496, %495 : vector<64x128xf32>
    %498 = arith.addf %490, %497 : vector<64x128xf32>
    %499 = vector.extract_strided_slice %1 {offsets = [62, 0], sizes = [1, 128], strides = [1, 1]} : vector<64x128xf32> to vector<1x128xf32>
    %500 = vector.shape_cast %499 : vector<1x128xf32> to vector<128xf32>
    %501 = vector.shape_cast %500 : vector<128xf32> to vector<1x128xf32>
    %c62 = arith.constant 62 : index
    %c0_127 = arith.constant 0 : index
    %c0_128 = arith.constant 0 : index
    %502 = vector.load %arg4[%c62, %c0_127, %c0_128] : memref<64x64x128xf32, #tpu.memory_space<vmem>>, vector<1x64x128xf32>
    %503 = vector.shape_cast %502 : vector<1x64x128xf32> to vector<64x128xf32>
    %504 = vector.broadcast %501 : vector<1x128xf32> to vector<64x128xf32>
    %505 = arith.mulf %504, %503 : vector<64x128xf32>
    %506 = arith.addf %498, %505 : vector<64x128xf32>
    %507 = vector.extract_strided_slice %1 {offsets = [63, 0], sizes = [1, 128], strides = [1, 1]} : vector<64x128xf32> to vector<1x128xf32>
    %508 = vector.shape_cast %507 : vector<1x128xf32> to vector<128xf32>
    %509 = vector.shape_cast %508 : vector<128xf32> to vector<1x128xf32>
    %c63 = arith.constant 63 : index
    %c0_129 = arith.constant 0 : index
    %c0_130 = arith.constant 0 : index
    %510 = vector.load %arg4[%c63, %c0_129, %c0_130] : memref<64x64x128xf32, #tpu.memory_space<vmem>>, vector<1x64x128xf32>
    %511 = vector.shape_cast %510 : vector<1x64x128xf32> to vector<64x128xf32>
    %512 = vector.broadcast %509 : vector<1x128xf32> to vector<64x128xf32>
    %513 = arith.mulf %512, %511 : vector<64x128xf32>
    %514 = arith.addf %506, %513 : vector<64x128xf32>
    %c0_131 = arith.constant 0 : index
    %c0_132 = arith.constant 0 : index
    %c0_133 = arith.constant 0 : index
    %515 = vector.load %arg5[%c0_131, %c0_132, %c0_133] : memref<1x64x128xf32, #tpu.memory_space<vmem>>, vector<1x64x128xf32>
    %516 = vector.shape_cast %515 : vector<1x64x128xf32> to vector<64x128xf32>
    %517 = vector.shape_cast %514 : vector<64x128xf32> to vector<1x64x128xf32>
    tpu.vector_store %arg5[%c0_131, %c0_132, %c0_133], %517 {strides = array<i32>} : memref<1x64x128xf32, #tpu.memory_space<vmem>>, vector<1x64x128xf32>,
    return
  }
  func.func @transform_0(%arg0: i32, %arg1: i32, %arg2: i32) -> (i32, i32, i32) {
    %c0_i32 = arith.constant 0 : i32
    %c0_i32_0 = arith.constant 0 : i32
    return %arg2, %c0_i32, %arg1 : i32, i32, i32
  }
  func.func @transform_1(%arg0: i32, %arg1: i32, %arg2: i32) -> (i32, i32, i32) {
    %c0_i32 = arith.constant 0 : i32
    %c0_i32_0 = arith.constant 0 : i32
    return %c0_i32, %arg0, %arg1 : i32, i32, i32
  }
  func.func @transform_2(%arg0: i32, %arg1: i32, %arg2: i32) -> (i32, i32, i32) {
    %c0_i32 = arith.constant 0 : i32
    return %arg2, %arg0, %arg1 : i32, i32, i32
  }
}

module attributes {stable_mosaic.version = 11 : i64} {
  func.func @_cell_kernel(%arg0: i32, %arg1: i32, %arg2: memref<1x32x256xf32, #tpu.memory_space<vmem>>, %arg3: memref<1x32x256xf32, #tpu.memory_space<vmem>>, %arg4: memref<1x32x256xf32, #tpu.memory_space<vmem>>, %arg5: memref<32x32xbf16, #tpu.memory_space<vmem>>, %arg6: memref<32x1xf32, #tpu.memory_space<vmem>>, %arg7: memref<32x32xbf16, #tpu.memory_space<vmem>>, %arg8: memref<32x1xf32, #tpu.memory_space<vmem>>, %arg9: memref<1x32x256xf32, #tpu.memory_space<vmem>>, %arg10: memref<1x32x256xf32, #tpu.memory_space<vmem>>) attributes {dimension_semantics = [#tpu.dimension_semantics<parallel>, #tpu.dimension_semantics<parallel>], iteration_bounds = array<i64: 2, 1>, scalar_prefetch = 0 : i64, scratch_operands = 0 : i64, tpu.core_type = #tpu.core_type<tc>, window_params = [{transform_indices = @transform_0, window_bounds = array<i64: 1, 32, 256>}, {transform_indices = @transform_1, window_bounds = array<i64: 1, 32, 256>}, {transform_indices = @transform_2, window_bounds = array<i64: 1, 32, 256>}, {pipeline_mode = #tpu.pipeline_mode<synchronous>, transform_indices = @transform_3, window_bounds = array<i64: 32, 32>}, {pipeline_mode = #tpu.pipeline_mode<synchronous>, transform_indices = @transform_4, window_bounds = array<i64: 32, 1>}, {pipeline_mode = #tpu.pipeline_mode<synchronous>, transform_indices = @transform_5, window_bounds = array<i64: 32, 32>}, {pipeline_mode = #tpu.pipeline_mode<synchronous>, transform_indices = @transform_6, window_bounds = array<i64: 32, 1>}, {transform_indices = @transform_7, window_bounds = array<i64: 1, 32, 256>}, {transform_indices = @transform_8, window_bounds = array<i64: 1, 32, 256>}]} {
    %c0 = arith.constant 0 : index
    %c0_0 = arith.constant 0 : index
    %c0_1 = arith.constant 0 : index
    %0 = vector.load %arg3[%c0, %c0_0, %c0_1] : memref<1x32x256xf32, #tpu.memory_space<vmem>>, vector<1x32x256xf32>
    %1 = vector.shape_cast %0 : vector<1x32x256xf32> to vector<32x256xf32>
    %2 = arith.truncf %1 : vector<32x256xf32> to vector<32x256xbf16>
    %c0_2 = arith.constant 0 : index
    %c0_3 = arith.constant 0 : index
    %c0_4 = arith.constant 0 : index
    %3 = vector.load %arg2[%c0_2, %c0_3, %c0_4] : memref<1x32x256xf32, #tpu.memory_space<vmem>>, vector<1x32x256xf32>
    %4 = vector.shape_cast %3 : vector<1x32x256xf32> to vector<32x256xf32>
    %5 = arith.truncf %4 : vector<32x256xf32> to vector<32x256xbf16>
    %c0_5 = arith.constant 0 : index
    %c0_6 = arith.constant 0 : index
    %6 = vector.load %arg7[%c0_5, %c0_6] : memref<32x32xbf16, #tpu.memory_space<vmem>>, vector<32x32xbf16>
    %cst = arith.constant dense<0.000000e+00> : vector<32x256xf32>
    %7 = tpu.matmul %6, %2, %cst {dimension_numbers = #tpu.dot_dimension_numbers<[1], [0], [0], [1], [0, 0, 1, 1], [], []>} : vector<32x32xbf16>, vector<32x256xbf16>, vector<32x256xf32> -> vector<32x256xf32>
    %c0_7 = arith.constant 0 : index
    %c0_8 = arith.constant 0 : index
    %8 = vector.load %arg8[%c0_7, %c0_8] : memref<32x1xf32, #tpu.memory_space<vmem>>, vector<32x1xf32>
    %9 = vector.broadcast %8 : vector<32x1xf32> to vector<32x256xf32>
    %10 = arith.addf %7, %9 : vector<32x256xf32>
    %cst_9 = arith.constant 5.000000e-01 : f32
    %11 = vector.broadcast %cst_9 : f32 to vector<32x256xf32>
    %12 = arith.mulf %11, %10 : vector<32x256xf32>
    %cst_10 = arith.constant 4.471500e-02 : f32
    %13 = vector.broadcast %cst_10 : f32 to vector<32x256xf32>
    %14 = arith.mulf %13, %10 : vector<32x256xf32>
    %15 = arith.mulf %14, %10 : vector<32x256xf32>
    %16 = arith.mulf %15, %10 : vector<32x256xf32>
    %17 = arith.addf %10, %16 : vector<32x256xf32>
    %cst_11 = arith.constant 0.797884583 : f32
    %18 = vector.broadcast %cst_11 : f32 to vector<32x256xf32>
    %19 = arith.mulf %18, %17 : vector<32x256xf32>
    %20 = math.tanh %19 : vector<32x256xf32>
    %cst_12 = arith.constant 1.000000e+00 : f32
    %21 = vector.broadcast %cst_12 : f32 to vector<32x256xf32>
    %22 = arith.addf %21, %20 : vector<32x256xf32>
    %23 = arith.mulf %12, %22 : vector<32x256xf32>
    %c0_13 = arith.constant 0 : index
    %c0_14 = arith.constant 0 : index
    %24 = vector.load %arg5[%c0_13, %c0_14] : memref<32x32xbf16, #tpu.memory_space<vmem>>, vector<32x32xbf16>
    %cst_15 = arith.constant dense<0.000000e+00> : vector<32x256xf32>
    %25 = tpu.matmul %24, %5, %cst_15 {dimension_numbers = #tpu.dot_dimension_numbers<[1], [0], [0], [1], [0, 0, 1, 1], [], []>} : vector<32x32xbf16>, vector<32x256xbf16>, vector<32x256xf32> -> vector<32x256xf32>
    %c0_16 = arith.constant 0 : index
    %c0_17 = arith.constant 0 : index
    %26 = vector.load %arg6[%c0_16, %c0_17] : memref<32x1xf32, #tpu.memory_space<vmem>>, vector<32x1xf32>
    %27 = vector.broadcast %26 : vector<32x1xf32> to vector<32x256xf32>
    %28 = arith.addf %25, %27 : vector<32x256xf32>
    %c0_18 = arith.constant 0 : index
    %c0_19 = arith.constant 0 : index
    %c0_20 = arith.constant 0 : index
    %29 = vector.load %arg4[%c0_18, %c0_19, %c0_20] : memref<1x32x256xf32, #tpu.memory_space<vmem>>, vector<1x32x256xf32>
    %30 = vector.shape_cast %29 : vector<1x32x256xf32> to vector<32x256xf32>
    %31 = arith.addf %30, %28 : vector<32x256xf32>
    %cst_21 = arith.constant 5.000000e-01 : f32
    %32 = vector.broadcast %cst_21 : f32 to vector<32x256xf32>
    %33 = arith.mulf %32, %31 : vector<32x256xf32>
    %cst_22 = arith.constant 4.471500e-02 : f32
    %34 = vector.broadcast %cst_22 : f32 to vector<32x256xf32>
    %35 = arith.mulf %34, %31 : vector<32x256xf32>
    %36 = arith.mulf %35, %31 : vector<32x256xf32>
    %37 = arith.mulf %36, %31 : vector<32x256xf32>
    %38 = arith.addf %31, %37 : vector<32x256xf32>
    %cst_23 = arith.constant 0.797884583 : f32
    %39 = vector.broadcast %cst_23 : f32 to vector<32x256xf32>
    %40 = arith.mulf %39, %38 : vector<32x256xf32>
    %41 = math.tanh %40 : vector<32x256xf32>
    %cst_24 = arith.constant 1.000000e+00 : f32
    %42 = vector.broadcast %cst_24 : f32 to vector<32x256xf32>
    %43 = arith.addf %42, %41 : vector<32x256xf32>
    %44 = arith.mulf %33, %43 : vector<32x256xf32>
    %45 = arith.addf %23, %44 : vector<32x256xf32>
    %46 = math.tanh %45 : vector<32x256xf32>
    %c0_25 = arith.constant 0 : index
    %c0_26 = arith.constant 0 : index
    %c0_27 = arith.constant 0 : index
    %47 = vector.load %arg9[%c0_25, %c0_26, %c0_27] : memref<1x32x256xf32, #tpu.memory_space<vmem>>, vector<1x32x256xf32>
    %48 = vector.shape_cast %47 : vector<1x32x256xf32> to vector<32x256xf32>
    %49 = vector.shape_cast %46 : vector<32x256xf32> to vector<1x32x256xf32>
    tpu.vector_store %arg9[%c0_25, %c0_26, %c0_27], %49 {strides = array<i32>} : memref<1x32x256xf32, #tpu.memory_space<vmem>>, vector<1x32x256xf32>,
    %c0_28 = arith.constant 0 : index
    %c0_29 = arith.constant 0 : index
    %c0_30 = arith.constant 0 : index
    %50 = vector.load %arg10[%c0_28, %c0_29, %c0_30] : memref<1x32x256xf32, #tpu.memory_space<vmem>>, vector<1x32x256xf32>
    %51 = vector.shape_cast %50 : vector<1x32x256xf32> to vector<32x256xf32>
    %52 = vector.shape_cast %45 : vector<32x256xf32> to vector<1x32x256xf32>
    tpu.vector_store %arg10[%c0_28, %c0_29, %c0_30], %52 {strides = array<i32>} : memref<1x32x256xf32, #tpu.memory_space<vmem>>, vector<1x32x256xf32>,
    return
  }
  func.func @transform_0(%arg0: i32, %arg1: i32) -> (i32, i32, i32) {
    %c0_i32 = arith.constant 0 : i32
    %c0_i32_0 = arith.constant 0 : i32
    return %arg0, %c0_i32, %arg1 : i32, i32, i32
  }
  func.func @transform_1(%arg0: i32, %arg1: i32) -> (i32, i32, i32) {
    %c0_i32 = arith.constant 0 : i32
    %c0_i32_0 = arith.constant 0 : i32
    return %arg0, %c0_i32, %arg1 : i32, i32, i32
  }
  func.func @transform_2(%arg0: i32, %arg1: i32) -> (i32, i32, i32) {
    %c0_i32 = arith.constant 0 : i32
    %c0_i32_0 = arith.constant 0 : i32
    return %arg0, %c0_i32, %arg1 : i32, i32, i32
  }
  func.func @transform_3(%arg0: i32, %arg1: i32) -> (i32, i32) {
    %c0_i32 = arith.constant 0 : i32
    %c0_i32_0 = arith.constant 0 : i32
    %c0_i32_1 = arith.constant 0 : i32
    return %c0_i32, %c0_i32_0 : i32, i32
  }
  func.func @transform_4(%arg0: i32, %arg1: i32) -> (i32, i32) {
    %c0_i32 = arith.constant 0 : i32
    %c0_i32_0 = arith.constant 0 : i32
    %c0_i32_1 = arith.constant 0 : i32
    return %c0_i32, %c0_i32_0 : i32, i32
  }
  func.func @transform_5(%arg0: i32, %arg1: i32) -> (i32, i32) {
    %c0_i32 = arith.constant 0 : i32
    %c0_i32_0 = arith.constant 0 : i32
    %c0_i32_1 = arith.constant 0 : i32
    return %c0_i32, %c0_i32_0 : i32, i32
  }
  func.func @transform_6(%arg0: i32, %arg1: i32) -> (i32, i32) {
    %c0_i32 = arith.constant 0 : i32
    %c0_i32_0 = arith.constant 0 : i32
    %c0_i32_1 = arith.constant 0 : i32
    return %c0_i32, %c0_i32_0 : i32, i32
  }
  func.func @transform_7(%arg0: i32, %arg1: i32) -> (i32, i32, i32) {
    %c0_i32 = arith.constant 0 : i32
    %c0_i32_0 = arith.constant 0 : i32
    return %arg0, %c0_i32, %arg1 : i32, i32, i32
  }
  func.func @transform_8(%arg0: i32, %arg1: i32) -> (i32, i32, i32) {
    %c0_i32 = arith.constant 0 : i32
    %c0_i32_0 = arith.constant 0 : i32
    return %arg0, %c0_i32, %arg1 : i32, i32, i32
  }
}

</mosaic_0001>

<llo_original>
// kernel: reverse.1
$region0: #{reverse.1}
  #allocation0 [shape = 's32[1]{0}', space=sflag, size = 0x4, scoped, tag = 'scoped memory for reverse.1']
  %s0 = inlined_call_operand.vmem [shape: f32[2,32,16,7], index: 0, kind: input, shape index: {}]
  %s1 = inlined_call_operand.vmem [shape: f32[2,32,16,7], index: 1, kind: output, shape index: {}]
  %s2 = scalar_lea.vmem %s0, 96
  %v3 = vld [vmem:[%s2] sm:$0xff]
  %4 = vst [vmem:[%s1] sm:$0xff] %v3
  %s5 = scalar_lea.vmem %s0, 208
  %v6 = vld [vmem:[%s5] sm:$0xff]
  %s7 = scalar_lea.vmem %s1, 112
  %8 = vst [vmem:[%s7] sm:$0xff] %v6
  %s9 = scalar_lea.vmem %s0, 80
  %v10 = vld [vmem:[%s9] sm:$0xff]
  %s11 = scalar_lea.vmem %s1, 16
  %12 = vst [vmem:[%s11] sm:$0xff] %v10
  %s13 = scalar_lea.vmem %s0, 192
  %v14 = vld [vmem:[%s13] sm:$0xff]
  %s15 = scalar_lea.vmem %s1, 128
  %16 = vst [vmem:[%s15] sm:$0xff] %v14
  %s17 = scalar_lea.vmem %s0, 64
  %v18 = vld [vmem:[%s17] sm:$0xff]
  %s19 = scalar_lea.vmem %s1, 32
  %20 = vst [vmem:[%s19] sm:$0xff] %v18
  %s21 = scalar_lea.vmem %s0, 176
  %v22 = vld [vmem:[%s21] sm:$0xff]
  %s23 = scalar_lea.vmem %s1, 144
  %24 = vst [vmem:[%s23] sm:$0xff] %v22
  %s25 = scalar_lea.vmem %s0, 48
  %v26 = vld [vmem:[%s25] sm:$0xff]
  %s27 = scalar_lea.vmem %s1, 48
  %28 = vst [vmem:[%s27] sm:$0xff] %v26
  %s29 = scalar_lea.vmem %s0, 160
  %v30 = vld [vmem:[%s29] sm:$0xff]
  %s31 = scalar_lea.vmem %s1, 160
  %32 = vst [vmem:[%s31] sm:$0xff] %v30
  %s33 = scalar_lea.vmem %s0, 32
  %v34 = vld [vmem:[%s33] sm:$0xff]
  %s35 = scalar_lea.vmem %s1, 64
  %36 = vst [vmem:[%s35] sm:$0xff] %v34
  %s37 = scalar_lea.vmem %s0, 144
  %v38 = vld [vmem:[%s37] sm:$0xff]
  %s39 = scalar_lea.vmem %s1, 176
  %40 = vst [vmem:[%s39] sm:$0xff] %v38
  %s41 = scalar_lea.vmem %s0, 16
  %v42 = vld [vmem:[%s41] sm:$0xff]
  %s43 = scalar_lea.vmem %s1, 80
  %44 = vst [vmem:[%s43] sm:$0xff] %v42
  %s45 = scalar_lea.vmem %s0, 128
  %v46 = vld [vmem:[%s45] sm:$0xff]
  %s47 = scalar_lea.vmem %s1, 192
  %48 = vst [vmem:[%s47] sm:$0xff] %v46
  %v49 = vld [vmem:[%s0] sm:$0xff]
  %s50 = scalar_lea.vmem %s1, 96
  %51 = vst [vmem:[%s50] sm:$0xff] %v49
  %s52 = scalar_lea.vmem %s0, 112
  %v53 = vld [vmem:[%s52] sm:$0xff]
  %s54 = scalar_lea.vmem %s1, 208
  %55 = vst [vmem:[%s54] sm:$0xff] %v53
  %s56 = scalar_lea.vmem %s0, 104
  %v57 = vld [vmem:[%s56] sm:$0xff]
  %s58 = scalar_lea.vmem %s1, 8
  %59 = vst [vmem:[%s58] sm:$0xff] %v57
  %s60 = scalar_lea.vmem %s0, 216
  %v61 = vld [vmem:[%s60] sm:$0xff]
  %s62 = scalar_lea.vmem %s1, 120
  %63 = vst [vmem:[%s62] sm:$0xff] %v61
  %s64 = scalar_lea.vmem %s0, 88
  %v65 = vld [vmem:[%s64] sm:$0xff]
  %s66 = scalar_lea.vmem %s1, 24
  %67 = vst [vmem:[%s66] sm:$0xff] %v65
  %s68 = scalar_lea.vmem %s0, 200
  %v69 = vld [vmem:[%s68] sm:$0xff]
  %s70 = scalar_lea.vmem %s1, 136
  %71 = vst [vmem:[%s70] sm:$0xff] %v69
  %s72 = scalar_lea.vmem %s0, 72
  %v73 = vld [vmem:[%s72] sm:$0xff]
  %s74 = scalar_lea.vmem %s1, 40
  %75 = vst [vmem:[%s74] sm:$0xff] %v73
  %s76 = scalar_lea.vmem %s0, 184
  %v77 = vld [vmem:[%s76] sm:$0xff]
  %s78 = scalar_lea.vmem %s1, 152
  %79 = vst [vmem:[%s78] sm:$0xff] %v77
  %s80 = scalar_lea.vmem %s0, 56
  %v81 = vld [vmem:[%s80] sm:$0xff]
  %s82 = scalar_lea.vmem %s1, 56
  %83 = vst [vmem:[%s82] sm:$0xff] %v81
  %s84 = scalar_lea.vmem %s0, 168
  %v85 = vld [vmem:[%s84] sm:$0xff]
  %s86 = scalar_lea.vmem %s1, 168
  %87 = vst [vmem:[%s86] sm:$0xff] %v85
  %s88 = scalar_lea.vmem %s0, 40
  %v89 = vld [vmem:[%s88] sm:$0xff]
  %s90 = scalar_lea.vmem %s1, 72
  %91 = vst [vmem:[%s90] sm:$0xff] %v89
  %s92 = scalar_lea.vmem %s0, 152
  %v93 = vld [vmem:[%s92] sm:$0xff]
  %s94 = scalar_lea.vmem %s1, 184
  %95 = vst [vmem:[%s94] sm:$0xff] %v93
  %s96 = scalar_lea.vmem %s0, 24
  %v97 = vld [vmem:[%s96] sm:$0xff]
  %s98 = scalar_lea.vmem %s1, 88
  %99 = vst [vmem:[%s98] sm:$0xff] %v97
  %s100 = scalar_lea.vmem %s0, 136
  %v101 = vld [vmem:[%s100] sm:$0xff]
  %s102 = scalar_lea.vmem %s1, 200
  %103 = vst [vmem:[%s102] sm:$0xff] %v101
  %s104 = scalar_lea.vmem %s0, 8
  %v105 = vld [vmem:[%s104] sm:$0xff]
  %s106 = scalar_lea.vmem %s1, 104
  %107 = vst [vmem:[%s106] sm:$0xff] %v105
  %s108 = scalar_lea.vmem %s0, 120
  %v109 = vld [vmem:[%s108] sm:$0xff]
  %s110 = scalar_lea.vmem %s1, 216
  %111 = vst [vmem:[%s110] sm:$0xff] %v109

// kernel: frnn_cell_forward.2
$region0: #{frnn_cell_forward.2}
  #allocation0 [shape = 'u32[]', space=smem, size = 0x4, offset = 0x4, fixed_abs, tag = 'smem constant byte address 0x4 - core index']
  #allocation1 [shape = 'u32[72,128]{1,0:T(1,128)}', space=vmem, size = 0x9000, scoped, tag = 'internal scratch']
  %s0 = inlined_call_operand.vmem [shape: f32[2,64,128], index: 0, kind: input, shape index: {}]
  %s1 = inlined_call_operand.vmem [shape: f32[64,64,128], index: 1, kind: input, shape index: {}]
  %s2 = inlined_call_operand.vmem [shape: f32[2,64,128], index: 2, kind: output, shape index: {}]
  %s3 = sld [smem:[#allocation0]]
  $region41: #{frnn_cell_forward.2} parent=0
    _
  %s5 = ssub.s32 1, %s3
  %s6 = scalar_select 0, %s5, %s3
  loop: start=0, step=1, limit=4
  $region2: #{frnn_cell_forward.2} parent=0 // loop_pre_header
    _
  $region3: #{frnn_cell_forward.2} parent=0 // loop_header
    %s8 = sphi 0, %s12
    %p9 = scmp.ge.s32.totalorder %s8, 4
    %s15 = sphi 0, %s34
    %s16 = sphi 0, %s30
    %s17 = sphi 0, %s26
    %s18 = sphi 0, %s15
    %s19 = sphi 0, %s16
    %s20 = sphi 0, %s17
    %s21 = sphi 0, %s18
    %s22 = sphi 0, %s19
    %s23 = sphi 0, %s20
    %s39 = sphi 0, %s41
    %s42 = sphi 0, %s39
    %s43 = sphi 0, %s42
    %s59 = sphi 0, %s43
    %s67 = sphi 0, %s69
    %s70 = sphi 0, %s67
    %s71 = sphi 0, %s70
    %s87 = sphi 0, %s71
    %s97 = sphi 0, %s99
    %s100 = sphi 0, %s97
    %s101 = sphi 0, %s100
    %s117 = sphi 0, %s101
  $region4: #{frnn_cell_forward.2} parent=0 // loop_header_branch
    %11 = sbr.rel (%p9) target = $region8
  $region5: #{frnn_cell_forward.2} parent=0 // loop_body
    %s13 = ssub.s32 %s8, 1
    %s14 = ssub.s32 %s8, 2
    %s24 = sadd.s32 1, %s17
    %p25 = scmp.ge.s32.totalorder %s24, 2
    %s26 = scalar_select %p25, 0, %s24
    %s27 = sadd.s32 1, %s16
    %s28 = scalar_select %p25, %s27, %s16
    %p29 = scmp.ge.s32.totalorder %s28, 1
    %s30 = scalar_select %p29, 0, %s28
    %s31 = sadd.s32 1, %s15
    %s32 = scalar_select %p29, %s31, %s15
    %p33 = scmp.ge.s32.totalorder %s32, 1
    %s34 = scalar_select %p33, 0, %s32
    %s35 = ssub.s32 %s17, %s26
    %s36 = ssub.s32 %s16, %s30
    %s37 = sor.u32 %s35, %s36
    %p38 = scmp.eq.s32.totalorder %s37, 0
    %s40 = sadd.s32 %s39, 1
    %s41 = scalar_select %p38, %s39, %s40
    %p44 = pneg %p38
    %p45 = scmp.eq.s32.totalorder %s8, 1
    %p46 = por %p44, %p45
    %p47 = scmp.ne.s32.totalorder %s39, %s42
    %p48 = scmp.eq.s32.totalorder %s8, 0
    %p49 = por %p47, %p48
    %p50 = scmp.ne.s32.totalorder %s39, %s42
    %p51 = scmp.eq.s32.totalorder %s13, 1
    %p52 = por %p50, %p51
    %p53 = scmp.ne.s32.totalorder %s42, %s43
    %p54 = scmp.eq.s32.totalorder %s13, 0
    %p55 = por %p53, %p54
    %p56 = scmp.ne.s32.totalorder %s42, %s43
    %p57 = scmp.eq.s32.totalorder %s14, 1
    %p58 = por %p56, %p57
    %p60 = scmp.ne.s32.totalorder %s43, %s59
    %p61 = scmp.eq.s32.totalorder %s14, 0
    %p62 = por %p60, %p61
    %s63 = ssub.s32 %s15, %s34
    %s64 = ssub.s32 %s16, %s30
    %s65 = sor.u32 %s63, %s64
    %p66 = scmp.eq.s32.totalorder %s65, 0
    %s68 = sadd.s32 %s67, 1
    %s69 = scalar_select %p66, %s67, %s68
    %p72 = pneg %p66
    %p73 = scmp.eq.s32.totalorder %s8, 1
    %p74 = por %p72, %p73
    %p75 = scmp.ne.s32.totalorder %s67, %s70
    %p76 = scmp.eq.s32.totalorder %s8, 0
    %p77 = por %p75, %p76
    %p78 = scmp.ne.s32.totalorder %s67, %s70
    %p79 = scmp.eq.s32.totalorder %s13, 1
    %p80 = por %p78, %p79
    %p81 = scmp.ne.s32.totalorder %s70, %s71
    %p82 = scmp.eq.s32.totalorder %s13, 0
    %p83 = por %p81, %p82
    %p84 = scmp.ne.s32.totalorder %s70, %s71
    %p85 = scmp.eq.s32.totalorder %s14, 1
    %p86 = por %p84, %p85
    %p88 = scmp.ne.s32.totalorder %s71, %s87
    %p89 = scmp.eq.s32.totalorder %s14, 0
    %p90 = por %p88, %p89
    %s91 = ssub.s32 %s17, %s26
    %s92 = ssub.s32 %s15, %s34
    %s93 = sor.u32 %s91, %s92
    %s94 = ssub.s32 %s16, %s30
    %s95 = sor.u32 %s93, %s94
    %p96 = scmp.eq.s32.totalorder %s95, 0
    %s98 = sadd.s32 %s97, 1
    %s99 = scalar_select %p96, %s97, %s98
    %p102 = pneg %p96
    %p103 = scmp.eq.s32.totalorder %s8, 1
    %p104 = por %p102, %p103
    %p105 = scmp.ne.s32.totalorder %s97, %s100
    %p106 = scmp.eq.s32.totalorder %s8, 0
    %p107 = por %p105, %p106
    %p108 = scmp.ne.s32.totalorder %s97, %s100
    %p109 = scmp.eq.s32.totalorder %s13, 1
    %p110 = por %p108, %p109
    %p111 = scmp.ne.s32.totalorder %s100, %s101
    %p112 = scmp.eq.s32.totalorder %s13, 0
    %p113 = por %p111, %p112
    %p114 = scmp.ne.s32.totalorder %s100, %s101
    %p115 = scmp.eq.s32.totalorder %s14, 1
    %p116 = por %p114, %p115
    %p118 = scmp.ne.s32.totalorder %s101, %s117
    %p119 = scmp.eq.s32.totalorder %s14, 0
    %p120 = por %p118, %p119
    %p121 = scmp.le.s32.totalorder 1, %s8
    %p122 = scmp.lt.s32.totalorder %s8, 3
    %p123 = pnand %p121, %p122
    %p124 = pneg %p123
    // Predicated region
    $region9: #{frnn_cell_forward.2} parent=5 // pred_check
      _
    $region10: #{frnn_cell_forward.2} parent=5 // pred_check_branch
      %126 = sbr.rel (%p123) target = $region12
    $region11: #{frnn_cell_forward.2} parent=5 // pred_region
      %s127 = ssub.s32 %s8, 1
      // Predicated region
      $region13: #{frnn_cell_forward.2} parent=11 // pred_check
        %p128 = pneg %p83
      $region14: #{frnn_cell_forward.2} parent=11 // pred_check_branch
        %130 = sbr.rel (%p128) target = $region16
      $region15: #{frnn_cell_forward.2} parent=11 // pred_region
        %s131 = smul.u32 8, %s18
        %p132 = scmp.lt.s32.totalorder %s131, 7
        %s133 = scalar_select %p132, %s131, 7
        %p134 = scmp.lt.s32.totalorder %s19, 0
        %s135 = scalar_select %p134, %s19, 0
        %s136 = sadd.s32 %s135, %s133
        %s137 = smul.addr %s136, 8
        %s138 = scalar_lea.vmem %s1, %s137
        %s139 = smul.u32 8, %s18
      $region16: #{frnn_cell_forward.2} parent=11 // pred_fallthru
        _
    $region12: #{frnn_cell_forward.2} parent=5 // pred_fallthru
      _
    %p140 = scmp.lt.s32.totalorder %s8, 2
    // Predicated region
    $region17: #{frnn_cell_forward.2} parent=5 // pred_check
      %p141 = pneg %p140
    $region18: #{frnn_cell_forward.2} parent=5 // pred_check_branch
      %143 = sbr.rel (%p141) target = $region20
    $region19: #{frnn_cell_forward.2} parent=5 // pred_region
      // Predicated region
      $region21: #{frnn_cell_forward.2} parent=19 // pred_check
        %p144 = pneg %p49
      $region22: #{frnn_cell_forward.2} parent=19 // pred_check_branch
        %146 = sbr.rel (%p144) target = $region24
      $region23: #{frnn_cell_forward.2} parent=19 // pred_region
        %p147 = scmp.lt.s32.totalorder %s17, 1
        %s148 = scalar_select %p147, %s17, 1
        %p149 = scmp.lt.s32.totalorder %s16, 0
        %s150 = scalar_select %p149, %s16, 0
        %s151 = smul.addr %s148, 8
        %s152 = sadd.s32 %s150, %s151
        %s153 = smul.addr %s152, 8
        %s154 = scalar_lea.vmem %s0, %s153
      $region24: #{frnn_cell_forward.2} parent=19 // pred_fallthru
        _
    $region20: #{frnn_cell_forward.2} parent=5 // pred_fallthru
      _
    %p155 = scmp.le.s32.totalorder 1, %s8
    %p156 = scmp.lt.s32.totalorder %s8, 3
    %p157 = pnand %p155, %p156
    %p158 = pneg %p157
    // Predicated region
    $region25: #{frnn_cell_forward.2} parent=5 // pred_check
      _
    $region26: #{frnn_cell_forward.2} parent=5 // pred_check_branch
      %160 = sbr.rel (%p157) target = $region28
    $region27: #{frnn_cell_forward.2} parent=5 // pred_region
      %s161 = ssub.s32 %s8, 1
      %p162 = scmp.lt.s32.totalorder %s20, 1
      %s163 = scalar_select %p162, %s20, 1
      %p164 = scmp.lt.s32.totalorder %s19, 0
      %s165 = scalar_select %p164, %s19, 0
      %s166 = smul.addr %s163, 8
      %s167 = sadd.s32 %s165, %s166
      %s168 = smul.addr %s167, 8
      %s169 = scalar_lea.vmem %s0, %s168
      %p170 = pneg %p55
      %p171 = pneg %p52
      %s172 = smul.u32 8, %s18
      %p173 = scmp.lt.s32.totalorder %s172, 7
      %s174 = scalar_select %p173, %s172, 7
      %p175 = scmp.lt.s32.totalorder %s19, 0
      %s176 = scalar_select %p175, %s19, 0
      %s177 = sadd.s32 %s176, %s174
      %s178 = smul.addr %s177, 8
      %s179 = scalar_lea.vmem %s1, %s178
      %p180 = pneg %p83
      %p181 = pneg %p80
      %p182 = pneg %p113
      %p183 = pneg %p110
      %s184 = smul.u32 8, %s18
      %p185 = scmp.lt.s32.totalorder %s20, 1
      %s186 = scalar_select %p185, %s20, 1
      %p187 = scmp.lt.s32.totalorder %s184, 7
      %s188 = scalar_select %p187, %s184, 7
      %p189 = scmp.lt.s32.totalorder %s19, 0
      %s190 = scalar_select %p189, %s19, 0
      %s191 = sadd.s32 %s190, %s188
      %s192 = smul.addr %s186, 8
      %s193 = sadd.s32 %s191, %s192
      %s194 = smul.addr %s193, 8
      %s195 = scalar_lea.vmem %s2, %s194
      %p196 = scmp.lt.s32.totalorder %s20, 1
      %s197 = scalar_select %p196, %s20, 1
      %p198 = scmp.lt.s32.totalorder %s19, 0
      %s199 = scalar_select %p198, %s19, 0
      %s200 = smul.addr %s197, 8
      %s201 = sadd.s32 %s199, %s200
      %s202 = smul.addr %s201, 8
      %s203 = scalar_lea.vmem %s0, %s202
      %s204 = smul.u32 8, %s18
      %p205 = scmp.lt.s32.totalorder %s204, 7
      %s206 = scalar_select %p205, %s204, 7
      %p207 = scmp.lt.s32.totalorder %s19, 0
      %s208 = scalar_select %p207, %s19, 0
      %s209 = sadd.s32 %s208, %s206
      %s210 = smul.addr %s209, 8
      %s211 = scalar_lea.vmem %s1, %s210
      %s212 = smul.u32 8, %s18
      %s213 = smul.u32 8, %s18
      %p214 = scmp.lt.s32.totalorder %s20, 1
      %s215 = scalar_select %p214, %s20, 1
      %p216 = scmp.lt.s32.totalorder %s213, 7
      %s217 = scalar_select %p216, %s213, 7
      %p218 = scmp.lt.s32.totalorder %s19, 0
      %s219 = scalar_select %p218, %s19, 0
      %s220 = sadd.s32 %s219, %s217
      %s221 = smul.addr %s215, 8
      %s222 = sadd.s32 %s220, %s221
      %s223 = smul.addr %s222, 8
      %s224 = scalar_lea.vmem %s2, %s223
      %s225 = smul.u32 8, %s18
      %v226 = vld [vmem:[%s203] sm:$0xff]
      %v227 = vld [vmem:[%s203 + $0x8] sm:$0xff]
      %v228 = vld [vmem:[%s203 + $0x10] sm:$0xff]
      %v229 = vld [vmem:[%s203 + $0x18] sm:$0xff]
      %v230 = vld [vmem:[%s203 + $0x20] sm:$0xff]
      %v231 = vld [vmem:[%s203 + $0x28] sm:$0xff]
      %v232 = vld [vmem:[%s203 + $0x30] sm:$0xff]
      %v233 = vld [vmem:[%s203 + $0x38] sm:$0xff]
      %v234 = vld [vmem:[%s211] sm:$0xff]
      %v235 = vld [vmem:[%s211 + $0x8] sm:$0xff]
      %v236 = vld [vmem:[%s211 + $0x10] sm:$0xff]
      %v237 = vld [vmem:[%s211 + $0x18] sm:$0xff]
      %v238 = vld [vmem:[%s211 + $0x20] sm:$0xff]
      %v239 = vld [vmem:[%s211 + $0x28] sm:$0xff]
      %v240 = vld [vmem:[%s211 + $0x30] sm:$0xff]
      %v241 = vld [vmem:[%s211 + $0x38] sm:$0xff]
      %v242 = vperm.slane %v226, 0
      %v243 = vmul.f32 %v242, %v234
      %v244 = vmul.f32 %v242, %v235
      %v245 = vmul.f32 %v242, %v236
      %v246 = vmul.f32 %v242, %v237
      %v247 = vmul.f32 %v242, %v238
      %v248 = vmul.f32 %v242, %v239
      %v249 = vmul.f32 %v242, %v240
      %v250 = vmul.f32 %v242, %v241
      %v251 = vadd.f32 %v243, 0.0
      %v252 = vadd.f32 %v244, 0.0
      %v253 = vadd.f32 %v245, 0.0
      %v254 = vadd.f32 %v246, 0.0
      %v255 = vadd.f32 %v247, 0.0
      %v256 = vadd.f32 %v248, 0.0
      %v257 = vadd.f32 %v249, 0.0
      %v258 = vadd.f32 %v250, 0.0
      %s259 = scalar_lea.vmem %s211, 64
      %v260 = vld [vmem:[%s259] sm:$0xff]
      %v261 = vld [vmem:[%s259 + $0x8] sm:$0xff]
      %v262 = vld [vmem:[%s259 + $0x10] sm:$0xff]
      %v263 = vld [vmem:[%s259 + $0x18] sm:$0xff]
      %v264 = vld [vmem:[%s259 + $0x20] sm:$0xff]
      %v265 = vld [vmem:[%s259 + $0x28] sm:$0xff]
      %v266 = vld [vmem:[%s259 + $0x30] sm:$0xff]
      %v267 = vld [vmem:[%s259 + $0x38] sm:$0xff]
      %v268 = vperm.slane %v226, 1
      %v269 = vmul.f32 %v268, %v260
      %v270 = vmul.f32 %v268, %v261
      %v271 = vmul.f32 %v268, %v262
      %v272 = vmul.f32 %v268, %v263
      %v273 = vmul.f32 %v268, %v264
      %v274 = vmul.f32 %v268, %v265
      %v275 = vmul.f32 %v268, %v266
      %v276 = vmul.f32 %v268, %v267
      %v277 = vadd.f32 %v251, %v269
      %v278 = vadd.f32 %v252, %v270
      %v279 = vadd.f32 %v253, %v271
      %v280 = vadd.f32 %v254, %v272
      %v281 = vadd.f32 %v255, %v273
      %v282 = vadd.f32 %v256, %v274
      %v283 = vadd.f32 %v257, %v275
      %v284 = vadd.f32 %v258, %v276
      %s285 = scalar_lea.vmem %s211, 128
      %v286 = vld [vmem:[%s285] sm:$0xff]
      %v287 = vld [vmem:[%s285 + $0x8] sm:$0xff]
      %v288 = vld [vmem:[%s285 + $0x10] sm:$0xff]
      %v289 = vld [vmem:[%s285 + $0x18] sm:$0xff]
      %v290 = vld [vmem:[%s285 + $0x20] sm:$0xff]
      %v291 = vld [vmem:[%s285 + $0x28] sm:$0xff]
      %v292 = vld [vmem:[%s285 + $0x30] sm:$0xff]
      %v293 = vld [vmem:[%s285 + $0x38] sm:$0xff]
      %v294 = vperm.slane %v226, 2
      %v295 = vmul.f32 %v294, %v286
      %v296 = vmul.f32 %v294, %v287
      %v297 = vmul.f32 %v294, %v288
      %v298 = vmul.f32 %v294, %v289
      %v299 = vmul.f32 %v294, %v290
      %v300 = vmul.f32 %v294, %v291
      %v301 = vmul.f32 %v294, %v292
      %v302 = vmul.f32 %v294, %v293
      %v303 = vadd.f32 %v277, %v295
      %v304 = vadd.f32 %v278, %v296
      %v305 = vadd.f32 %v279, %v297
      %v306 = vadd.f32 %v280, %v298
      %v307 = vadd.f32 %v281, %v299
      %v308 = vadd.f32 %v282, %v300
      %v309 = vadd.f32 %v283, %v301
      %v310 = vadd.f32 %v284, %v302
      %s311 = scalar_lea.vmem %s211, 192
      %v312 = vld [vmem:[%s311] sm:$0xff]
      %v313 = vld [vmem:[%s311 + $0x8] sm:$0xff]
      %v314 = vld [vmem:[%s311 + $0x10] sm:$0xff]
      %v315 = vld [vmem:[%s311 + $0x18] sm:$0xff]
      %v316 = vld [vmem:[%s311 + $0x20] sm:$0xff]
      %v317 = vld [vmem:[%s311 + $0x28] sm:$0xff]
      %v318 = vld [vmem:[%s311 + $0x30] sm:$0xff]
      %v319 = vld [vmem:[%s311 + $0x38] sm:$0xff]
      %v320 = vperm.slane %v226, 3
      %v321 = vmul.f32 %v320, %v312
      %v322 = vmul.f32 %v320, %v313
      %v323 = vmul.f32 %v320, %v314
      %v324 = vmul.f32 %v320, %v315
      %v325 = vmul.f32 %v320, %v316
      %v326 = vmul.f32 %v320, %v317
      %v327 = vmul.f32 %v320, %v318
      %v328 = vmul.f32 %v320, %v319
      %v329 = vadd.f32 %v303, %v321
      %v330 = vadd.f32 %v304, %v322
      %v331 = vadd.f32 %v305, %v323
      %v332 = vadd.f32 %v306, %v324
      %v333 = vadd.f32 %v307, %v325
      %v334 = vadd.f32 %v308, %v326
      %v335 = vadd.f32 %v309, %v327
      %v336 = vadd.f32 %v310, %v328
      %s337 = scalar_lea.vmem %s211, 256
      %v338 = vld [vmem:[%s337] sm:$0xff]
      %v339 = vld [vmem:[%s337 + $0x8] sm:$0xff]
      %v340 = vld [vmem:[%s337 + $0x10] sm:$0xff]
      %v341 = vld [vmem:[%s337 + $0x18] sm:$0xff]
      %v342 = vld [vmem:[%s337 + $0x20] sm:$0xff]
      %v343 = vld [vmem:[%s337 + $0x28] sm:$0xff]
      %v344 = vld [vmem:[%s337 + $0x30] sm:$0xff]
      %v345 = vld [vmem:[%s337 + $0x38] sm:$0xff]
      %v346 = vperm.slane %v226, 4
      %v347 = vmul.f32 %v346, %v338
      %v348 = vmul.f32 %v346, %v339
      %v349 = vmul.f32 %v346, %v340
      %v350 = vmul.f32 %v346, %v341
      %v351 = vmul.f32 %v346, %v342
      %v352 = vmul.f32 %v346, %v343
      %v353 = vmul.f32 %v346, %v344
      %v354 = vmul.f32 %v346, %v345
      %v355 = vadd.f32 %v329, %v347
      %v356 = vadd.f32 %v330, %v348
      %v357 = vadd.f32 %v331, %v349
      %v358 = vadd.f32 %v332, %v350
      %v359 = vadd.f32 %v333, %v351
      %v360 = vadd.f32 %v334, %v352
      %v361 = vadd.f32 %v335, %v353
      %v362 = vadd.f32 %v336, %v354
      %s363 = scalar_lea.vmem %s211, 320
      %v364 = vld [vmem:[%s363] sm:$0xff]
      %v365 = vld [vmem:[%s363 + $0x8] sm:$0xff]
      %v366 = vld [vmem:[%s363 + $0x10] sm:$0xff]
      %v367 = vld [vmem:[%s363 + $0x18] sm:$0xff]
      %v368 = vld [vmem:[%s363 + $0x20] sm:$0xff]
      %v369 = vld [vmem:[%s363 + $0x28] sm:$0xff]
      %v370 = vld [vmem:[%s363 + $0x30] sm:$0xff]
      %v371 = vld [vmem:[%s363 + $0x38] sm:$0xff]
      %v372 = vperm.slane %v226, 5
      %v373 = vmul.f32 %v372, %v364
      %v374 = vmul.f32 %v372, %v365
      %v375 = vmul.f32 %v372, %v366
      %v376 = vmul.f32 %v372, %v367
      %v377 = vmul.f32 %v372, %v368
      %v378 = vmul.f32 %v372, %v369
      %v379 = vmul.f32 %v372, %v370
      %v380 = vmul.f32 %v372, %v371
      %v381 = vadd.f32 %v355, %v373
      %v382 = vadd.f32 %v356, %v374
      %v383 = vadd.f32 %v357, %v375
      %v384 = vadd.f32 %v358, %v376
      %v385 = vadd.f32 %v359, %v377
      %v386 = vadd.f32 %v360, %v378
      %v387 = vadd.f32 %v361, %v379
      %v388 = vadd.f32 %v362, %v380
      %s389 = scalar_lea.vmem %s211, 384
      %v390 = vld [vmem:[%s389] sm:$0xff]
      %v391 = vld [vmem:[%s389 + $0x8] sm:$0xff]
      %v392 = vld [vmem:[%s389 + $0x10] sm:$0xff]
      %v393 = vld [vmem:[%s389 + $0x18] sm:$0xff]
      %v394 = vld [vmem:[%s389 + $0x20] sm:$0xff]
      %v395 = vld [vmem:[%s389 + $0x28] sm:$0xff]
      %v396 = vld [vmem:[%s389 + $0x30] sm:$0xff]
      %v397 = vld [vmem:[%s389 + $0x38] sm:$0xff]
      %v398 = vperm.slane %v226, 6
      %v399 = vmul.f32 %v398, %v390
      %v400 = vmul.f32 %v398, %v391
      %v401 = vmul.f32 %v398, %v392
      %v402 = vmul.f32 %v398, %v393
      %v403 = vmul.f32 %v398, %v394
      %v404 = vmul.f32 %v398, %v395
      %v405 = vmul.f32 %v398, %v396
      %v406 = vmul.f32 %v398, %v397
      %v407 = vadd.f32 %v381, %v399
      %v408 = vadd.f32 %v382, %v400
      %v409 = vadd.f32 %v383, %v401
      %v410 = vadd.f32 %v384, %v402
      %v411 = vadd.f32 %v385, %v403
      %v412 = vadd.f32 %v386, %v404
      %v413 = vadd.f32 %v387, %v405
      %v414 = vadd.f32 %v388, %v406
      %s415 = scalar_lea.vmem %s211, 448
      %v416 = vld [vmem:[%s415] sm:$0xff]
      %v417 = vld [vmem:[%s415 + $0x8] sm:$0xff]
      %v418 = vld [vmem:[%s415 + $0x10] sm:$0xff]
      %v419 = vld [vmem:[%s415 + $0x18] sm:$0xff]
      %v420 = vld [vmem:[%s415 + $0x20] sm:$0xff]
      %v421 = vld [vmem:[%s415 + $0x28] sm:$0xff]
      %v422 = vld [vmem:[%s415 + $0x30] sm:$0xff]
      %v423 = vld [vmem:[%s415 + $0x38] sm:$0xff]
      %v424 = vperm.slane %v226, 7
      %v425 = vmul.f32 %v424, %v416
      %v426 = vmul.f32 %v424, %v417
      %v427 = vmul.f32 %v424, %v418
      %v428 = vmul.f32 %v424, %v419
      %v429 = vmul.f32 %v424, %v420
      %v430 = vmul.f32 %v424, %v421
      %v431 = vmul.f32 %v424, %v422
      %v432 = vmul.f32 %v424, %v423
      %v433 = vadd.f32 %v407, %v425
      %v434 = vadd.f32 %v408, %v426
      %v435 = vadd.f32 %v409, %v427
      %v436 = vadd.f32 %v410, %v428
      %v437 = vadd.f32 %v411, %v429
      %v438 = vadd.f32 %v412, %v430
      %v439 = vadd.f32 %v413, %v431
      %v440 = vadd.f32 %v414, %v432
      %s441 = scalar_lea.vmem %s211, 512
      %v442 = vld [vmem:[%s441] sm:$0xff]
      %v443 = vld [vmem:[%s441 + $0x8] sm:$0xff]
      %v444 = vld [vmem:[%s441 + $0x10] sm:$0xff]
      %v445 = vld [vmem:[%s441 + $0x18] sm:$0xff]
      %v446 = vld [vmem:[%s441 + $0x20] sm:$0xff]
      %v447 = vld [vmem:[%s441 + $0x28] sm:$0xff]
      %v448 = vld [vmem:[%s441 + $0x30] sm:$0xff]
      %v449 = vld [vmem:[%s441 + $0x38] sm:$0xff]
      %v450 = vperm.slane %v227, 0
      %v451 = vmul.f32 %v450, %v442
      %v452 = vmul.f32 %v450, %v443
      %v453 = vmul.f32 %v450, %v444
      %v454 = vmul.f32 %v450, %v445
      %v455 = vmul.f32 %v450, %v446
      %v456 = vmul.f32 %v450, %v447
      %v457 = vmul.f32 %v450, %v448
      %v458 = vmul.f32 %v450, %v449
      %v459 = vadd.f32 %v433, %v451
      %v460 = vadd.f32 %v434, %v452
      %v461 = vadd.f32 %v435, %v453
      %v462 = vadd.f32 %v436, %v454
      %v463 = vadd.f32 %v437, %v455
      %v464 = vadd.f32 %v438, %v456
      %v465 = vadd.f32 %v439, %v457
      %v466 = vadd.f32 %v440, %v458
      %s467 = scalar_lea.vmem %s211, 576
      %v468 = vld [vmem:[%s467] sm:$0xff]
      %v469 = vld [vmem:[%s467 + $0x8] sm:$0xff]
      %v470 = vld [vmem:[%s467 + $0x10] sm:$0xff]
      %v471 = vld [vmem:[%s467 + $0x18] sm:$0xff]
      %v472 = vld [vmem:[%s467 + $0x20] sm:$0xff]
      %v473 = vld [vmem:[%s467 + $0x28] sm:$0xff]
      %v474 = vld [vmem:[%s467 + $0x30] sm:$0xff]
      %v475 = vld [vmem:[%s467 + $0x38] sm:$0xff]
      %v476 = vperm.slane %v227, 1
      %v477 = vmul.f32 %v476, %v468
      %v478 = vmul.f32 %v476, %v469
      %v479 = vmul.f32 %v476, %v470
      %v480 = vmul.f32 %v476, %v471
      %v481 = vmul.f32 %v476, %v472
      %v482 = vmul.f32 %v476, %v473
      %v483 = vmul.f32 %v476, %v474
      %v484 = vmul.f32 %v476, %v475
      %v485 = vadd.f32 %v459, %v477
      %v486 = vadd.f32 %v460, %v478
      %v487 = vadd.f32 %v461, %v479
      %v488 = vadd.f32 %v462, %v480
      %v489 = vadd.f32 %v463, %v481
      %v490 = vadd.f32 %v464, %v482
      %v491 = vadd.f32 %v465, %v483
      %v492 = vadd.f32 %v466, %v484
      %s493 = scalar_lea.vmem %s211, 640
      %v494 = vld [vmem:[%s493] sm:$0xff]
      %v495 = vld [vmem:[%s493 + $0x8] sm:$0xff]
      %v496 = vld [vmem:[%s493 + $0x10] sm:$0xff]
      %v497 = vld [vmem:[%s493 + $0x18] sm:$0xff]
      %v498 = vld [vmem:[%s493 + $0x20] sm:$0xff]
      %v499 = vld [vmem:[%s493 + $0x28] sm:$0xff]
      %v500 = vld [vmem:[%s493 + $0x30] sm:$0xff]
      %v501 = vld [vmem:[%s493 + $0x38] sm:$0xff]
      %v502 = vperm.slane %v227, 2
      %v503 = vmul.f32 %v502, %v494
      %v504 = vmul.f32 %v502, %v495
      %v505 = vmul.f32 %v502, %v496
      %v506 = vmul.f32 %v502, %v497
      %v507 = vmul.f32 %v502, %v498
      %v508 = vmul.f32 %v502, %v499
      %v509 = vmul.f32 %v502, %v500
      %v510 = vmul.f32 %v502, %v501
      %v511 = vadd.f32 %v485, %v503
      %v512 = vadd.f32 %v486, %v504
      %v513 = vadd.f32 %v487, %v505
      %v514 = vadd.f32 %v488, %v506
      %v515 = vadd.f32 %v489, %v507
      %v516 = vadd.f32 %v490, %v508
      %v517 = vadd.f32 %v491, %v509
      %v518 = vadd.f32 %v492, %v510
      %s519 = scalar_lea.vmem %s211, 704
      %v520 = vld [vmem:[%s519] sm:$0xff]
      %v521 = vld [vmem:[%s519 + $0x8] sm:$0xff]
      %v522 = vld [vmem:[%s519 + $0x10] sm:$0xff]
      %v523 = vld [vmem:[%s519 + $0x18] sm:$0xff]
      %v524 = vld [vmem:[%s519 + $0x20] sm:$0xff]
      %v525 = vld [vmem:[%s519 + $0x28] sm:$0xff]
      %v526 = vld [vmem:[%s519 + $0x30] sm:$0xff]
      %v527 = vld [vmem:[%s519 + $0x38] sm:$0xff]
      %v528 = vperm.slane %v227, 3
      %v529 = vmul.f32 %v528, %v520
      %v530 = vmul.f32 %v528, %v521
      %v531 = vmul.f32 %v528, %v522
      %v532 = vmul.f32 %v528, %v523
      %v533 = vmul.f32 %v528, %v524
      %v534 = vmul.f32 %v528, %v525
      %v535 = vmul.f32 %v528, %v526
      %v536 = vmul.f32 %v528, %v527
      %v537 = vadd.f32 %v511, %v529
      %v538 = vadd.f32 %v512, %v530
      %v539 = vadd.f32 %v513, %v531
      %v540 = vadd.f32 %v514, %v532
      %v541 = vadd.f32 %v515, %v533
      %v542 = vadd.f32 %v516, %v534
      %v543 = vadd.f32 %v517, %v535
      %v544 = vadd.f32 %v518, %v536
      %s545 = scalar_lea.vmem %s211, 768
      %v546 = vld [vmem:[%s545] sm:$0xff]
      %v547 = vld [vmem:[%s545 + $0x8] sm:$0xff]
      %v548 = vld [vmem:[%s545 + $0x10] sm:$0xff]
      %v549 = vld [vmem:[%s545 + $0x18] sm:$0xff]
      %v550 = vld [vmem:[%s545 + $0x20] sm:$0xff]
      %v551 = vld [vmem:[%s545 + $0x28] sm:$0xff]
      %v552 = vld [vmem:[%s545 + $0x30] sm:$0xff]
      %v553 = vld [vmem:[%s545 + $0x38] sm:$0xff]
      %v554 = vperm.slane %v227, 4
      %v555 = vmul.f32 %v554, %v546
      %v556 = vmul.f32 %v554, %v547
      %v557 = vmul.f32 %v554, %v548
      %v558 = vmul.f32 %v554, %v549
      %v559 = vmul.f32 %v554, %v550
      %v560 = vmul.f32 %v554, %v551
      %v561 = vmul.f32 %v554, %v552
      %v562 = vmul.f32 %v554, %v553
      %v563 = vadd.f32 %v537, %v555
      %v564 = vadd.f32 %v538, %v556
      %v565 = vadd.f32 %v539, %v557
      %v566 = vadd.f32 %v540, %v558
      %v567 = vadd.f32 %v541, %v559
      %v568 = vadd.f32 %v542, %v560
      %v569 = vadd.f32 %v543, %v561
      %v570 = vadd.f32 %v544, %v562
      %s571 = scalar_lea.vmem %s211, 832
      %v572 = vld [vmem:[%s571] sm:$0xff]
      %v573 = vld [vmem:[%s571 + $0x8] sm:$0xff]
      %v574 = vld [vmem:[%s571 + $0x10] sm:$0xff]
      %v575 = vld [vmem:[%s571 + $0x18] sm:$0xff]
      %v576 = vld [vmem:[%s571 + $0x20] sm:$0xff]
      %v577 = vld [vmem:[%s571 + $0x28] sm:$0xff]
      %v578 = vld [vmem:[%s571 + $0x30] sm:$0xff]
      %v579 = vld [vmem:[%s571 + $0x38] sm:$0xff]
      %v580 = vperm.slane %v227, 5
      %v581 = vmul.f32 %v580, %v572
      %v582 = vmul.f32 %v580, %v573
      %v583 = vmul.f32 %v580, %v574
      %v584 = vmul.f32 %v580, %v575
      %v585 = vmul.f32 %v580, %v576
      %v586 = vmul.f32 %v580, %v577
      %v587 = vmul.f32 %v580, %v578
      %v588 = vmul.f32 %v580, %v579
      %v589 = vadd.f32 %v563, %v581
      %v590 = vadd.f32 %v564, %v582
      %v591 = vadd.f32 %v565, %v583
      %v592 = vadd.f32 %v566, %v584
      %v593 = vadd.f32 %v567, %v585
      %v594 = vadd.f32 %v568, %v586
      %v595 = vadd.f32 %v569, %v587
      %v596 = vadd.f32 %v570, %v588
      %s597 = scalar_lea.vmem %s211, 896
      %v598 = vld [vmem:[%s597] sm:$0xff]
      %v599 = vld [vmem:[%s597 + $0x8] sm:$0xff]
      %v600 = vld [vmem:[%s597 + $0x10] sm:$0xff]
      %v601 = vld [vmem:[%s597 + $0x18] sm:$0xff]
      %v602 = vld [vmem:[%s597 + $0x20] sm:$0xff]
      %v603 = vld [vmem:[%s597 + $0x28] sm:$0xff]
      %v604 = vld [vmem:[%s597 + $0x30] sm:$0xff]
      %v605 = vld [vmem:[%s597 + $0x38] sm:$0xff]
      %v606 = vperm.slane %v227, 6
      %v607 = vmul.f32 %v606, %v598
      %v608 = vmul.f32 %v606, %v599
      %v609 = vmul.f32 %v606, %v600
      %v610 = vmul.f32 %v606, %v601
      %v611 = vmul.f32 %v606, %v602
      %v612 = vmul.f32 %v606, %v603
      %v613 = vmul.f32 %v606, %v604
      %v614 = vmul.f32 %v606, %v605
      %v615 = vadd.f32 %v589, %v607
      %v616 = vadd.f32 %v590, %v608
      %v617 = vadd.f32 %v591, %v609
      %v618 = vadd.f32 %v592, %v610
      %v619 = vadd.f32 %v593, %v611
      %v620 = vadd.f32 %v594, %v612
      %v621 = vadd.f32 %v595, %v613
      %v622 = vadd.f32 %v596, %v614
      %s623 = scalar_lea.vmem %s211, 960
      %v624 = vld [vmem:[%s623] sm:$0xff]
      %v625 = vld [vmem:[%s623 + $0x8] sm:$0xff]
      %v626 = vld [vmem:[%s623 + $0x10] sm:$0xff]
      %v627 = vld [vmem:[%s623 + $0x18] sm:$0xff]
      %v628 = vld [vmem:[%s623 + $0x20] sm:$0xff]
      %v629 = vld [vmem:[%s623 + $0x28] sm:$0xff]
      %v630 = vld [vmem:[%s623 + $0x30] sm:$0xff]
      %v631 = vld [vmem:[%s623 + $0x38] sm:$0xff]
      %v632 = vperm.slane %v227, 7
      %v633 = vmul.f32 %v632, %v624
      %v634 = vmul.f32 %v632, %v625
      %v635 = vmul.f32 %v632, %v626
      %v636 = vmul.f32 %v632, %v627
      %v637 = vmul.f32 %v632, %v628
      %v638 = vmul.f32 %v632, %v629
      %v639 = vmul.f32 %v632, %v630
      %v640 = vmul.f32 %v632, %v631
      %v641 = vadd.f32 %v615, %v633
      %v642 = vadd.f32 %v616, %v634
      %v643 = vadd.f32 %v617, %v635
      %v644 = vadd.f32 %v618, %v636
      %v645 = vadd.f32 %v619, %v637
      %v646 = vadd.f32 %v620, %v638
      %v647 = vadd.f32 %v621, %v639
      %v648 = vadd.f32 %v622, %v640
      %s649 = scalar_lea.vmem %s211, 1024
      %v650 = vld [vmem:[%s649] sm:$0xff]
      %v651 = vld [vmem:[%s649 + $0x8] sm:$0xff]
      %v652 = vld [vmem:[%s649 + $0x10] sm:$0xff]
      %v653 = vld [vmem:[%s649 + $0x18] sm:$0xff]
      %v654 = vld [vmem:[%s649 + $0x20] sm:$0xff]
      %v655 = vld [vmem:[%s649 + $0x28] sm:$0xff]
      %v656 = vld [vmem:[%s649 + $0x30] sm:$0xff]
      %v657 = vld [vmem:[%s649 + $0x38] sm:$0xff]
      %v658 = vperm.slane %v228, 0
      %v659 = vmul.f32 %v658, %v650
      %v660 = vmul.f32 %v658, %v651
      %v661 = vmul.f32 %v658, %v652
      %v662 = vmul.f32 %v658, %v653
      %v663 = vmul.f32 %v658, %v654
      %v664 = vmul.f32 %v658, %v655
      %v665 = vmul.f32 %v658, %v656
      %v666 = vmul.f32 %v658, %v657
      %v667 = vadd.f32 %v641, %v659
      %v668 = vadd.f32 %v642, %v660
      %v669 = vadd.f32 %v643, %v661
      %v670 = vadd.f32 %v644, %v662
      %v671 = vadd.f32 %v645, %v663
      %v672 = vadd.f32 %v646, %v664
      %v673 = vadd.f32 %v647, %v665
      %v674 = vadd.f32 %v648, %v666
      %s675 = scalar_lea.vmem %s211, 1088
      %v676 = vld [vmem:[%s675] sm:$0xff]
      %v677 = vld [vmem:[%s675 + $0x8] sm:$0xff]
      %v678 = vld [vmem:[%s675 + $0x10] sm:$0xff]
      %v679 = vld [vmem:[%s675 + $0x18] sm:$0xff]
      %v680 = vld [vmem:[%s675 + $0x20] sm:$0xff]
      %v681 = vld [vmem:[%s675 + $0x28] sm:$0xff]
      %v682 = vld [vmem:[%s675 + $0x30] sm:$0xff]
      %v683 = vld [vmem:[%s675 + $0x38] sm:$0xff]
      %v684 = vperm.slane %v228, 1
      %v685 = vmul.f32 %v684, %v676
      %v686 = vmul.f32 %v684, %v677
      %v687 = vmul.f32 %v684, %v678
      %v688 = vmul.f32 %v684, %v679
      %v689 = vmul.f32 %v684, %v680
      %v690 = vmul.f32 %v684, %v681
      %v691 = vmul.f32 %v684, %v682
      %v692 = vmul.f32 %v684, %v683
      %v693 = vadd.f32 %v667, %v685
      %v694 = vadd.f32 %v668, %v686
      %v695 = vadd.f32 %v669, %v687
      %v696 = vadd.f32 %v670, %v688
      %v697 = vadd.f32 %v671, %v689
      %v698 = vadd.f32 %v672, %v690
      %v699 = vadd.f32 %v673, %v691
      %v700 = vadd.f32 %v674, %v692
      %s701 = scalar_lea.vmem %s211, 1152
      %v702 = vld [vmem:[%s701] sm:$0xff]
      %v703 = vld [vmem:[%s701 + $0x8] sm:$0xff]
      %v704 = vld [vmem:[%s701 + $0x10] sm:$0xff]
      %v705 = vld [vmem:[%s701 + $0x18] sm:$0xff]
      %v706 = vld [vmem:[%s701 + $0x20] sm:$0xff]
      %v707 = vld [vmem:[%s701 + $0x28] sm:$0xff]
      %v708 = vld [vmem:[%s701 + $0x30] sm:$0xff]
      %v709 = vld [vmem:[%s701 + $0x38] sm:$0xff]
      %v710 = vperm.slane %v228, 2
      %v711 = vmul.f32 %v710, %v702
      %v712 = vmul.f32 %v710, %v703
      %v713 = vmul.f32 %v710, %v704
      %v714 = vmul.f32 %v710, %v705
      %v715 = vmul.f32 %v710, %v706
      %v716 = vmul.f32 %v710, %v707
      %v717 = vmul.f32 %v710, %v708
      %v718 = vmul.f32 %v710, %v709
      %v719 = vadd.f32 %v693, %v711
      %v720 = vadd.f32 %v694, %v712
      %v721 = vadd.f32 %v695, %v713
      %v722 = vadd.f32 %v696, %v714
      %v723 = vadd.f32 %v697, %v715
      %v724 = vadd.f32 %v698, %v716
      %v725 = vadd.f32 %v699, %v717
      %v726 = vadd.f32 %v700, %v718
      %s727 = scalar_lea.vmem %s211, 1216
      %v728 = vld [vmem:[%s727] sm:$0xff]
      %v729 = vld [vmem:[%s727 + $0x8] sm:$0xff]
      %v730 = vld [vmem:[%s727 + $0x10] sm:$0xff]
      %v731 = vld [vmem:[%s727 + $0x18] sm:$0xff]
      %v732 = vld [vmem:[%s727 + $0x20] sm:$0xff]
      %v733 = vld [vmem:[%s727 + $0x28] sm:$0xff]
      %v734 = vld [vmem:[%s727 + $0x30] sm:$0xff]
      %v735 = vld [vmem:[%s727 + $0x38] sm:$0xff]
      %v736 = vperm.slane %v228, 3
      %v737 = vmul.f32 %v736, %v728
      %v738 = vmul.f32 %v736, %v729
      %v739 = vmul.f32 %v736, %v730
      %v740 = vmul.f32 %v736, %v731
      %v741 = vmul.f32 %v736, %v732
      %v742 = vmul.f32 %v736, %v733
      %v743 = vmul.f32 %v736, %v734
      %v744 = vmul.f32 %v736, %v735
      %v745 = vadd.f32 %v719, %v737
      %v746 = vadd.f32 %v720, %v738
      %v747 = vadd.f32 %v721, %v739
      %v748 = vadd.f32 %v722, %v740
      %v749 = vadd.f32 %v723, %v741
      %v750 = vadd.f32 %v724, %v742
      %v751 = vadd.f32 %v725, %v743
      %v752 = vadd.f32 %v726, %v744
      %s753 = scalar_lea.vmem %s211, 1280
      %v754 = vld [vmem:[%s753] sm:$0xff]
      %v755 = vld [vmem:[%s753 + $0x8] sm:$0xff]
      %v756 = vld [vmem:[%s753 + $0x10] sm:$0xff]
      %v757 = vld [vmem:[%s753 + $0x18] sm:$0xff]
      %v758 = vld [vmem:[%s753 + $0x20] sm:$0xff]
      %v759 = vld [vmem:[%s753 + $0x28] sm:$0xff]
      %v760 = vld [vmem:[%s753 + $0x30] sm:$0xff]
      %v761 = vld [vmem:[%s753 + $0x38] sm:$0xff]
      %v762 = vperm.slane %v228, 4
      %v763 = vmul.f32 %v762, %v754
      %v764 = vmul.f32 %v762, %v755
      %v765 = vmul.f32 %v762, %v756
      %v766 = vmul.f32 %v762, %v757
      %v767 = vmul.f32 %v762, %v758
      %v768 = vmul.f32 %v762, %v759
      %v769 = vmul.f32 %v762, %v760
      %v770 = vmul.f32 %v762, %v761
      %v771 = vadd.f32 %v745, %v763
      %v772 = vadd.f32 %v746, %v764
      %v773 = vadd.f32 %v747, %v765
      %v774 = vadd.f32 %v748, %v766
      %v775 = vadd.f32 %v749, %v767
      %v776 = vadd.f32 %v750, %v768
      %v777 = vadd.f32 %v751, %v769
      %v778 = vadd.f32 %v752, %v770
      %s779 = scalar_lea.vmem %s211, 1344
      %v780 = vld [vmem:[%s779] sm:$0xff]
      %v781 = vld [vmem:[%s779 + $0x8] sm:$0xff]
      %v782 = vld [vmem:[%s779 + $0x10] sm:$0xff]
      %v783 = vld [vmem:[%s779 + $0x18] sm:$0xff]
      %v784 = vld [vmem:[%s779 + $0x20] sm:$0xff]
      %v785 = vld [vmem:[%s779 + $0x28] sm:$0xff]
      %v786 = vld [vmem:[%s779 + $0x30] sm:$0xff]
      %v787 = vld [vmem:[%s779 + $0x38] sm:$0xff]
      %v788 = vperm.slane %v228, 5
      %v789 = vmul.f32 %v788, %v780
      %v790 = vmul.f32 %v788, %v781
      %v791 = vmul.f32 %v788, %v782
      %v792 = vmul.f32 %v788, %v783
      %v793 = vmul.f32 %v788, %v784
      %v794 = vmul.f32 %v788, %v785
      %v795 = vmul.f32 %v788, %v786
      %v796 = vmul.f32 %v788, %v787
      %v797 = vadd.f32 %v771, %v789
      %v798 = vadd.f32 %v772, %v790
      %v799 = vadd.f32 %v773, %v791
      %v800 = vadd.f32 %v774, %v792
      %v801 = vadd.f32 %v775, %v793
      %v802 = vadd.f32 %v776, %v794
      %v803 = vadd.f32 %v777, %v795
      %v804 = vadd.f32 %v778, %v796
      %s805 = scalar_lea.vmem %s211, 1408
      %v806 = vld [vmem:[%s805] sm:$0xff]
      %v807 = vld [vmem:[%s805 + $0x8] sm:$0xff]
      %v808 = vld [vmem:[%s805 + $0x10] sm:$0xff]
      %v809 = vld [vmem:[%s805 + $0x18] sm:$0xff]
      %v810 = vld [vmem:[%s805 + $0x20] sm:$0xff]
      %v811 = vld [vmem:[%s805 + $0x28] sm:$0xff]
      %v812 = vld [vmem:[%s805 + $0x30] sm:$0xff]
      %v813 = vld [vmem:[%s805 + $0x38] sm:$0xff]
      %v814 = vperm.slane %v228, 6
      %v815 = vmul.f32 %v814, %v806
      %v816 = vmul.f32 %v814, %v807
      %v817 = vmul.f32 %v814, %v808
      %v818 = vmul.f32 %v814, %v809
      %v819 = vmul.f32 %v814, %v810
      %v820 = vmul.f32 %v814, %v811
      %v821 = vmul.f32 %v814, %v812
      %v822 = vmul.f32 %v814, %v813
      %v823 = vadd.f32 %v797, %v815
      %v824 = vadd.f32 %v798, %v816
      %v825 = vadd.f32 %v799, %v817
      %v826 = vadd.f32 %v800, %v818
      %v827 = vadd.f32 %v801, %v819
      %v828 = vadd.f32 %v802, %v820
      %v829 = vadd.f32 %v803, %v821
      %v830 = vadd.f32 %v804, %v822
      %s831 = scalar_lea.vmem %s211, 1472
      %v832 = vld [vmem:[%s831] sm:$0xff]
      %v833 = vld [vmem:[%s831 + $0x8] sm:$0xff]
      %v834 = vld [vmem:[%s831 + $0x10] sm:$0xff]
      %v835 = vld [vmem:[%s831 + $0x18] sm:$0xff]
      %v836 = vld [vmem:[%s831 + $0x20] sm:$0xff]
      %v837 = vld [vmem:[%s831 + $0x28] sm:$0xff]
      %v838 = vld [vmem:[%s831 + $0x30] sm:$0xff]
      %v839 = vld [vmem:[%s831 + $0x38] sm:$0xff]
      %v840 = vperm.slane %v228, 7
      %v841 = vmul.f32 %v840, %v832
      %v842 = vmul.f32 %v840, %v833
      %v843 = vmul.f32 %v840, %v834
      %v844 = vmul.f32 %v840, %v835
      %v845 = vmul.f32 %v840, %v836
      %v846 = vmul.f32 %v840, %v837
      %v847 = vmul.f32 %v840, %v838
      %v848 = vmul.f32 %v840, %v839
      %v849 = vadd.f32 %v823, %v841
      %v850 = vadd.f32 %v824, %v842
      %v851 = vadd.f32 %v825, %v843
      %v852 = vadd.f32 %v826, %v844
      %v853 = vadd.f32 %v827, %v845
      %v854 = vadd.f32 %v828, %v846
      %v855 = vadd.f32 %v829, %v847
      %v856 = vadd.f32 %v830, %v848
      %s857 = scalar_lea.vmem %s211, 1536
      %v858 = vld [vmem:[%s857] sm:$0xff]
      %v859 = vld [vmem:[%s857 + $0x8] sm:$0xff]
      %v860 = vld [vmem:[%s857 + $0x10] sm:$0xff]
      %v861 = vld [vmem:[%s857 + $0x18] sm:$0xff]
      %v862 = vld [vmem:[%s857 + $0x20] sm:$0xff]
      %v863 = vld [vmem:[%s857 + $0x28] sm:$0xff]
      %v864 = vld [vmem:[%s857 + $0x30] sm:$0xff]
      %v865 = vld [vmem:[%s857 + $0x38] sm:$0xff]
      %v866 = vperm.slane %v229, 0
      %v867 = vmul.f32 %v866, %v858
      %v868 = vmul.f32 %v866, %v859
      %v869 = vmul.f32 %v866, %v860
      %v870 = vmul.f32 %v866, %v861
      %v871 = vmul.f32 %v866, %v862
      %v872 = vmul.f32 %v866, %v863
      %v873 = vmul.f32 %v866, %v864
      %v874 = vmul.f32 %v866, %v865
      %v875 = vadd.f32 %v849, %v867
      %v876 = vadd.f32 %v850, %v868
      %v877 = vadd.f32 %v851, %v869
      %v878 = vadd.f32 %v852, %v870
      %v879 = vadd.f32 %v853, %v871
      %v880 = vadd.f32 %v854, %v872
      %v881 = vadd.f32 %v855, %v873
      %v882 = vadd.f32 %v856, %v874
      %s883 = scalar_lea.vmem %s211, 1600
      %v884 = vld [vmem:[%s883] sm:$0xff]
      %v885 = vld [vmem:[%s883 + $0x8] sm:$0xff]
      %v886 = vld [vmem:[%s883 + $0x10] sm:$0xff]
      %v887 = vld [vmem:[%s883 + $0x18] sm:$0xff]
      %v888 = vld [vmem:[%s883 + $0x20] sm:$0xff]
      %v889 = vld [vmem:[%s883 + $0x28] sm:$0xff]
      %v890 = vld [vmem:[%s883 + $0x30] sm:$0xff]
      %v891 = vld [vmem:[%s883 + $0x38] sm:$0xff]
      %v892 = vperm.slane %v229, 1
      %v893 = vmul.f32 %v892, %v884
      %v894 = vmul.f32 %v892, %v885
      %v895 = vmul.f32 %v892, %v886
      %v896 = vmul.f32 %v892, %v887
      %v897 = vmul.f32 %v892, %v888
      %v898 = vmul.f32 %v892, %v889
      %v899 = vmul.f32 %v892, %v890
      %v900 = vmul.f32 %v892, %v891
      %v901 = vadd.f32 %v875, %v893
      %v902 = vadd.f32 %v876, %v894
      %v903 = vadd.f32 %v877, %v895
      %v904 = vadd.f32 %v878, %v896
      %v905 = vadd.f32 %v879, %v897
      %v906 = vadd.f32 %v880, %v898
      %v907 = vadd.f32 %v881, %v899
      %v908 = vadd.f32 %v882, %v900
      %s909 = scalar_lea.vmem %s211, 1664
      %v910 = vld [vmem:[%s909] sm:$0xff]
      %v911 = vld [vmem:[%s909 + $0x8] sm:$0xff]
      %v912 = vld [vmem:[%s909 + $0x10] sm:$0xff]
      %v913 = vld [vmem:[%s909 + $0x18] sm:$0xff]
      %v914 = vld [vmem:[%s909 + $0x20] sm:$0xff]
      %v915 = vld [vmem:[%s909 + $0x28] sm:$0xff]
      %v916 = vld [vmem:[%s909 + $0x30] sm:$0xff]
      %v917 = vld [vmem:[%s909 + $0x38] sm:$0xff]
      %v918 = vperm.slane %v229, 2
      %v919 = vmul.f32 %v918, %v910
      %v920 = vmul.f32 %v918, %v911
      %v921 = vmul.f32 %v918, %v912
      %v922 = vmul.f32 %v918, %v913
      %v923 = vmul.f32 %v918, %v914
      %v924 = vmul.f32 %v918, %v915
      %v925 = vmul.f32 %v918, %v916
      %v926 = vmul.f32 %v918, %v917
      %v927 = vadd.f32 %v901, %v919
      %v928 = vadd.f32 %v902, %v920
      %v929 = vadd.f32 %v903, %v921
      %v930 = vadd.f32 %v904, %v922
      %v931 = vadd.f32 %v905, %v923
      %v932 = vadd.f32 %v906, %v924
      %v933 = vadd.f32 %v907, %v925
      %v934 = vadd.f32 %v908, %v926
      %s935 = scalar_lea.vmem %s211, 1728
      %v936 = vld [vmem:[%s935] sm:$0xff]
      %v937 = vld [vmem:[%s935 + $0x8] sm:$0xff]
      %v938 = vld [vmem:[%s935 + $0x10] sm:$0xff]
      %v939 = vld [vmem:[%s935 + $0x18] sm:$0xff]
      %v940 = vld [vmem:[%s935 + $0x20] sm:$0xff]
      %v941 = vld [vmem:[%s935 + $0x28] sm:$0xff]
      %v942 = vld [vmem:[%s935 + $0x30] sm:$0xff]
      %v943 = vld [vmem:[%s935 + $0x38] sm:$0xff]
      %v944 = vperm.slane %v229, 3
      %v945 = vmul.f32 %v944, %v936
      %v946 = vmul.f32 %v944, %v937
      %v947 = vmul.f32 %v944, %v938
      %v948 = vmul.f32 %v944, %v939
      %v949 = vmul.f32 %v944, %v940
      %v950 = vmul.f32 %v944, %v941
      %v951 = vmul.f32 %v944, %v942
      %v952 = vmul.f32 %v944, %v943
      %v953 = vadd.f32 %v927, %v945
      %v954 = vadd.f32 %v928, %v946
      %v955 = vadd.f32 %v929, %v947
      %v956 = vadd.f32 %v930, %v948
      %v957 = vadd.f32 %v931, %v949
      %v958 = vadd.f32 %v932, %v950
      %v959 = vadd.f32 %v933, %v951
      %v960 = vadd.f32 %v934, %v952
      %s961 = scalar_lea.vmem %s211, 1792
      %v962 = vld [vmem:[%s961] sm:$0xff]
      %v963 = vld [vmem:[%s961 + $0x8] sm:$0xff]
      %v964 = vld [vmem:[%s961 + $0x10] sm:$0xff]
      %v965 = vld [vmem:[%s961 + $0x18] sm:$0xff]
      %v966 = vld [vmem:[%s961 + $0x20] sm:$0xff]
      %v967 = vld [vmem:[%s961 + $0x28] sm:$0xff]
      %v968 = vld [vmem:[%s961 + $0x30] sm:$0xff]
      %v969 = vld [vmem:[%s961 + $0x38] sm:$0xff]
      %v970 = vperm.slane %v229, 4
      %v971 = vmul.f32 %v970, %v962
      %v972 = vmul.f32 %v970, %v963
      %v973 = vmul.f32 %v970, %v964
      %v974 = vmul.f32 %v970, %v965
      %v975 = vmul.f32 %v970, %v966
      %v976 = vmul.f32 %v970, %v967
      %v977 = vmul.f32 %v970, %v968
      %v978 = vmul.f32 %v970, %v969
      %v979 = vadd.f32 %v953, %v971
      %v980 = vadd.f32 %v954, %v972
      %v981 = vadd.f32 %v955, %v973
      %v982 = vadd.f32 %v956, %v974
      %v983 = vadd.f32 %v957, %v975
      %v984 = vadd.f32 %v958, %v976
      %v985 = vadd.f32 %v959, %v977
      %v986 = vadd.f32 %v960, %v978
      %s987 = scalar_lea.vmem %s211, 1856
      %v988 = vld [vmem:[%s987] sm:$0xff]
      %v989 = vld [vmem:[%s987 + $0x8] sm:$0xff]
      %v990 = vld [vmem:[%s987 + $0x10] sm:$0xff]
      %v991 = vld [vmem:[%s987 + $0x18] sm:$0xff]
      %v992 = vld [vmem:[%s987 + $0x20] sm:$0xff]
      %v993 = vld [vmem:[%s987 + $0x28] sm:$0xff]
      %v994 = vld [vmem:[%s987 + $0x30] sm:$0xff]
      %v995 = vld [vmem:[%s987 + $0x38] sm:$0xff]
      %v996 = vperm.slane %v229, 5
      %v997 = vmul.f32 %v996, %v988
      %v998 = vmul.f32 %v996, %v989
      %v999 = vmul.f32 %v996, %v990
      %v1000 = vmul.f32 %v996, %v991
      %v1001 = vmul.f32 %v996, %v992
      %v1002 = vmul.f32 %v996, %v993
      %v1003 = vmul.f32 %v996, %v994
      %v1004 = vmul.f32 %v996, %v995
      %v1005 = vadd.f32 %v979, %v997
      %v1006 = vadd.f32 %v980, %v998
      %v1007 = vadd.f32 %v981, %v999
      %v1008 = vadd.f32 %v982, %v1000
      %v1009 = vadd.f32 %v983, %v1001
      %v1010 = vadd.f32 %v984, %v1002
      %v1011 = vadd.f32 %v985, %v1003
      %v1012 = vadd.f32 %v986, %v1004
      %s1013 = scalar_lea.vmem %s211, 1920
      %v1014 = vld [vmem:[%s1013] sm:$0xff]
      %v1015 = vld [vmem:[%s1013 + $0x8] sm:$0xff]
      %v1016 = vld [vmem:[%s1013 + $0x10] sm:$0xff]
      %v1017 = vld [vmem:[%s1013 + $0x18] sm:$0xff]
      %v1018 = vld [vmem:[%s1013 + $0x20] sm:$0xff]
      %v1019 = vld [vmem:[%s1013 + $0x28] sm:$0xff]
      %v1020 = vld [vmem:[%s1013 + $0x30] sm:$0xff]
      %v1021 = vld [vmem:[%s1013 + $0x38] sm:$0xff]
      %v1022 = vperm.slane %v229, 6
      %v1023 = vmul.f32 %v1022, %v1014
      %v1024 = vmul.f32 %v1022, %v1015
      %v1025 = vmul.f32 %v1022, %v1016
      %v1026 = vmul.f32 %v1022, %v1017
      %v1027 = vmul.f32 %v1022, %v1018
      %v1028 = vmul.f32 %v1022, %v1019
      %v1029 = vmul.f32 %v1022, %v1020
      %v1030 = vmul.f32 %v1022, %v1021
      %v1031 = vadd.f32 %v1005, %v1023
      %v1032 = vadd.f32 %v1006, %v1024
      %v1033 = vadd.f32 %v1007, %v1025
      %v1034 = vadd.f32 %v1008, %v1026
      %v1035 = vadd.f32 %v1009, %v1027
      %v1036 = vadd.f32 %v1010, %v1028
      %v1037 = vadd.f32 %v1011, %v1029
      %v1038 = vadd.f32 %v1012, %v1030
      %s1039 = scalar_lea.vmem %s211, 1984
      %v1040 = vld [vmem:[%s1039] sm:$0xff]
      %v1041 = vld [vmem:[%s1039 + $0x8] sm:$0xff]
      %v1042 = vld [vmem:[%s1039 + $0x10] sm:$0xff]
      %v1043 = vld [vmem:[%s1039 + $0x18] sm:$0xff]
      %v1044 = vld [vmem:[%s1039 + $0x20] sm:$0xff]
      %v1045 = vld [vmem:[%s1039 + $0x28] sm:$0xff]
      %v1046 = vld [vmem:[%s1039 + $0x30] sm:$0xff]
      %v1047 = vld [vmem:[%s1039 + $0x38] sm:$0xff]
      %v1048 = vperm.slane %v229, 7
      %v1049 = vmul.f32 %v1048, %v1040
      %v1050 = vmul.f32 %v1048, %v1041
      %v1051 = vmul.f32 %v1048, %v1042
      %v1052 = vmul.f32 %v1048, %v1043
      %v1053 = vmul.f32 %v1048, %v1044
      %v1054 = vmul.f32 %v1048, %v1045
      %v1055 = vmul.f32 %v1048, %v1046
      %v1056 = vmul.f32 %v1048, %v1047
      %v1057 = vadd.f32 %v1031, %v1049
      %v1058 = vadd.f32 %v1032, %v1050
      %v1059 = vadd.f32 %v1033, %v1051
      %v1060 = vadd.f32 %v1034, %v1052
      %v1061 = vadd.f32 %v1035, %v1053
      %v1062 = vadd.f32 %v1036, %v1054
      %v1063 = vadd.f32 %v1037, %v1055
      %v1064 = vadd.f32 %v1038, %v1056
      %s1065 = scalar_lea.vmem %s211, 2048
      %v1066 = vld [vmem:[%s1065] sm:$0xff]
      %v1067 = vld [vmem:[%s1065 + $0x8] sm:$0xff]
      %v1068 = vld [vmem:[%s1065 + $0x10] sm:$0xff]
      %v1069 = vld [vmem:[%s1065 + $0x18] sm:$0xff]
      %v1070 = vld [vmem:[%s1065 + $0x20] sm:$0xff]
      %v1071 = vld [vmem:[%s1065 + $0x28] sm:$0xff]
      %v1072 = vld [vmem:[%s1065 + $0x30] sm:$0xff]
      %v1073 = vld [vmem:[%s1065 + $0x38] sm:$0xff]
      %v1074 = vperm.slane %v230, 0
      %v1075 = vmul.f32 %v1074, %v1066
      %v1076 = vmul.f32 %v1074, %v1067
      %v1077 = vmul.f32 %v1074, %v1068
      %v1078 = vmul.f32 %v1074, %v1069
      %v1079 = vmul.f32 %v1074, %v1070
      %v1080 = vmul.f32 %v1074, %v1071
      %v1081 = vmul.f32 %v1074, %v1072
      %v1082 = vmul.f32 %v1074, %v1073
      %v1083 = vadd.f32 %v1057, %v1075
      %v1084 = vadd.f32 %v1058, %v1076
      %v1085 = vadd.f32 %v1059, %v1077
      %v1086 = vadd.f32 %v1060, %v1078
      %v1087 = vadd.f32 %v1061, %v1079
      %v1088 = vadd.f32 %v1062, %v1080
      %v1089 = vadd.f32 %v1063, %v1081
      %v1090 = vadd.f32 %v1064, %v1082
      %s1091 = scalar_lea.vmem %s211, 2112
      %v1092 = vld [vmem:[%s1091] sm:$0xff]
      %v1093 = vld [vmem:[%s1091 + $0x8] sm:$0xff]
      %v1094 = vld [vmem:[%s1091 + $0x10] sm:$0xff]
      %v1095 = vld [vmem:[%s1091 + $0x18] sm:$0xff]
      %v1096 = vld [vmem:[%s1091 + $0x20] sm:$0xff]
      %v1097 = vld [vmem:[%s1091 + $0x28] sm:$0xff]
      %v1098 = vld [vmem:[%s1091 + $0x30] sm:$0xff]
      %v1099 = vld [vmem:[%s1091 + $0x38] sm:$0xff]
      %v1100 = vperm.slane %v230, 1
      %v1101 = vmul.f32 %v1100, %v1092
      %v1102 = vmul.f32 %v1100, %v1093
      %v1103 = vmul.f32 %v1100, %v1094
      %v1104 = vmul.f32 %v1100, %v1095
      %v1105 = vmul.f32 %v1100, %v1096
      %v1106 = vmul.f32 %v1100, %v1097
      %v1107 = vmul.f32 %v1100, %v1098
      %v1108 = vmul.f32 %v1100, %v1099
      %v1109 = vadd.f32 %v1083, %v1101
      %v1110 = vadd.f32 %v1084, %v1102
      %v1111 = vadd.f32 %v1085, %v1103
      %v1112 = vadd.f32 %v1086, %v1104
      %v1113 = vadd.f32 %v1087, %v1105
      %v1114 = vadd.f32 %v1088, %v1106
      %v1115 = vadd.f32 %v1089, %v1107
      %v1116 = vadd.f32 %v1090, %v1108
      %s1117 = scalar_lea.vmem %s211, 2176
      %v1118 = vld [vmem:[%s1117] sm:$0xff]
      %v1119 = vld [vmem:[%s1117 + $0x8] sm:$0xff]
      %v1120 = vld [vmem:[%s1117 + $0x10] sm:$0xff]
      %v1121 = vld [vmem:[%s1117 + $0x18] sm:$0xff]
      %v1122 = vld [vmem:[%s1117 + $0x20] sm:$0xff]
      %v1123 = vld [vmem:[%s1117 + $0x28] sm:$0xff]
      %v1124 = vld [vmem:[%s1117 + $0x30] sm:$0xff]
      %v1125 = vld [vmem:[%s1117 + $0x38] sm:$0xff]
      %v1126 = vperm.slane %v230, 2
      %v1127 = vmul.f32 %v1126, %v1118
      %v1128 = vmul.f32 %v1126, %v1119
      %v1129 = vmul.f32 %v1126, %v1120
      %v1130 = vmul.f32 %v1126, %v1121
      %v1131 = vmul.f32 %v1126, %v1122
      %v1132 = vmul.f32 %v1126, %v1123
      %v1133 = vmul.f32 %v1126, %v1124
      %v1134 = vmul.f32 %v1126, %v1125
      %v1135 = vadd.f32 %v1109, %v1127
      %v1136 = vadd.f32 %v1110, %v1128
      %v1137 = vadd.f32 %v1111, %v1129
      %v1138 = vadd.f32 %v1112, %v1130
      %v1139 = vadd.f32 %v1113, %v1131
      %v1140 = vadd.f32 %v1114, %v1132
      %v1141 = vadd.f32 %v1115, %v1133
      %v1142 = vadd.f32 %v1116, %v1134
      %s1143 = scalar_lea.vmem %s211, 2240
      %v1144 = vld [vmem:[%s1143] sm:$0xff]
      %v1145 = vld [vmem:[%s1143 + $0x8] sm:$0xff]
      %v1146 = vld [vmem:[%s1143 + $0x10] sm:$0xff]
      %v1147 = vld [vmem:[%s1143 + $0x18] sm:$0xff]
      %v1148 = vld [vmem:[%s1143 + $0x20] sm:$0xff]
      %v1149 = vld [vmem:[%s1143 + $0x28] sm:$0xff]
      %v1150 = vld [vmem:[%s1143 + $0x30] sm:$0xff]
      %v1151 = vld [vmem:[%s1143 + $0x38] sm:$0xff]
      %v1152 = vperm.slane %v230, 3
      %v1153 = vmul.f32 %v1152, %v1144
      %v1154 = vmul.f32 %v1152, %v1145
      %v1155 = vmul.f32 %v1152, %v1146
      %v1156 = vmul.f32 %v1152, %v1147
      %v1157 = vmul.f32 %v1152, %v1148
      %v1158 = vmul.f32 %v1152, %v1149
      %v1159 = vmul.f32 %v1152, %v1150
      %v1160 = vmul.f32 %v1152, %v1151
      %v1161 = vadd.f32 %v1135, %v1153
      %v1162 = vadd.f32 %v1136, %v1154
      %v1163 = vadd.f32 %v1137, %v1155
      %v1164 = vadd.f32 %v1138, %v1156
      %v1165 = vadd.f32 %v1139, %v1157
      %v1166 = vadd.f32 %v1140, %v1158
      %v1167 = vadd.f32 %v1141, %v1159
      %v1168 = vadd.f32 %v1142, %v1160
      %s1169 = scalar_lea.vmem %s211, 2304
      %v1170 = vld [vmem:[%s1169] sm:$0xff]
      %v1171 = vld [vmem:[%s1169 + $0x8] sm:$0xff]
      %v1172 = vld [vmem:[%s1169 + $0x10] sm:$0xff]
      %v1173 = vld [vmem:[%s1169 + $0x18] sm:$0xff]
      %v1174 = vld [vmem:[%s1169 + $0x20] sm:$0xff]
      %v1175 = vld [vmem:[%s1169 + $0x28] sm:$0xff]
      %v1176 = vld [vmem:[%s1169 + $0x30] sm:$0xff]
      %v1177 = vld [vmem:[%s1169 + $0x38] sm:$0xff]
      %v1178 = vperm.slane %v230, 4
      %v1179 = vmul.f32 %v1178, %v1170
      %v1180 = vmul.f32 %v1178, %v1171
      %v1181 = vmul.f32 %v1178, %v1172
      %v1182 = vmul.f32 %v1178, %v1173
      %v1183 = vmul.f32 %v1178, %v1174
      %v1184 = vmul.f32 %v1178, %v1175
      %v1185 = vmul.f32 %v1178, %v1176
      %v1186 = vmul.f32 %v1178, %v1177
      %v1187 = vadd.f32 %v1161, %v1179
      %v1188 = vadd.f32 %v1162, %v1180
      %v1189 = vadd.f32 %v1163, %v1181
      %v1190 = vadd.f32 %v1164, %v1182
      %v1191 = vadd.f32 %v1165, %v1183
      %v1192 = vadd.f32 %v1166, %v1184
      %v1193 = vadd.f32 %v1167, %v1185
      %v1194 = vadd.f32 %v1168, %v1186
      %s1195 = scalar_lea.vmem %s211, 2368
      %v1196 = vld [vmem:[%s1195] sm:$0xff]
      %v1197 = vld [vmem:[%s1195 + $0x8] sm:$0xff]
      %v1198 = vld [vmem:[%s1195 + $0x10] sm:$0xff]
      %v1199 = vld [vmem:[%s1195 + $0x18] sm:$0xff]
      %v1200 = vld [vmem:[%s1195 + $0x20] sm:$0xff]
      %v1201 = vld [vmem:[%s1195 + $0x28] sm:$0xff]
      %v1202 = vld [vmem:[%s1195 + $0x30] sm:$0xff]
      %v1203 = vld [vmem:[%s1195 + $0x38] sm:$0xff]
      %v1204 = vperm.slane %v230, 5
      %v1205 = vmul.f32 %v1204, %v1196
      %v1206 = vmul.f32 %v1204, %v1197
      %v1207 = vmul.f32 %v1204, %v1198
      %v1208 = vmul.f32 %v1204, %v1199
      %v1209 = vmul.f32 %v1204, %v1200
      %v1210 = vmul.f32 %v1204, %v1201
      %v1211 = vmul.f32 %v1204, %v1202
      %v1212 = vmul.f32 %v1204, %v1203
      %v1213 = vadd.f32 %v1187, %v1205
      %v1214 = vadd.f32 %v1188, %v1206
      %v1215 = vadd.f32 %v1189, %v1207
      %v1216 = vadd.f32 %v1190, %v1208
      %v1217 = vadd.f32 %v1191, %v1209
      %v1218 = vadd.f32 %v1192, %v1210
      %v1219 = vadd.f32 %v1193, %v1211
      %v1220 = vadd.f32 %v1194, %v1212
      %s1221 = scalar_lea.vmem %s211, 2432
      %v1222 = vld [vmem:[%s1221] sm:$0xff]
      %v1223 = vld [vmem:[%s1221 + $0x8] sm:$0xff]
      %v1224 = vld [vmem:[%s1221 + $0x10] sm:$0xff]
      %v1225 = vld [vmem:[%s1221 + $0x18] sm:$0xff]
      %v1226 = vld [vmem:[%s1221 + $0x20] sm:$0xff]
      %v1227 = vld [vmem:[%s1221 + $0x28] sm:$0xff]
      %v1228 = vld [vmem:[%s1221 + $0x30] sm:$0xff]
      %v1229 = vld [vmem:[%s1221 + $0x38] sm:$0xff]
      %v1230 = vperm.slane %v230, 6
      %v1231 = vmul.f32 %v1230, %v1222
      %v1232 = vmul.f32 %v1230, %v1223
      %v1233 = vmul.f32 %v1230, %v1224
      %v1234 = vmul.f32 %v1230, %v1225
      %v1235 = vmul.f32 %v1230, %v1226
      %v1236 = vmul.f32 %v1230, %v1227
      %v1237 = vmul.f32 %v1230, %v1228
      %v1238 = vmul.f32 %v1230, %v1229
      %v1239 = vadd.f32 %v1213, %v1231
      %v1240 = vadd.f32 %v1214, %v1232
      %v1241 = vadd.f32 %v1215, %v1233
      %v1242 = vadd.f32 %v1216, %v1234
      %v1243 = vadd.f32 %v1217, %v1235
      %v1244 = vadd.f32 %v1218, %v1236
      %v1245 = vadd.f32 %v1219, %v1237
      %v1246 = vadd.f32 %v1220, %v1238
      %s1247 = scalar_lea.vmem %s211, 2496
      %v1248 = vld [vmem:[%s1247] sm:$0xff]
      %v1249 = vld [vmem:[%s1247 + $0x8] sm:$0xff]
      %v1250 = vld [vmem:[%s1247 + $0x10] sm:$0xff]
      %v1251 = vld [vmem:[%s1247 + $0x18] sm:$0xff]
      %v1252 = vld [vmem:[%s1247 + $0x20] sm:$0xff]
      %v1253 = vld [vmem:[%s1247 + $0x28] sm:$0xff]
      %v1254 = vld [vmem:[%s1247 + $0x30] sm:$0xff]
      %v1255 = vld [vmem:[%s1247 + $0x38] sm:$0xff]
      %v1256 = vperm.slane %v230, 7
      %v1257 = vmul.f32 %v1256, %v1248
      %v1258 = vmul.f32 %v1256, %v1249
      %v1259 = vmul.f32 %v1256, %v1250
      %v1260 = vmul.f32 %v1256, %v1251
      %v1261 = vmul.f32 %v1256, %v1252
      %v1262 = vmul.f32 %v1256, %v1253
      %v1263 = vmul.f32 %v1256, %v1254
      %v1264 = vmul.f32 %v1256, %v1255
      %v1265 = vadd.f32 %v1239, %v1257
      %v1266 = vadd.f32 %v1240, %v1258
      %v1267 = vadd.f32 %v1241, %v1259
      %v1268 = vadd.f32 %v1242, %v1260
      %v1269 = vadd.f32 %v1243, %v1261
      %v1270 = vadd.f32 %v1244, %v1262
      %v1271 = vadd.f32 %v1245, %v1263
      %v1272 = vadd.f32 %v1246, %v1264
      %s1273 = scalar_lea.vmem %s211, 2560
      %v1274 = vld [vmem:[%s1273] sm:$0xff]
      %v1275 = vld [vmem:[%s1273 + $0x8] sm:$0xff]
      %v1276 = vld [vmem:[%s1273 + $0x10] sm:$0xff]
      %v1277 = vld [vmem:[%s1273 + $0x18] sm:$0xff]
      %v1278 = vld [vmem:[%s1273 + $0x20] sm:$0xff]
      %v1279 = vld [vmem:[%s1273 + $0x28] sm:$0xff]
      %v1280 = vld [vmem:[%s1273 + $0x30] sm:$0xff]
      %v1281 = vld [vmem:[%s1273 + $0x38] sm:$0xff]
      %v1282 = vperm.slane %v231, 0
      %v1283 = vmul.f32 %v1282, %v1274
      %v1284 = vmul.f32 %v1282, %v1275
      %v1285 = vmul.f32 %v1282, %v1276
      %v1286 = vmul.f32 %v1282, %v1277
      %v1287 = vmul.f32 %v1282, %v1278
      %v1288 = vmul.f32 %v1282, %v1279
      %v1289 = vmul.f32 %v1282, %v1280
      %v1290 = vmul.f32 %v1282, %v1281
      %v1291 = vadd.f32 %v1265, %v1283
      %v1292 = vadd.f32 %v1266, %v1284
      %v1293 = vadd.f32 %v1267, %v1285
      %v1294 = vadd.f32 %v1268, %v1286
      %v1295 = vadd.f32 %v1269, %v1287
      %v1296 = vadd.f32 %v1270, %v1288
      %v1297 = vadd.f32 %v1271, %v1289
      %v1298 = vadd.f32 %v1272, %v1290
      %s1299 = scalar_lea.vmem %s211, 2624
      %v1300 = vld [vmem:[%s1299] sm:$0xff]
      %v1301 = vld [vmem:[%s1299 + $0x8] sm:$0xff]
      %v1302 = vld [vmem:[%s1299 + $0x10] sm:$0xff]
      %v1303 = vld [vmem:[%s1299 + $0x18] sm:$0xff]
      %v1304 = vld [vmem:[%s1299 + $0x20] sm:$0xff]
      %v1305 = vld [vmem:[%s1299 + $0x28] sm:$0xff]
      %v1306 = vld [vmem:[%s1299 + $0x30] sm:$0xff]
      %v1307 = vld [vmem:[%s1299 + $0x38] sm:$0xff]
      %v1308 = vperm.slane %v231, 1
      %v1309 = vmul.f32 %v1308, %v1300
      %v1310 = vmul.f32 %v1308, %v1301
      %v1311 = vmul.f32 %v1308, %v1302
      %v1312 = vmul.f32 %v1308, %v1303
      %v1313 = vmul.f32 %v1308, %v1304
      %v1314 = vmul.f32 %v1308, %v1305
      %v1315 = vmul.f32 %v1308, %v1306
      %v1316 = vmul.f32 %v1308, %v1307
      %v1317 = vadd.f32 %v1291, %v1309
      %v1318 = vadd.f32 %v1292, %v1310
      %v1319 = vadd.f32 %v1293, %v1311
      %v1320 = vadd.f32 %v1294, %v1312
      %v1321 = vadd.f32 %v1295, %v1313
      %v1322 = vadd.f32 %v1296, %v1314
      %v1323 = vadd.f32 %v1297, %v1315
      %v1324 = vadd.f32 %v1298, %v1316
      %s1325 = scalar_lea.vmem %s211, 2688
      %v1326 = vld [vmem:[%s1325] sm:$0xff]
      %v1327 = vld [vmem:[%s1325 + $0x8] sm:$0xff]
      %v1328 = vld [vmem:[%s1325 + $0x10] sm:$0xff]
      %v1329 = vld [vmem:[%s1325 + $0x18] sm:$0xff]
      %v1330 = vld [vmem:[%s1325 + $0x20] sm:$0xff]
      %v1331 = vld [vmem:[%s1325 + $0x28] sm:$0xff]
      %v1332 = vld [vmem:[%s1325 + $0x30] sm:$0xff]
      %v1333 = vld [vmem:[%s1325 + $0x38] sm:$0xff]
      %v1334 = vperm.slane %v231, 2
      %v1335 = vmul.f32 %v1334, %v1326
      %v1336 = vmul.f32 %v1334, %v1327
      %v1337 = vmul.f32 %v1334, %v1328
      %v1338 = vmul.f32 %v1334, %v1329
      %v1339 = vmul.f32 %v1334, %v1330
      %v1340 = vmul.f32 %v1334, %v1331
      %v1341 = vmul.f32 %v1334, %v1332
      %v1342 = vmul.f32 %v1334, %v1333
      %v1343 = vadd.f32 %v1317, %v1335
      %v1344 = vadd.f32 %v1318, %v1336
      %v1345 = vadd.f32 %v1319, %v1337
      %v1346 = vadd.f32 %v1320, %v1338
      %v1347 = vadd.f32 %v1321, %v1339
      %v1348 = vadd.f32 %v1322, %v1340
      %v1349 = vadd.f32 %v1323, %v1341
      %v1350 = vadd.f32 %v1324, %v1342
      %s1351 = scalar_lea.vmem %s211, 2752
      %v1352 = vld [vmem:[%s1351] sm:$0xff]
      %v1353 = vld [vmem:[%s1351 + $0x8] sm:$0xff]
      %v1354 = vld [vmem:[%s1351 + $0x10] sm:$0xff]
      %v1355 = vld [vmem:[%s1351 + $0x18] sm:$0xff]
      %v1356 = vld [vmem:[%s1351 + $0x20] sm:$0xff]
      %v1357 = vld [vmem:[%s1351 + $0x28] sm:$0xff]
      %v1358 = vld [vmem:[%s1351 + $0x30] sm:$0xff]
      %v1359 = vld [vmem:[%s1351 + $0x38] sm:$0xff]
      %v1360 = vperm.slane %v231, 3
      %v1361 = vmul.f32 %v1360, %v1352
      %v1362 = vmul.f32 %v1360, %v1353
      %v1363 = vmul.f32 %v1360, %v1354
      %v1364 = vmul.f32 %v1360, %v1355
      %v1365 = vmul.f32 %v1360, %v1356
      %v1366 = vmul.f32 %v1360, %v1357
      %v1367 = vmul.f32 %v1360, %v1358
      %v1368 = vmul.f32 %v1360, %v1359
      %v1369 = vadd.f32 %v1343, %v1361
      %v1370 = vadd.f32 %v1344, %v1362
      %v1371 = vadd.f32 %v1345, %v1363
      %v1372 = vadd.f32 %v1346, %v1364
      %v1373 = vadd.f32 %v1347, %v1365
      %v1374 = vadd.f32 %v1348, %v1366
      %v1375 = vadd.f32 %v1349, %v1367
      %v1376 = vadd.f32 %v1350, %v1368
      %s1377 = scalar_lea.vmem %s211, 2816
      %v1378 = vld [vmem:[%s1377] sm:$0xff]
      %v1379 = vld [vmem:[%s1377 + $0x8] sm:$0xff]
      %v1380 = vld [vmem:[%s1377 + $0x10] sm:$0xff]
      %v1381 = vld [vmem:[%s1377 + $0x18] sm:$0xff]
      %v1382 = vld [vmem:[%s1377 + $0x20] sm:$0xff]
      %v1383 = vld [vmem:[%s1377 + $0x28] sm:$0xff]
      %v1384 = vld [vmem:[%s1377 + $0x30] sm:$0xff]
      %v1385 = vld [vmem:[%s1377 + $0x38] sm:$0xff]
      %v1386 = vperm.slane %v231, 4
      %v1387 = vmul.f32 %v1386, %v1378
      %v1388 = vmul.f32 %v1386, %v1379
      %v1389 = vmul.f32 %v1386, %v1380
      %v1390 = vmul.f32 %v1386, %v1381
      %v1391 = vmul.f32 %v1386, %v1382
      %v1392 = vmul.f32 %v1386, %v1383
      %v1393 = vmul.f32 %v1386, %v1384
      %v1394 = vmul.f32 %v1386, %v1385
      %v1395 = vadd.f32 %v1369, %v1387
      %v1396 = vadd.f32 %v1370, %v1388
      %v1397 = vadd.f32 %v1371, %v1389
      %v1398 = vadd.f32 %v1372, %v1390
      %v1399 = vadd.f32 %v1373, %v1391
      %v1400 = vadd.f32 %v1374, %v1392
      %v1401 = vadd.f32 %v1375, %v1393
      %v1402 = vadd.f32 %v1376, %v1394
      %s1403 = scalar_lea.vmem %s211, 2880
      %v1404 = vld [vmem:[%s1403] sm:$0xff]
      %v1405 = vld [vmem:[%s1403 + $0x8] sm:$0xff]
      %v1406 = vld [vmem:[%s1403 + $0x10] sm:$0xff]
      %v1407 = vld [vmem:[%s1403 + $0x18] sm:$0xff]
      %v1408 = vld [vmem:[%s1403 + $0x20] sm:$0xff]
      %v1409 = vld [vmem:[%s1403 + $0x28] sm:$0xff]
      %v1410 = vld [vmem:[%s1403 + $0x30] sm:$0xff]
      %v1411 = vld [vmem:[%s1403 + $0x38] sm:$0xff]
      %v1412 = vperm.slane %v231, 5
      %v1413 = vmul.f32 %v1412, %v1404
      %v1414 = vmul.f32 %v1412, %v1405
      %v1415 = vmul.f32 %v1412, %v1406
      %v1416 = vmul.f32 %v1412, %v1407
      %v1417 = vmul.f32 %v1412, %v1408
      %v1418 = vmul.f32 %v1412, %v1409
      %v1419 = vmul.f32 %v1412, %v1410
      %v1420 = vmul.f32 %v1412, %v1411
      %v1421 = vadd.f32 %v1395, %v1413
      %v1422 = vadd.f32 %v1396, %v1414
      %v1423 = vadd.f32 %v1397, %v1415
      %v1424 = vadd.f32 %v1398, %v1416
      %v1425 = vadd.f32 %v1399, %v1417
      %v1426 = vadd.f32 %v1400, %v1418
      %v1427 = vadd.f32 %v1401, %v1419
      %v1428 = vadd.f32 %v1402, %v1420
      %s1429 = scalar_lea.vmem %s211, 2944
      %v1430 = vld [vmem:[%s1429] sm:$0xff]
      %v1431 = vld [vmem:[%s1429 + $0x8] sm:$0xff]
      %v1432 = vld [vmem:[%s1429 + $0x10] sm:$0xff]
      %v1433 = vld [vmem:[%s1429 + $0x18] sm:$0xff]
      %v1434 = vld [vmem:[%s1429 + $0x20] sm:$0xff]
      %v1435 = vld [vmem:[%s1429 + $0x28] sm:$0xff]
      %v1436 = vld [vmem:[%s1429 + $0x30] sm:$0xff]
      %v1437 = vld [vmem:[%s1429 + $0x38] sm:$0xff]
      %v1438 = vperm.slane %v231, 6
      %v1439 = vmul.f32 %v1438, %v1430
      %v1440 = vmul.f32 %v1438, %v1431
      %v1441 = vmul.f32 %v1438, %v1432
      %v1442 = vmul.f32 %v1438, %v1433
      %v1443 = vmul.f32 %v1438, %v1434
      %v1444 = vmul.f32 %v1438, %v1435
      %v1445 = vmul.f32 %v1438, %v1436
      %v1446 = vmul.f32 %v1438, %v1437
      %v1447 = vadd.f32 %v1421, %v1439
      %v1448 = vadd.f32 %v1422, %v1440
      %v1449 = vadd.f32 %v1423, %v1441
      %v1450 = vadd.f32 %v1424, %v1442
      %v1451 = vadd.f32 %v1425, %v1443
      %v1452 = vadd.f32 %v1426, %v1444
      %v1453 = vadd.f32 %v1427, %v1445
      %v1454 = vadd.f32 %v1428, %v1446
      %s1455 = scalar_lea.vmem %s211, 3008
      %v1456 = vld [vmem:[%s1455] sm:$0xff]
      %v1457 = vld [vmem:[%s1455 + $0x8] sm:$0xff]
      %v1458 = vld [vmem:[%s1455 + $0x10] sm:$0xff]
      %v1459 = vld [vmem:[%s1455 + $0x18] sm:$0xff]
      %v1460 = vld [vmem:[%s1455 + $0x20] sm:$0xff]
      %v1461 = vld [vmem:[%s1455 + $0x28] sm:$0xff]
      %v1462 = vld [vmem:[%s1455 + $0x30] sm:$0xff]
      %v1463 = vld [vmem:[%s1455 + $0x38] sm:$0xff]
      %v1464 = vperm.slane %v231, 7
      %v1465 = vmul.f32 %v1464, %v1456
      %v1466 = vmul.f32 %v1464, %v1457
      %v1467 = vmul.f32 %v1464, %v1458
      %v1468 = vmul.f32 %v1464, %v1459
      %v1469 = vmul.f32 %v1464, %v1460
      %v1470 = vmul.f32 %v1464, %v1461
      %v1471 = vmul.f32 %v1464, %v1462
      %v1472 = vmul.f32 %v1464, %v1463
      %v1473 = vadd.f32 %v1447, %v1465
      %v1474 = vadd.f32 %v1448, %v1466
      %v1475 = vadd.f32 %v1449, %v1467
      %v1476 = vadd.f32 %v1450, %v1468
      %v1477 = vadd.f32 %v1451, %v1469
      %v1478 = vadd.f32 %v1452, %v1470
      %v1479 = vadd.f32 %v1453, %v1471
      %v1480 = vadd.f32 %v1454, %v1472
      %s1481 = scalar_lea.vmem %s211, 3072
      %v1482 = vld [vmem:[%s1481] sm:$0xff]
      %v1483 = vld [vmem:[%s1481 + $0x8] sm:$0xff]
      %v1484 = vld [vmem:[%s1481 + $0x10] sm:$0xff]
      %v1485 = vld [vmem:[%s1481 + $0x18] sm:$0xff]
      %v1486 = vld [vmem:[%s1481 + $0x20] sm:$0xff]
      %v1487 = vld [vmem:[%s1481 + $0x28] sm:$0xff]
      %v1488 = vld [vmem:[%s1481 + $0x30] sm:$0xff]
      %v1489 = vld [vmem:[%s1481 + $0x38] sm:$0xff]
      %v1490 = vperm.slane %v232, 0
      %v1491 = vmul.f32 %v1490, %v1482
      %v1492 = vmul.f32 %v1490, %v1483
      %v1493 = vmul.f32 %v1490, %v1484
      %v1494 = vmul.f32 %v1490, %v1485
      %v1495 = vmul.f32 %v1490, %v1486
      %v1496 = vmul.f32 %v1490, %v1487
      %v1497 = vmul.f32 %v1490, %v1488
      %v1498 = vmul.f32 %v1490, %v1489
      %v1499 = vadd.f32 %v1473, %v1491
      %v1500 = vadd.f32 %v1474, %v1492
      %v1501 = vadd.f32 %v1475, %v1493
      %v1502 = vadd.f32 %v1476, %v1494
      %v1503 = vadd.f32 %v1477, %v1495
      %v1504 = vadd.f32 %v1478, %v1496
      %v1505 = vadd.f32 %v1479, %v1497
      %v1506 = vadd.f32 %v1480, %v1498
      %s1507 = scalar_lea.vmem %s211, 3136
      %v1508 = vld [vmem:[%s1507] sm:$0xff]
      %v1509 = vld [vmem:[%s1507 + $0x8] sm:$0xff]
      %v1510 = vld [vmem:[%s1507 + $0x10] sm:$0xff]
      %v1511 = vld [vmem:[%s1507 + $0x18] sm:$0xff]
      %v1512 = vld [vmem:[%s1507 + $0x20] sm:$0xff]
      %v1513 = vld [vmem:[%s1507 + $0x28] sm:$0xff]
      %v1514 = vld [vmem:[%s1507 + $0x30] sm:$0xff]
      %v1515 = vld [vmem:[%s1507 + $0x38] sm:$0xff]
      %v1516 = vperm.slane %v232, 1
      %v1517 = vmul.f32 %v1516, %v1508
      %v1518 = vmul.f32 %v1516, %v1509
      %v1519 = vmul.f32 %v1516, %v1510
      %v1520 = vmul.f32 %v1516, %v1511
      %v1521 = vmul.f32 %v1516, %v1512
      %v1522 = vmul.f32 %v1516, %v1513
      %v1523 = vmul.f32 %v1516, %v1514
      %v1524 = vmul.f32 %v1516, %v1515
      %v1525 = vadd.f32 %v1499, %v1517
      %v1526 = vadd.f32 %v1500, %v1518
      %v1527 = vadd.f32 %v1501, %v1519
      %v1528 = vadd.f32 %v1502, %v1520
      %v1529 = vadd.f32 %v1503, %v1521
      %v1530 = vadd.f32 %v1504, %v1522
      %v1531 = vadd.f32 %v1505, %v1523
      %v1532 = vadd.f32 %v1506, %v1524
      %s1533 = scalar_lea.vmem %s211, 3200
      %v1534 = vld [vmem:[%s1533] sm:$0xff]
      %v1535 = vld [vmem:[%s1533 + $0x8] sm:$0xff]
      %v1536 = vld [vmem:[%s1533 + $0x10] sm:$0xff]
      %v1537 = vld [vmem:[%s1533 + $0x18] sm:$0xff]
      %v1538 = vld [vmem:[%s1533 + $0x20] sm:$0xff]
      %v1539 = vld [vmem:[%s1533 + $0x28] sm:$0xff]
      %v1540 = vld [vmem:[%s1533 + $0x30] sm:$0xff]
      %v1541 = vld [vmem:[%s1533 + $0x38] sm:$0xff]
      %v1542 = vperm.slane %v232, 2
      %v1543 = vmul.f32 %v1542, %v1534
      %v1544 = vmul.f32 %v1542, %v1535
      %v1545 = vmul.f32 %v1542, %v1536
      %v1546 = vmul.f32 %v1542, %v1537
      %v1547 = vmul.f32 %v1542, %v1538
      %v1548 = vmul.f32 %v1542, %v1539
      %v1549 = vmul.f32 %v1542, %v1540
      %v1550 = vmul.f32 %v1542, %v1541
      %v1551 = vadd.f32 %v1525, %v1543
      %v1552 = vadd.f32 %v1526, %v1544
      %v1553 = vadd.f32 %v1527, %v1545
      %v1554 = vadd.f32 %v1528, %v1546
      %v1555 = vadd.f32 %v1529, %v1547
      %v1556 = vadd.f32 %v1530, %v1548
      %v1557 = vadd.f32 %v1531, %v1549
      %v1558 = vadd.f32 %v1532, %v1550
      %s1559 = scalar_lea.vmem %s211, 3264
      %v1560 = vld [vmem:[%s1559] sm:$0xff]
      %v1561 = vld [vmem:[%s1559 + $0x8] sm:$0xff]
      %v1562 = vld [vmem:[%s1559 + $0x10] sm:$0xff]
      %v1563 = vld [vmem:[%s1559 + $0x18] sm:$0xff]
      %v1564 = vld [vmem:[%s1559 + $0x20] sm:$0xff]
      %v1565 = vld [vmem:[%s1559 + $0x28] sm:$0xff]
      %v1566 = vld [vmem:[%s1559 + $0x30] sm:$0xff]
      %v1567 = vld [vmem:[%s1559 + $0x38] sm:$0xff]
      %v1568 = vperm.slane %v232, 3
      %v1569 = vmul.f32 %v1568, %v1560
      %v1570 = vmul.f32 %v1568, %v1561
      %v1571 = vmul.f32 %v1568, %v1562
      %v1572 = vmul.f32 %v1568, %v1563
      %v1573 = vmul.f32 %v1568, %v1564
      %v1574 = vmul.f32 %v1568, %v1565
      %v1575 = vmul.f32 %v1568, %v1566
      %v1576 = vmul.f32 %v1568, %v1567
      %v1577 = vadd.f32 %v1551, %v1569
      %v1578 = vadd.f32 %v1552, %v1570
      %v1579 = vadd.f32 %v1553, %v1571
      %v1580 = vadd.f32 %v1554, %v1572
      %v1581 = vadd.f32 %v1555, %v1573
      %v1582 = vadd.f32 %v1556, %v1574
      %v1583 = vadd.f32 %v1557, %v1575
      %v1584 = vadd.f32 %v1558, %v1576
      %s1585 = scalar_lea.vmem %s211, 3328
      %v1586 = vld [vmem:[%s1585] sm:$0xff]
      %v1587 = vld [vmem:[%s1585 + $0x8] sm:$0xff]
      %v1588 = vld [vmem:[%s1585 + $0x10] sm:$0xff]
      %v1589 = vld [vmem:[%s1585 + $0x18] sm:$0xff]
      %v1590 = vld [vmem:[%s1585 + $0x20] sm:$0xff]
      %v1591 = vld [vmem:[%s1585 + $0x28] sm:$0xff]
      %v1592 = vld [vmem:[%s1585 + $0x30] sm:$0xff]
      %v1593 = vld [vmem:[%s1585 + $0x38] sm:$0xff]
      %v1594 = vperm.slane %v232, 4
      %v1595 = vmul.f32 %v1594, %v1586
      %v1596 = vmul.f32 %v1594, %v1587
      %v1597 = vmul.f32 %v1594, %v1588
      %v1598 = vmul.f32 %v1594, %v1589
      %v1599 = vmul.f32 %v1594, %v1590
      %v1600 = vmul.f32 %v1594, %v1591
      %v1601 = vmul.f32 %v1594, %v1592
      %v1602 = vmul.f32 %v1594, %v1593
      %v1603 = vadd.f32 %v1577, %v1595
      %v1604 = vadd.f32 %v1578, %v1596
      %v1605 = vadd.f32 %v1579, %v1597
      %v1606 = vadd.f32 %v1580, %v1598
      %v1607 = vadd.f32 %v1581, %v1599
      %v1608 = vadd.f32 %v1582, %v1600
      %v1609 = vadd.f32 %v1583, %v1601
      %v1610 = vadd.f32 %v1584, %v1602
      %s1611 = scalar_lea.vmem %s211, 3392
      %v1612 = vld [vmem:[%s1611] sm:$0xff]
      %v1613 = vld [vmem:[%s1611 + $0x8] sm:$0xff]
      %v1614 = vld [vmem:[%s1611 + $0x10] sm:$0xff]
      %v1615 = vld [vmem:[%s1611 + $0x18] sm:$0xff]
      %v1616 = vld [vmem:[%s1611 + $0x20] sm:$0xff]
      %v1617 = vld [vmem:[%s1611 + $0x28] sm:$0xff]
      %v1618 = vld [vmem:[%s1611 + $0x30] sm:$0xff]
      %v1619 = vld [vmem:[%s1611 + $0x38] sm:$0xff]
      %v1620 = vperm.slane %v232, 5
      %v1621 = vmul.f32 %v1620, %v1612
      %v1622 = vmul.f32 %v1620, %v1613
      %v1623 = vmul.f32 %v1620, %v1614
      %v1624 = vmul.f32 %v1620, %v1615
      %v1625 = vmul.f32 %v1620, %v1616
      %v1626 = vmul.f32 %v1620, %v1617
      %v1627 = vmul.f32 %v1620, %v1618
      %v1628 = vmul.f32 %v1620, %v1619
      %v1629 = vadd.f32 %v1603, %v1621
      %v1630 = vadd.f32 %v1604, %v1622
      %v1631 = vadd.f32 %v1605, %v1623
      %v1632 = vadd.f32 %v1606, %v1624
      %v1633 = vadd.f32 %v1607, %v1625
      %v1634 = vadd.f32 %v1608, %v1626
      %v1635 = vadd.f32 %v1609, %v1627
      %v1636 = vadd.f32 %v1610, %v1628
      %s1637 = scalar_lea.vmem %s211, 3456
      %v1638 = vld [vmem:[%s1637] sm:$0xff]
      %v1639 = vld [vmem:[%s1637 + $0x8] sm:$0xff]
      %v1640 = vld [vmem:[%s1637 + $0x10] sm:$0xff]
      %v1641 = vld [vmem:[%s1637 + $0x18] sm:$0xff]
      %v1642 = vld [vmem:[%s1637 + $0x20] sm:$0xff]
      %v1643 = vld [vmem:[%s1637 + $0x28] sm:$0xff]
      %v1644 = vld [vmem:[%s1637 + $0x30] sm:$0xff]
      %v1645 = vld [vmem:[%s1637 + $0x38] sm:$0xff]
      %v1646 = vperm.slane %v232, 6
      %v1647 = vmul.f32 %v1646, %v1638
      %v1648 = vmul.f32 %v1646, %v1639
      %v1649 = vmul.f32 %v1646, %v1640
      %v1650 = vmul.f32 %v1646, %v1641
      %v1651 = vmul.f32 %v1646, %v1642
      %v1652 = vmul.f32 %v1646, %v1643
      %v1653 = vmul.f32 %v1646, %v1644
      %v1654 = vmul.f32 %v1646, %v1645
      %v1655 = vadd.f32 %v1629, %v1647
      %v1656 = vadd.f32 %v1630, %v1648
      %v1657 = vadd.f32 %v1631, %v1649
      %v1658 = vadd.f32 %v1632, %v1650
      %v1659 = vadd.f32 %v1633, %v1651
      %v1660 = vadd.f32 %v1634, %v1652
      %v1661 = vadd.f32 %v1635, %v1653
      %v1662 = vadd.f32 %v1636, %v1654
      %s1663 = scalar_lea.vmem %s211, 3520
      %v1664 = vld [vmem:[%s1663] sm:$0xff]
      %v1665 = vld [vmem:[%s1663 + $0x8] sm:$0xff]
      %v1666 = vld [vmem:[%s1663 + $0x10] sm:$0xff]
      %v1667 = vld [vmem:[%s1663 + $0x18] sm:$0xff]
      %v1668 = vld [vmem:[%s1663 + $0x20] sm:$0xff]
      %v1669 = vld [vmem:[%s1663 + $0x28] sm:$0xff]
      %v1670 = vld [vmem:[%s1663 + $0x30] sm:$0xff]
      %v1671 = vld [vmem:[%s1663 + $0x38] sm:$0xff]
      %v1672 = vperm.slane %v232, 7
      %v1673 = vmul.f32 %v1672, %v1664
      %v1674 = vmul.f32 %v1672, %v1665
      %v1675 = vmul.f32 %v1672, %v1666
      %v1676 = vmul.f32 %v1672, %v1667
      %v1677 = vmul.f32 %v1672, %v1668
      %v1678 = vmul.f32 %v1672, %v1669
      %v1679 = vmul.f32 %v1672, %v1670
      %v1680 = vmul.f32 %v1672, %v1671
      %v1681 = vadd.f32 %v1655, %v1673
      %v1682 = vadd.f32 %v1656, %v1674
      %v1683 = vadd.f32 %v1657, %v1675
      %v1684 = vadd.f32 %v1658, %v1676
      %v1685 = vadd.f32 %v1659, %v1677
      %v1686 = vadd.f32 %v1660, %v1678
      %v1687 = vadd.f32 %v1661, %v1679
      %v1688 = vadd.f32 %v1662, %v1680
      %s1689 = scalar_lea.vmem %s211, 3584
      %v1690 = vld [vmem:[%s1689] sm:$0xff]
      %v1691 = vld [vmem:[%s1689 + $0x8] sm:$0xff]
      %v1692 = vld [vmem:[%s1689 + $0x10] sm:$0xff]
      %v1693 = vld [vmem:[%s1689 + $0x18] sm:$0xff]
      %v1694 = vld [vmem:[%s1689 + $0x20] sm:$0xff]
      %v1695 = vld [vmem:[%s1689 + $0x28] sm:$0xff]
      %v1696 = vld [vmem:[%s1689 + $0x30] sm:$0xff]
      %v1697 = vld [vmem:[%s1689 + $0x38] sm:$0xff]
      %v1698 = vperm.slane %v233, 0
      %v1699 = vmul.f32 %v1698, %v1690
      %v1700 = vmul.f32 %v1698, %v1691
      %v1701 = vmul.f32 %v1698, %v1692
      %v1702 = vmul.f32 %v1698, %v1693
      %v1703 = vmul.f32 %v1698, %v1694
      %v1704 = vmul.f32 %v1698, %v1695
      %v1705 = vmul.f32 %v1698, %v1696
      %v1706 = vmul.f32 %v1698, %v1697
      %v1707 = vadd.f32 %v1681, %v1699
      %v1708 = vadd.f32 %v1682, %v1700
      %v1709 = vadd.f32 %v1683, %v1701
      %v1710 = vadd.f32 %v1684, %v1702
      %v1711 = vadd.f32 %v1685, %v1703
      %v1712 = vadd.f32 %v1686, %v1704
      %v1713 = vadd.f32 %v1687, %v1705
      %v1714 = vadd.f32 %v1688, %v1706
      %s1715 = scalar_lea.vmem %s211, 3648
      %v1716 = vld [vmem:[%s1715] sm:$0xff]
      %v1717 = vld [vmem:[%s1715 + $0x8] sm:$0xff]
      %v1718 = vld [vmem:[%s1715 + $0x10] sm:$0xff]
      %v1719 = vld [vmem:[%s1715 + $0x18] sm:$0xff]
      %v1720 = vld [vmem:[%s1715 + $0x20] sm:$0xff]
      %v1721 = vld [vmem:[%s1715 + $0x28] sm:$0xff]
      %v1722 = vld [vmem:[%s1715 + $0x30] sm:$0xff]
      %v1723 = vld [vmem:[%s1715 + $0x38] sm:$0xff]
      %v1724 = vperm.slane %v233, 1
      %v1725 = vmul.f32 %v1724, %v1716
      %v1726 = vmul.f32 %v1724, %v1717
      %v1727 = vmul.f32 %v1724, %v1718
      %v1728 = vmul.f32 %v1724, %v1719
      %v1729 = vmul.f32 %v1724, %v1720
      %v1730 = vmul.f32 %v1724, %v1721
      %v1731 = vmul.f32 %v1724, %v1722
      %v1732 = vmul.f32 %v1724, %v1723
      %v1733 = vadd.f32 %v1707, %v1725
      %v1734 = vadd.f32 %v1708, %v1726
      %v1735 = vadd.f32 %v1709, %v1727
      %v1736 = vadd.f32 %v1710, %v1728
      %v1737 = vadd.f32 %v1711, %v1729
      %v1738 = vadd.f32 %v1712, %v1730
      %v1739 = vadd.f32 %v1713, %v1731
      %v1740 = vadd.f32 %v1714, %v1732
      %s1741 = scalar_lea.vmem %s211, 3712
      %v1742 = vld [vmem:[%s1741] sm:$0xff]
      %v1743 = vld [vmem:[%s1741 + $0x8] sm:$0xff]
      %v1744 = vld [vmem:[%s1741 + $0x10] sm:$0xff]
      %v1745 = vld [vmem:[%s1741 + $0x18] sm:$0xff]
      %v1746 = vld [vmem:[%s1741 + $0x20] sm:$0xff]
      %v1747 = vld [vmem:[%s1741 + $0x28] sm:$0xff]
      %v1748 = vld [vmem:[%s1741 + $0x30] sm:$0xff]
      %v1749 = vld [vmem:[%s1741 + $0x38] sm:$0xff]
      %v1750 = vperm.slane %v233, 2
      %v1751 = vmul.f32 %v1750, %v1742
      %v1752 = vmul.f32 %v1750, %v1743
      %v1753 = vmul.f32 %v1750, %v1744
      %v1754 = vmul.f32 %v1750, %v1745
      %v1755 = vmul.f32 %v1750, %v1746
      %v1756 = vmul.f32 %v1750, %v1747
      %v1757 = vmul.f32 %v1750, %v1748
      %v1758 = vmul.f32 %v1750, %v1749
      %v1759 = vadd.f32 %v1733, %v1751
      %v1760 = vadd.f32 %v1734, %v1752
      %v1761 = vadd.f32 %v1735, %v1753
      %v1762 = vadd.f32 %v1736, %v1754
      %v1763 = vadd.f32 %v1737, %v1755
      %v1764 = vadd.f32 %v1738, %v1756
      %v1765 = vadd.f32 %v1739, %v1757
      %v1766 = vadd.f32 %v1740, %v1758
      %s1767 = scalar_lea.vmem %s211, 3776
      %v1768 = vld [vmem:[%s1767] sm:$0xff]
      %v1769 = vld [vmem:[%s1767 + $0x8] sm:$0xff]
      %v1770 = vld [vmem:[%s1767 + $0x10] sm:$0xff]
      %v1771 = vld [vmem:[%s1767 + $0x18] sm:$0xff]
      %v1772 = vld [vmem:[%s1767 + $0x20] sm:$0xff]
      %v1773 = vld [vmem:[%s1767 + $0x28] sm:$0xff]
      %v1774 = vld [vmem:[%s1767 + $0x30] sm:$0xff]
      %v1775 = vld [vmem:[%s1767 + $0x38] sm:$0xff]
      %v1776 = vperm.slane %v233, 3
      %v1777 = vmul.f32 %v1776, %v1768
      %v1778 = vmul.f32 %v1776, %v1769
      %v1779 = vmul.f32 %v1776, %v1770
      %v1780 = vmul.f32 %v1776, %v1771
      %v1781 = vmul.f32 %v1776, %v1772
      %v1782 = vmul.f32 %v1776, %v1773
      %v1783 = vmul.f32 %v1776, %v1774
      %v1784 = vmul.f32 %v1776, %v1775
      %v1785 = vadd.f32 %v1759, %v1777
      %v1786 = vadd.f32 %v1760, %v1778
      %v1787 = vadd.f32 %v1761, %v1779
      %v1788 = vadd.f32 %v1762, %v1780
      %v1789 = vadd.f32 %v1763, %v1781
      %v1790 = vadd.f32 %v1764, %v1782
      %v1791 = vadd.f32 %v1765, %v1783
      %v1792 = vadd.f32 %v1766, %v1784
      %s1793 = scalar_lea.vmem %s211, 3840
      %v1794 = vld [vmem:[%s1793] sm:$0xff]
      %v1795 = vld [vmem:[%s1793 + $0x8] sm:$0xff]
      %v1796 = vld [vmem:[%s1793 + $0x10] sm:$0xff]
      %v1797 = vld [vmem:[%s1793 + $0x18] sm:$0xff]
      %v1798 = vld [vmem:[%s1793 + $0x20] sm:$0xff]
      %v1799 = vld [vmem:[%s1793 + $0x28] sm:$0xff]
      %v1800 = vld [vmem:[%s1793 + $0x30] sm:$0xff]
      %v1801 = vld [vmem:[%s1793 + $0x38] sm:$0xff]
      %v1802 = vperm.slane %v233, 4
      %v1803 = vmul.f32 %v1802, %v1794
      %v1804 = vmul.f32 %v1802, %v1795
      %v1805 = vmul.f32 %v1802, %v1796
      %v1806 = vmul.f32 %v1802, %v1797
      %v1807 = vmul.f32 %v1802, %v1798
      %v1808 = vmul.f32 %v1802, %v1799
      %v1809 = vmul.f32 %v1802, %v1800
      %v1810 = vmul.f32 %v1802, %v1801
      %v1811 = vadd.f32 %v1785, %v1803
      %v1812 = vadd.f32 %v1786, %v1804
      %v1813 = vadd.f32 %v1787, %v1805
      %v1814 = vadd.f32 %v1788, %v1806
      %v1815 = vadd.f32 %v1789, %v1807
      %v1816 = vadd.f32 %v1790, %v1808
      %v1817 = vadd.f32 %v1791, %v1809
      %v1818 = vadd.f32 %v1792, %v1810
      %s1819 = scalar_lea.vmem %s211, 3904
      %v1820 = vld [vmem:[%s1819] sm:$0xff]
      %v1821 = vld [vmem:[%s1819 + $0x8] sm:$0xff]
      %v1822 = vld [vmem:[%s1819 + $0x10] sm:$0xff]
      %v1823 = vld [vmem:[%s1819 + $0x18] sm:$0xff]
      %v1824 = vld [vmem:[%s1819 + $0x20] sm:$0xff]
      %v1825 = vld [vmem:[%s1819 + $0x28] sm:$0xff]
      %v1826 = vld [vmem:[%s1819 + $0x30] sm:$0xff]
      %v1827 = vld [vmem:[%s1819 + $0x38] sm:$0xff]
      %v1828 = vperm.slane %v233, 5
      %v1829 = vmul.f32 %v1828, %v1820
      %v1830 = vmul.f32 %v1828, %v1821
      %v1831 = vmul.f32 %v1828, %v1822
      %v1832 = vmul.f32 %v1828, %v1823
      %v1833 = vmul.f32 %v1828, %v1824
      %v1834 = vmul.f32 %v1828, %v1825
      %v1835 = vmul.f32 %v1828, %v1826
      %v1836 = vmul.f32 %v1828, %v1827
      %v1837 = vadd.f32 %v1811, %v1829
      %v1838 = vadd.f32 %v1812, %v1830
      %v1839 = vadd.f32 %v1813, %v1831
      %v1840 = vadd.f32 %v1814, %v1832
      %v1841 = vadd.f32 %v1815, %v1833
      %v1842 = vadd.f32 %v1816, %v1834
      %v1843 = vadd.f32 %v1817, %v1835
      %v1844 = vadd.f32 %v1818, %v1836
      %s1845 = scalar_lea.vmem %s211, 3968
      %v1846 = vld [vmem:[%s1845] sm:$0xff]
      %v1847 = vld [vmem:[%s1845 + $0x8] sm:$0xff]
      %v1848 = vld [vmem:[%s1845 + $0x10] sm:$0xff]
      %v1849 = vld [vmem:[%s1845 + $0x18] sm:$0xff]
      %v1850 = vld [vmem:[%s1845 + $0x20] sm:$0xff]
      %v1851 = vld [vmem:[%s1845 + $0x28] sm:$0xff]
      %v1852 = vld [vmem:[%s1845 + $0x30] sm:$0xff]
      %v1853 = vld [vmem:[%s1845 + $0x38] sm:$0xff]
      %v1854 = vperm.slane %v233, 6
      %v1855 = vmul.f32 %v1854, %v1846
      %v1856 = vmul.f32 %v1854, %v1847
      %v1857 = vmul.f32 %v1854, %v1848
      %v1858 = vmul.f32 %v1854, %v1849
      %v1859 = vmul.f32 %v1854, %v1850
      %v1860 = vmul.f32 %v1854, %v1851
      %v1861 = vmul.f32 %v1854, %v1852
      %v1862 = vmul.f32 %v1854, %v1853
      %v1863 = vadd.f32 %v1837, %v1855
      %v1864 = vadd.f32 %v1838, %v1856
      %v1865 = vadd.f32 %v1839, %v1857
      %v1866 = vadd.f32 %v1840, %v1858
      %v1867 = vadd.f32 %v1841, %v1859
      %v1868 = vadd.f32 %v1842, %v1860
      %v1869 = vadd.f32 %v1843, %v1861
      %v1870 = vadd.f32 %v1844, %v1862
      %s1871 = scalar_lea.vmem %s211, 4032
      %v1872 = vld [vmem:[%s1871] sm:$0xff]
      %v1873 = vld [vmem:[%s1871 + $0x8] sm:$0xff]
      %v1874 = vld [vmem:[%s1871 + $0x10] sm:$0xff]
      %v1875 = vld [vmem:[%s1871 + $0x18] sm:$0xff]
      %v1876 = vld [vmem:[%s1871 + $0x20] sm:$0xff]
      %v1877 = vld [vmem:[%s1871 + $0x28] sm:$0xff]
      %v1878 = vld [vmem:[%s1871 + $0x30] sm:$0xff]
      %v1879 = vld [vmem:[%s1871 + $0x38] sm:$0xff]
      %v1880 = vperm.slane %v233, 7
      %v1881 = vmul.f32 %v1880, %v1872
      %v1882 = vmul.f32 %v1880, %v1873
      %v1883 = vmul.f32 %v1880, %v1874
      %v1884 = vmul.f32 %v1880, %v1875
      %v1885 = vmul.f32 %v1880, %v1876
      %v1886 = vmul.f32 %v1880, %v1877
      %v1887 = vmul.f32 %v1880, %v1878
      %v1888 = vmul.f32 %v1880, %v1879
      %v1889 = vadd.f32 %v1863, %v1881
      %v1890 = vadd.f32 %v1864, %v1882
      %v1891 = vadd.f32 %v1865, %v1883
      %v1892 = vadd.f32 %v1866, %v1884
      %v1893 = vadd.f32 %v1867, %v1885
      %v1894 = vadd.f32 %v1868, %v1886
      %v1895 = vadd.f32 %v1869, %v1887
      %v1896 = vadd.f32 %v1870, %v1888
      %1897 = vst [vmem:[%s224] sm:$0xff] %v1889
      %1898 = vst [vmem:[%s224 + $0x8] sm:$0xff] %v1890
      %1899 = vst [vmem:[%s224 + $0x10] sm:$0xff] %v1891
      %1900 = vst [vmem:[%s224 + $0x18] sm:$0xff] %v1892
      %1901 = vst [vmem:[%s224 + $0x20] sm:$0xff] %v1893
      %1902 = vst [vmem:[%s224 + $0x28] sm:$0xff] %v1894
      %1903 = vst [vmem:[%s224 + $0x30] sm:$0xff] %v1895
      %1904 = vst [vmem:[%s224 + $0x38] sm:$0xff] %v1896
      %s1905 = smul.u32 8, %s18
      %p1906 = scmp.lt.s32.totalorder %s20, 1
      %s1907 = scalar_select %p1906, %s20, 1
      %p1908 = scmp.lt.s32.totalorder %s1905, 7
      %s1909 = scalar_select %p1908, %s1905, 7
      %p1910 = scmp.lt.s32.totalorder %s19, 0
      %s1911 = scalar_select %p1910, %s19, 0
      %s1912 = sadd.s32 %s1911, %s1909
      %s1913 = smul.addr %s1907, 8
      %s1914 = sadd.s32 %s1912, %s1913
      %s1915 = smul.addr %s1914, 8
      %s1916 = scalar_lea.vmem %s2, %s1915
      // Predicated region
      $region29: #{frnn_cell_forward.2} parent=27 // pred_check
        %p1917 = pneg %p110
      $region30: #{frnn_cell_forward.2} parent=27 // pred_check_branch
        %1919 = sbr.rel (%p1917) target = $region32
      $region31: #{frnn_cell_forward.2} parent=27 // pred_region
        %s1920 = smul.u32 8, %s18
      $region32: #{frnn_cell_forward.2} parent=27 // pred_fallthru
        _
    $region28: #{frnn_cell_forward.2} parent=5 // pred_fallthru
      _
    %p1921 = scmp.le.s32.totalorder 2, %s8
    // Predicated region
    $region33: #{frnn_cell_forward.2} parent=5 // pred_check
      %p1922 = pneg %p1921
    $region34: #{frnn_cell_forward.2} parent=5 // pred_check_branch
      %1924 = sbr.rel (%p1922) target = $region36
    $region35: #{frnn_cell_forward.2} parent=5 // pred_region
      %s1925 = ssub.s32 %s8, 2
      // Predicated region
      $region37: #{frnn_cell_forward.2} parent=35 // pred_check
        %p1926 = pneg %p116
      $region38: #{frnn_cell_forward.2} parent=35 // pred_check_branch
        %1928 = sbr.rel (%p1926) target = $region40
      $region39: #{frnn_cell_forward.2} parent=35 // pred_region
        %s1929 = smul.u32 8, %s21
        %p1930 = scmp.lt.s32.totalorder %s23, 1
        %s1931 = scalar_select %p1930, %s23, 1
        %p1932 = scmp.lt.s32.totalorder %s1929, 7
        %s1933 = scalar_select %p1932, %s1929, 7
        %p1934 = scmp.lt.s32.totalorder %s22, 0
        %s1935 = scalar_select %p1934, %s22, 0
        %s1936 = sadd.s32 %s1935, %s1933
        %s1937 = smul.addr %s1931, 8
        %s1938 = sadd.s32 %s1936, %s1937
        %s1939 = smul.addr %s1938, 8
        %s1940 = scalar_lea.vmem %s2, %s1939
      $region40: #{frnn_cell_forward.2} parent=35 // pred_fallthru
        _
    $region36: #{frnn_cell_forward.2} parent=5 // pred_fallthru
      _
  $region6: #{frnn_cell_forward.2} parent=0 // loop_footer
    %s12 = sadd.s32 1, %s8
  $region7: #{frnn_cell_forward.2} parent=0 // loop_footer_branch
    %7 = sbr.rel target = $region3
  $region8: #{frnn_cell_forward.2} parent=0 // loop_exit
    _

// kernel: frnn_cell_forward.3
$region0: #{frnn_cell_forward.3}
  #allocation0 [shape = 'u32[]', space=smem, size = 0x4, offset = 0x4, fixed_abs, tag = 'smem constant byte address 0x4 - core index']
  #allocation1 [shape = 'u32[72,128]{1,0:T(1,128)}', space=vmem, size = 0x9000, scoped, tag = 'internal scratch']
  %s0 = inlined_call_operand.vmem [shape: f32[2,32,256], index: 0, kind: input, shape index: {}]
  %s1 = inlined_call_operand.vmem [shape: f32[2,32,256], index: 1, kind: input, shape index: {}]
  %s2 = inlined_call_operand.vmem [shape: f32[2,32,256], index: 2, kind: input, shape index: {}]
  %s3 = inlined_call_operand.vmem [shape: bf16[32,32], index: 3, kind: input, shape index: {}]
  %s4 = inlined_call_operand.vmem [shape: f32[32,1], index: 4, kind: input, shape index: {}]
  %s5 = inlined_call_operand.vmem [shape: bf16[32,32], index: 5, kind: input, shape index: {}]
  %s6 = inlined_call_operand.vmem [shape: f32[32,1], index: 6, kind: input, shape index: {}]
  %s7 = inlined_call_operand.vmem [shape: f32[2,32,256], index: 7, kind: output, shape index: {0}]
  %s8 = inlined_call_operand.vmem [shape: f32[2,32,256], index: 8, kind: output, shape index: {1}]
  %9 = xla_tuple %s7, %s8
  %s10 = sld [smem:[#allocation0]]
  $region69: #{frnn_cell_forward.3} parent=0
    _
  %s12 = ssub.s32 1, %s10
  %s13 = scalar_select 0, %s12, %s10
  loop: start=0, step=1, limit=4
  $region2: #{frnn_cell_forward.3} parent=0 // loop_pre_header
    _
  $region3: #{frnn_cell_forward.3} parent=0 // loop_header
    %s15 = sphi 0, %s19
    %p16 = scmp.ge.s32.totalorder %s15, 4
    %s22 = sphi 0, %s34
    %s23 = sphi 0, %s30
    %s24 = sphi 0, %s22
    %s25 = sphi 0, %s23
    %s26 = sphi 0, %s24
    %s27 = sphi 0, %s25
    %s39 = sphi 0, %s41
    %s42 = sphi 0, %s39
    %s43 = sphi 0, %s42
    %s59 = sphi 0, %s43
    %s67 = sphi 0, %s69
    %s70 = sphi 0, %s67
    %s71 = sphi 0, %s70
    %s87 = sphi 0, %s71
    %s95 = sphi 0, %s97
    %s98 = sphi 0, %s95
    %s99 = sphi 0, %s98
    %s115 = sphi 0, %s99
    %s119 = sphi 0, %s119
    %s121 = sphi 0, %s119
    %s122 = sphi 0, %s121
    %s136 = sphi 0, %s122
    %s140 = sphi 0, %s140
    %s142 = sphi 0, %s140
    %s143 = sphi 0, %s142
    %s157 = sphi 0, %s143
    %s161 = sphi 0, %s161
    %s163 = sphi 0, %s161
    %s164 = sphi 0, %s163
    %s178 = sphi 0, %s164
    %s182 = sphi 0, %s182
    %s184 = sphi 0, %s182
    %s185 = sphi 0, %s184
    %s199 = sphi 0, %s185
    %s207 = sphi 0, %s209
    %s210 = sphi 0, %s207
    %s211 = sphi 0, %s210
    %s227 = sphi 0, %s211
    %s235 = sphi 0, %s237
    %s238 = sphi 0, %s235
    %s239 = sphi 0, %s238
    %s255 = sphi 0, %s239
  $region4: #{frnn_cell_forward.3} parent=0 // loop_header_branch
    %18 = sbr.rel (%p16) target = $region8
  $region5: #{frnn_cell_forward.3} parent=0 // loop_body
    %s20 = ssub.s32 %s15, 1
    %s21 = ssub.s32 %s15, 2
    %s28 = sadd.s32 1, %s23
    %p29 = scmp.ge.s32.totalorder %s28, 1
    %s30 = scalar_select %p29, 0, %s28
    %s31 = sadd.s32 1, %s22
    %s32 = scalar_select %p29, %s31, %s22
    %p33 = scmp.ge.s32.totalorder %s32, 2
    %s34 = scalar_select %p33, 0, %s32
    %s35 = ssub.s32 %s22, %s34
    %s36 = ssub.s32 %s23, %s30
    %s37 = sor.u32 %s35, %s36
    %p38 = scmp.eq.s32.totalorder %s37, 0
    %s40 = sadd.s32 %s39, 1
    %s41 = scalar_select %p38, %s39, %s40
    %p44 = pneg %p38
    %p45 = scmp.eq.s32.totalorder %s15, 1
    %p46 = por %p44, %p45
    %p47 = scmp.ne.s32.totalorder %s39, %s42
    %p48 = scmp.eq.s32.totalorder %s15, 0
    %p49 = por %p47, %p48
    %p50 = scmp.ne.s32.totalorder %s39, %s42
    %p51 = scmp.eq.s32.totalorder %s20, 1
    %p52 = por %p50, %p51
    %p53 = scmp.ne.s32.totalorder %s42, %s43
    %p54 = scmp.eq.s32.totalorder %s20, 0
    %p55 = por %p53, %p54
    %p56 = scmp.ne.s32.totalorder %s42, %s43
    %p57 = scmp.eq.s32.totalorder %s21, 1
    %p58 = por %p56, %p57
    %p60 = scmp.ne.s32.totalorder %s43, %s59
    %p61 = scmp.eq.s32.totalorder %s21, 0
    %p62 = por %p60, %p61
    %s63 = ssub.s32 %s22, %s34
    %s64 = ssub.s32 %s23, %s30
    %s65 = sor.u32 %s63, %s64
    %p66 = scmp.eq.s32.totalorder %s65, 0
    %s68 = sadd.s32 %s67, 1
    %s69 = scalar_select %p66, %s67, %s68
    %p72 = pneg %p66
    %p73 = scmp.eq.s32.totalorder %s15, 1
    %p74 = por %p72, %p73
    %p75 = scmp.ne.s32.totalorder %s67, %s70
    %p76 = scmp.eq.s32.totalorder %s15, 0
    %p77 = por %p75, %p76
    %p78 = scmp.ne.s32.totalorder %s67, %s70
    %p79 = scmp.eq.s32.totalorder %s20, 1
    %p80 = por %p78, %p79
    %p81 = scmp.ne.s32.totalorder %s70, %s71
    %p82 = scmp.eq.s32.totalorder %s20, 0
    %p83 = por %p81, %p82
    %p84 = scmp.ne.s32.totalorder %s70, %s71
    %p85 = scmp.eq.s32.totalorder %s21, 1
    %p86 = por %p84, %p85
    %p88 = scmp.ne.s32.totalorder %s71, %s87
    %p89 = scmp.eq.s32.totalorder %s21, 0
    %p90 = por %p88, %p89
    %s91 = ssub.s32 %s22, %s34
    %s92 = ssub.s32 %s23, %s30
    %s93 = sor.u32 %s91, %s92
    %p94 = scmp.eq.s32.totalorder %s93, 0
    %s96 = sadd.s32 %s95, 1
    %s97 = scalar_select %p94, %s95, %s96
    %p100 = pneg %p94
    %p101 = scmp.eq.s32.totalorder %s15, 1
    %p102 = por %p100, %p101
    %p103 = scmp.ne.s32.totalorder %s95, %s98
    %p104 = scmp.eq.s32.totalorder %s15, 0
    %p105 = por %p103, %p104
    %p106 = scmp.ne.s32.totalorder %s95, %s98
    %p107 = scmp.eq.s32.totalorder %s20, 1
    %p108 = por %p106, %p107
    %p109 = scmp.ne.s32.totalorder %s98, %s99
    %p110 = scmp.eq.s32.totalorder %s20, 0
    %p111 = por %p109, %p110
    %p112 = scmp.ne.s32.totalorder %s98, %s99
    %p113 = scmp.eq.s32.totalorder %s21, 1
    %p114 = por %p112, %p113
    %p116 = scmp.ne.s32.totalorder %s99, %s115
    %p117 = scmp.eq.s32.totalorder %s21, 0
    %p118 = por %p116, %p117
    %s120 = sadd.s32 %s119, 1
    %p123 = scmp.eq.s32.totalorder %s15, 1
    %p124 = scmp.ne.s32.totalorder %s119, %s121
    %p125 = scmp.eq.s32.totalorder %s15, 0
    %p126 = por %p124, %p125
    %p127 = scmp.ne.s32.totalorder %s119, %s121
    %p128 = scmp.eq.s32.totalorder %s20, 1
    %p129 = por %p127, %p128
    %p130 = scmp.ne.s32.totalorder %s121, %s122
    %p131 = scmp.eq.s32.totalorder %s20, 0
    %p132 = por %p130, %p131
    %p133 = scmp.ne.s32.totalorder %s121, %s122
    %p134 = scmp.eq.s32.totalorder %s21, 1
    %p135 = por %p133, %p134
    %p137 = scmp.ne.s32.totalorder %s122, %s136
    %p138 = scmp.eq.s32.totalorder %s21, 0
    %p139 = por %p137, %p138
    %s141 = sadd.s32 %s140, 1
    %p144 = scmp.eq.s32.totalorder %s15, 1
    %p145 = scmp.ne.s32.totalorder %s140, %s142
    %p146 = scmp.eq.s32.totalorder %s15, 0
    %p147 = por %p145, %p146
    %p148 = scmp.ne.s32.totalorder %s140, %s142
    %p149 = scmp.eq.s32.totalorder %s20, 1
    %p150 = por %p148, %p149
    %p151 = scmp.ne.s32.totalorder %s142, %s143
    %p152 = scmp.eq.s32.totalorder %s20, 0
    %p153 = por %p151, %p152
    %p154 = scmp.ne.s32.totalorder %s142, %s143
    %p155 = scmp.eq.s32.totalorder %s21, 1
    %p156 = por %p154, %p155
    %p158 = scmp.ne.s32.totalorder %s143, %s157
    %p159 = scmp.eq.s32.totalorder %s21, 0
    %p160 = por %p158, %p159
    %s162 = sadd.s32 %s161, 1
    %p165 = scmp.eq.s32.totalorder %s15, 1
    %p166 = scmp.ne.s32.totalorder %s161, %s163
    %p167 = scmp.eq.s32.totalorder %s15, 0
    %p168 = por %p166, %p167
    %p169 = scmp.ne.s32.totalorder %s161, %s163
    %p170 = scmp.eq.s32.totalorder %s20, 1
    %p171 = por %p169, %p170
    %p172 = scmp.ne.s32.totalorder %s163, %s164
    %p173 = scmp.eq.s32.totalorder %s20, 0
    %p174 = por %p172, %p173
    %p175 = scmp.ne.s32.totalorder %s163, %s164
    %p176 = scmp.eq.s32.totalorder %s21, 1
    %p177 = por %p175, %p176
    %p179 = scmp.ne.s32.totalorder %s164, %s178
    %p180 = scmp.eq.s32.totalorder %s21, 0
    %p181 = por %p179, %p180
    %s183 = sadd.s32 %s182, 1
    %p186 = scmp.eq.s32.totalorder %s15, 1
    %p187 = scmp.ne.s32.totalorder %s182, %s184
    %p188 = scmp.eq.s32.totalorder %s15, 0
    %p189 = por %p187, %p188
    %p190 = scmp.ne.s32.totalorder %s182, %s184
    %p191 = scmp.eq.s32.totalorder %s20, 1
    %p192 = por %p190, %p191
    %p193 = scmp.ne.s32.totalorder %s184, %s185
    %p194 = scmp.eq.s32.totalorder %s20, 0
    %p195 = por %p193, %p194
    %p196 = scmp.ne.s32.totalorder %s184, %s185
    %p197 = scmp.eq.s32.totalorder %s21, 1
    %p198 = por %p196, %p197
    %p200 = scmp.ne.s32.totalorder %s185, %s199
    %p201 = scmp.eq.s32.totalorder %s21, 0
    %p202 = por %p200, %p201
    %s203 = ssub.s32 %s22, %s34
    %s204 = ssub.s32 %s23, %s30
    %s205 = sor.u32 %s203, %s204
    %p206 = scmp.eq.s32.totalorder %s205, 0
    %s208 = sadd.s32 %s207, 1
    %s209 = scalar_select %p206, %s207, %s208
    %p212 = pneg %p206
    %p213 = scmp.eq.s32.totalorder %s15, 1
    %p214 = por %p212, %p213
    %p215 = scmp.ne.s32.totalorder %s207, %s210
    %p216 = scmp.eq.s32.totalorder %s15, 0
    %p217 = por %p215, %p216
    %p218 = scmp.ne.s32.totalorder %s207, %s210
    %p219 = scmp.eq.s32.totalorder %s20, 1
    %p220 = por %p218, %p219
    %p221 = scmp.ne.s32.totalorder %s210, %s211
    %p222 = scmp.eq.s32.totalorder %s20, 0
    %p223 = por %p221, %p222
    %p224 = scmp.ne.s32.totalorder %s210, %s211
    %p225 = scmp.eq.s32.totalorder %s21, 1
    %p226 = por %p224, %p225
    %p228 = scmp.ne.s32.totalorder %s211, %s227
    %p229 = scmp.eq.s32.totalorder %s21, 0
    %p230 = por %p228, %p229
    %s231 = ssub.s32 %s22, %s34
    %s232 = ssub.s32 %s23, %s30
    %s233 = sor.u32 %s231, %s232
    %p234 = scmp.eq.s32.totalorder %s233, 0
    %s236 = sadd.s32 %s235, 1
    %s237 = scalar_select %p234, %s235, %s236
    %p240 = pneg %p234
    %p241 = scmp.eq.s32.totalorder %s15, 1
    %p242 = por %p240, %p241
    %p243 = scmp.ne.s32.totalorder %s235, %s238
    %p244 = scmp.eq.s32.totalorder %s15, 0
    %p245 = por %p243, %p244
    %p246 = scmp.ne.s32.totalorder %s235, %s238
    %p247 = scmp.eq.s32.totalorder %s20, 1
    %p248 = por %p246, %p247
    %p249 = scmp.ne.s32.totalorder %s238, %s239
    %p250 = scmp.eq.s32.totalorder %s20, 0
    %p251 = por %p249, %p250
    %p252 = scmp.ne.s32.totalorder %s238, %s239
    %p253 = scmp.eq.s32.totalorder %s21, 1
    %p254 = por %p252, %p253
    %p256 = scmp.ne.s32.totalorder %s239, %s255
    %p257 = scmp.eq.s32.totalorder %s21, 0
    %p258 = por %p256, %p257
    %p259 = scmp.le.s32.totalorder 1, %s15
    %p260 = scmp.lt.s32.totalorder %s15, 3
    %p261 = pnand %p259, %p260
    %p262 = pneg %p261
    // Predicated region
    $region9: #{frnn_cell_forward.3} parent=5 // pred_check
      _
    $region10: #{frnn_cell_forward.3} parent=5 // pred_check_branch
      %264 = sbr.rel (%p261) target = $region12
    $region11: #{frnn_cell_forward.3} parent=5 // pred_region
      %s265 = ssub.s32 %s15, 1
      // Predicated region
      $region13: #{frnn_cell_forward.3} parent=11 // pred_check
        %p266 = pneg %p132
      $region14: #{frnn_cell_forward.3} parent=11 // pred_check_branch
        %268 = sbr.rel (%p266) target = $region16
      $region15: #{frnn_cell_forward.3} parent=11 // pred_region
        _
      $region16: #{frnn_cell_forward.3} parent=11 // pred_fallthru
        _
      // Predicated region
      $region17: #{frnn_cell_forward.3} parent=11 // pred_check
        %p269 = pneg %p153
      $region18: #{frnn_cell_forward.3} parent=11 // pred_check_branch
        %271 = sbr.rel (%p269) target = $region20
      $region19: #{frnn_cell_forward.3} parent=11 // pred_region
        _
      $region20: #{frnn_cell_forward.3} parent=11 // pred_fallthru
        _
      // Predicated region
      $region21: #{frnn_cell_forward.3} parent=11 // pred_check
        %p272 = pneg %p174
      $region22: #{frnn_cell_forward.3} parent=11 // pred_check_branch
        %274 = sbr.rel (%p272) target = $region24
      $region23: #{frnn_cell_forward.3} parent=11 // pred_region
        _
      $region24: #{frnn_cell_forward.3} parent=11 // pred_fallthru
        _
      // Predicated region
      $region25: #{frnn_cell_forward.3} parent=11 // pred_check
        %p275 = pneg %p195
      $region26: #{frnn_cell_forward.3} parent=11 // pred_check_branch
        %277 = sbr.rel (%p275) target = $region28
      $region27: #{frnn_cell_forward.3} parent=11 // pred_region
        _
      $region28: #{frnn_cell_forward.3} parent=11 // pred_fallthru
        _
    $region12: #{frnn_cell_forward.3} parent=5 // pred_fallthru
      _
    %p278 = scmp.lt.s32.totalorder %s15, 2
    // Predicated region
    $region29: #{frnn_cell_forward.3} parent=5 // pred_check
      %p279 = pneg %p278
    $region30: #{frnn_cell_forward.3} parent=5 // pred_check_branch
      %281 = sbr.rel (%p279) target = $region32
    $region31: #{frnn_cell_forward.3} parent=5 // pred_region
      // Predicated region
      $region33: #{frnn_cell_forward.3} parent=31 // pred_check
        %p282 = pneg %p49
      $region34: #{frnn_cell_forward.3} parent=31 // pred_check_branch
        %284 = sbr.rel (%p282) target = $region36
      $region35: #{frnn_cell_forward.3} parent=31 // pred_region
        %s285 = smul.u32 2, %s23
        %p286 = scmp.lt.s32.totalorder %s22, 1
        %s287 = scalar_select %p286, %s22, 1
        %p288 = scmp.lt.s32.totalorder %s285, 1
        %s289 = scalar_select %p288, %s285, 1
        %s290 = smul.addr %s287, 8
        %s291 = sadd.s32 %s289, %s290
        %s292 = smul.addr %s291, 8
        %s293 = scalar_lea.vmem %s0, %s292
        %s294 = smul.u32 2, %s23
      $region36: #{frnn_cell_forward.3} parent=31 // pred_fallthru
        _
      // Predicated region
      $region37: #{frnn_cell_forward.3} parent=31 // pred_check
        %p295 = pneg %p77
      $region38: #{frnn_cell_forward.3} parent=31 // pred_check_branch
        %297 = sbr.rel (%p295) target = $region40
      $region39: #{frnn_cell_forward.3} parent=31 // pred_region
        %s298 = smul.u32 2, %s23
        %p299 = scmp.lt.s32.totalorder %s22, 1
        %s300 = scalar_select %p299, %s22, 1
        %p301 = scmp.lt.s32.totalorder %s298, 1
        %s302 = scalar_select %p301, %s298, 1
        %s303 = smul.addr %s300, 8
        %s304 = sadd.s32 %s302, %s303
        %s305 = smul.addr %s304, 8
        %s306 = scalar_lea.vmem %s1, %s305
        %s307 = smul.u32 2, %s23
      $region40: #{frnn_cell_forward.3} parent=31 // pred_fallthru
        _
      // Predicated region
      $region41: #{frnn_cell_forward.3} parent=31 // pred_check
        %p308 = pneg %p105
      $region42: #{frnn_cell_forward.3} parent=31 // pred_check_branch
        %310 = sbr.rel (%p308) target = $region44
      $region43: #{frnn_cell_forward.3} parent=31 // pred_region
        %s311 = smul.u32 2, %s23
        %p312 = scmp.lt.s32.totalorder %s22, 1
        %s313 = scalar_select %p312, %s22, 1
        %p314 = scmp.lt.s32.totalorder %s311, 1
        %s315 = scalar_select %p314, %s311, 1
        %s316 = smul.addr %s313, 8
        %s317 = sadd.s32 %s315, %s316
        %s318 = smul.addr %s317, 8
        %s319 = scalar_lea.vmem %s2, %s318
        %s320 = smul.u32 2, %s23
      $region44: #{frnn_cell_forward.3} parent=31 // pred_fallthru
        _
    $region32: #{frnn_cell_forward.3} parent=5 // pred_fallthru
      _
    %p321 = scmp.le.s32.totalorder 1, %s15
    %p322 = scmp.lt.s32.totalorder %s15, 3
    %p323 = pnand %p321, %p322
    %p324 = pneg %p323
    // Predicated region
    $region45: #{frnn_cell_forward.3} parent=5 // pred_check
      _
    $region46: #{frnn_cell_forward.3} parent=5 // pred_check_branch
      %326 = sbr.rel (%p323) target = $region48
    $region47: #{frnn_cell_forward.3} parent=5 // pred_region
      %s327 = ssub.s32 %s15, 1
      %s328 = smul.u32 2, %s25
      %p329 = scmp.lt.s32.totalorder %s24, 1
      %s330 = scalar_select %p329, %s24, 1
      %p331 = scmp.lt.s32.totalorder %s328, 1
      %s332 = scalar_select %p331, %s328, 1
      %s333 = smul.addr %s330, 8
      %s334 = sadd.s32 %s332, %s333
      %s335 = smul.addr %s334, 8
      %s336 = scalar_lea.vmem %s0, %s335
      %p337 = pneg %p55
      %p338 = pneg %p52
      %s339 = smul.u32 2, %s25
      %p340 = scmp.lt.s32.totalorder %s24, 1
      %s341 = scalar_select %p340, %s24, 1
      %p342 = scmp.lt.s32.totalorder %s339, 1
      %s343 = scalar_select %p342, %s339, 1
      %s344 = smul.addr %s341, 8
      %s345 = sadd.s32 %s343, %s344
      %s346 = smul.addr %s345, 8
      %s347 = scalar_lea.vmem %s1, %s346
      %p348 = pneg %p83
      %p349 = pneg %p80
      %s350 = smul.u32 2, %s25
      %p351 = scmp.lt.s32.totalorder %s24, 1
      %s352 = scalar_select %p351, %s24, 1
      %p353 = scmp.lt.s32.totalorder %s350, 1
      %s354 = scalar_select %p353, %s350, 1
      %s355 = smul.addr %s352, 8
      %s356 = sadd.s32 %s354, %s355
      %s357 = smul.addr %s356, 8
      %s358 = scalar_lea.vmem %s2, %s357
      %p359 = pneg %p111
      %p360 = pneg %p108
      %p361 = pneg %p132
      %p362 = pneg %p129
      %p363 = pneg %p153
      %p364 = pneg %p150
      %p365 = pneg %p174
      %p366 = pneg %p171
      %p367 = pneg %p195
      %p368 = pneg %p192
      %p369 = pneg %p223
      %p370 = pneg %p220
      %s371 = smul.u32 2, %s25
      %p372 = scmp.lt.s32.totalorder %s24, 1
      %s373 = scalar_select %p372, %s24, 1
      %p374 = scmp.lt.s32.totalorder %s371, 1
      %s375 = scalar_select %p374, %s371, 1
      %s376 = smul.addr %s373, 8
      %s377 = sadd.s32 %s375, %s376
      %s378 = smul.addr %s377, 8
      %s379 = scalar_lea.vmem %s7, %s378
      %p380 = pneg %p251
      %p381 = pneg %p248
      %s382 = smul.u32 2, %s25
      %p383 = scmp.lt.s32.totalorder %s24, 1
      %s384 = scalar_select %p383, %s24, 1
      %p385 = scmp.lt.s32.totalorder %s382, 1
      %s386 = scalar_select %p385, %s382, 1
      %s387 = smul.addr %s384, 8
      %s388 = sadd.s32 %s386, %s387
      %s389 = smul.addr %s388, 8
      %s390 = scalar_lea.vmem %s8, %s389
      %s391 = smul.u32 2, %s25
      %p392 = scmp.lt.s32.totalorder %s24, 1
      %s393 = scalar_select %p392, %s24, 1
      %p394 = scmp.lt.s32.totalorder %s391, 1
      %s395 = scalar_select %p394, %s391, 1
      %s396 = smul.addr %s393, 8
      %s397 = sadd.s32 %s395, %s396
      %s398 = smul.addr %s397, 8
      %s399 = scalar_lea.vmem %s0, %s398
      %s400 = smul.u32 2, %s25
      %s401 = smul.u32 2, %s25
      %p402 = scmp.lt.s32.totalorder %s24, 1
      %s403 = scalar_select %p402, %s24, 1
      %p404 = scmp.lt.s32.totalorder %s401, 1
      %s405 = scalar_select %p404, %s401, 1
      %s406 = smul.addr %s403, 8
      %s407 = sadd.s32 %s405, %s406
      %s408 = smul.addr %s407, 8
      %s409 = scalar_lea.vmem %s1, %s408
      %s410 = smul.u32 2, %s25
      %s411 = smul.u32 2, %s25
      %p412 = scmp.lt.s32.totalorder %s24, 1
      %s413 = scalar_select %p412, %s24, 1
      %p414 = scmp.lt.s32.totalorder %s411, 1
      %s415 = scalar_select %p414, %s411, 1
      %s416 = smul.addr %s413, 8
      %s417 = sadd.s32 %s415, %s416
      %s418 = smul.addr %s417, 8
      %s419 = scalar_lea.vmem %s2, %s418
      %s420 = smul.u32 2, %s25
      %s421 = smul.u32 2, %s25
      %p422 = scmp.lt.s32.totalorder %s24, 1
      %s423 = scalar_select %p422, %s24, 1
      %p424 = scmp.lt.s32.totalorder %s421, 1
      %s425 = scalar_select %p424, %s421, 1
      %s426 = smul.addr %s423, 8
      %s427 = sadd.s32 %s425, %s426
      %s428 = smul.addr %s427, 8
      %s429 = scalar_lea.vmem %s7, %s428
      %s430 = smul.u32 2, %s25
      %s431 = smul.u32 2, %s25
      %p432 = scmp.lt.s32.totalorder %s24, 1
      %s433 = scalar_select %p432, %s24, 1
      %p434 = scmp.lt.s32.totalorder %s431, 1
      %s435 = scalar_select %p434, %s431, 1
      %s436 = smul.addr %s433, 8
      %s437 = sadd.s32 %s435, %s436
      %s438 = smul.addr %s437, 8
      %s439 = scalar_lea.vmem %s8, %s438
      %s440 = smul.u32 2, %s25
      %v442 = vld [vmem:[%s409] sm:$0xff]
      %v443 = vld [vmem:[%s409 + $0x8] sm:$0xff]
      %v444 = vld [vmem:[%s409 + $0x10] sm:$0xff]
      %v445 = vld [vmem:[%s409 + $0x18] sm:$0xff]
      %v446 = vld [vmem:[%s409 + $0x20] sm:$0xff]
      %v447 = vld [vmem:[%s409 + $0x28] sm:$0xff]
      %v448 = vld [vmem:[%s409 + $0x30] sm:$0xff]
      %v449 = vld [vmem:[%s409 + $0x38] sm:$0xff]
      %v450 = vpack.c.bf16 %v444, %v442
      %v451 = vpack.c.bf16 %v445, %v443
      %v452 = vpack.c.bf16 %v448, %v446
      %v453 = vpack.c.bf16 %v449, %v447
      %v454 = vld [vmem:[%s399] sm:$0xff]
      %v455 = vld [vmem:[%s399 + $0x8] sm:$0xff]
      %v456 = vld [vmem:[%s399 + $0x10] sm:$0xff]
      %v457 = vld [vmem:[%s399 + $0x18] sm:$0xff]
      %v458 = vld [vmem:[%s399 + $0x20] sm:$0xff]
      %v459 = vld [vmem:[%s399 + $0x28] sm:$0xff]
      %v460 = vld [vmem:[%s399 + $0x30] sm:$0xff]
      %v461 = vld [vmem:[%s399 + $0x38] sm:$0xff]
      %v462 = vpack.c.bf16 %v456, %v454
      %v463 = vpack.c.bf16 %v457, %v455
      %v464 = vpack.c.bf16 %v460, %v458
      %v465 = vpack.c.bf16 %v461, %v459
      %v466 = vld [vmem:[%s5] sm:$0xf]
      %v467 = vld [vmem:[%s5 + $0x4] sm:$0xf]
      %v468 = vld [vmem:[%s5 + $0x8] sm:$0xf]
      %v469 = vld [vmem:[%s5 + $0xc] sm:$0xf]
      %v470 = vld [vmem:[%s6] sm:$0xff]
      %v471 = vld [vmem:[%s6 + $0x8] sm:$0xff]
      %v472 = vld [vmem:[%s6 + $0x10] sm:$0xff]
      %v473 = vld [vmem:[%s6 + $0x18] sm:$0xff]
      %475 = vset.pattern.permute.xlu0 0
      %476 = vperm.xlu0 %475, %v470
      %v477 = vpop.permute.xlu0 %476
      %480 = vset.pattern.permute.xlu0 0
      %481 = vperm.xlu0 %480, %v471
      %v482 = vpop.permute.xlu0 %481
      %485 = vset.pattern.permute.xlu0 0
      %486 = vperm.xlu0 %485, %v472
      %v487 = vpop.permute.xlu0 %486
      %490 = vset.pattern.permute.xlu0 0
      %491 = vperm.xlu0 %490, %v473
      %v492 = vpop.permute.xlu0 %491
      %v498 = vunpack.c.l.b16 %v466
      %v499 = vunpack.c.l.b16 %v467
      %v500 = vunpack.c.l.b16 %v468
      %v501 = vunpack.c.l.b16 %v469
      %v502 = vpack.c.b16 %v499, %v498
      %v503 = vpack.c.b16 %v501, %v500
      %vm504 = vcmask 261120
      %v506 = vsel %vm504, %v502, 0
      %v509 = vsel %vm504, %v503, 0
      %511 = vmatpush.bf16.msra.mxu0 0
      %512 = vmatpush.bf16.msra.mxu0 0
      %513 = vmatpush.bf16.msra.mxu0 0
      %514 = vmatpush.bf16.msra.mxu0 0
      %515 = vmatpush.bf16.msra.mxu0 0
      %516 = vmatpush.bf16.msra.mxu0 0
      %517 = vmatpush.bf16.msra.mxu0 %v452
      %518 = vmatpush.bf16.msra.mxu0 %v450
      %519 = vmatmul.bf16.gmra.mxu0 %v506
      %v520 = vpop.f32.mrf.mxu0
      %v521 = vadd.f32 %v477, %v520
      %v522 = vpop.f32.mrf.mxu0
      %v523 = vadd.f32 %v482, %v522
      %524 = vmatmul.bf16.gmra.mxu0 %v509
      %v525 = vpop.f32.mrf.mxu0
      %v526 = vadd.f32 %v487, %v525
      %v527 = vpop.f32.mrf.mxu0
      %v528 = vadd.f32 %v492, %v527
      %529 = vdwg.mxu0
      %530 = vmatpush.bf16.msra.mxu0 0
      %531 = vmatpush.bf16.msra.mxu0 0
      %532 = vmatpush.bf16.msra.mxu0 0
      %533 = vmatpush.bf16.msra.mxu0 0
      %534 = vmatpush.bf16.msra.mxu0 0
      %535 = vmatpush.bf16.msra.mxu0 0
      %536 = vmatpush.bf16.msra.mxu0 %v453
      %537 = vmatpush.bf16.msra.mxu0 %v451
      %538 = vmatmul.bf16.gmra.mxu0 %v506
      %v539 = vpop.f32.mrf.mxu0
      %v540 = vadd.f32 %v477, %v539
      %v541 = vpop.f32.mrf.mxu0
      %v542 = vadd.f32 %v482, %v541
      %543 = vmatmul.bf16.gmra.mxu0 %v509
      %v544 = vpop.f32.mrf.mxu0
      %v545 = vadd.f32 %v487, %v544
      %v546 = vpop.f32.mrf.mxu0
      %v547 = vadd.f32 %v492, %v546
      %548 = vdwg.mxu0
      %v549 = vmul.f32 %v521, 0.5
      %v550 = vmul.f32 %v540, 0.5
      %v551 = vmul.f32 %v523, 0.5
      %v552 = vmul.f32 %v542, 0.5
      %v553 = vmul.f32 %v526, 0.5
      %v554 = vmul.f32 %v545, 0.5
      %v555 = vmul.f32 %v528, 0.5
      %v556 = vmul.f32 %v547, 0.5
      %v557 = vmul.f32 %v521, 0.044715
      %v558 = vmul.f32 %v540, 0.044715
      %v559 = vmul.f32 %v523, 0.044715
      %v560 = vmul.f32 %v542, 0.044715
      %v561 = vmul.f32 %v526, 0.044715
      %v562 = vmul.f32 %v545, 0.044715
      %v563 = vmul.f32 %v528, 0.044715
      %v564 = vmul.f32 %v547, 0.044715
      %v565 = vmul.f32 %v557, %v521
      %v566 = vmul.f32 %v558, %v540
      %v567 = vmul.f32 %v559, %v523
      %v568 = vmul.f32 %v560, %v542
      %v569 = vmul.f32 %v561, %v526
      %v570 = vmul.f32 %v562, %v545
      %v571 = vmul.f32 %v563, %v528
      %v572 = vmul.f32 %v564, %v547
      %v573 = vmul.f32 %v565, %v521
      %v574 = vmul.f32 %v566, %v540
      %v575 = vmul.f32 %v567, %v523
      %v576 = vmul.f32 %v568, %v542
      %v577 = vmul.f32 %v569, %v526
      %v578 = vmul.f32 %v570, %v545
      %v579 = vmul.f32 %v571, %v528
      %v580 = vmul.f32 %v572, %v547
      %v581 = vadd.f32 %v521, %v573
      %v582 = vadd.f32 %v540, %v574
      %v583 = vadd.f32 %v523, %v575
      %v584 = vadd.f32 %v542, %v576
      %v585 = vadd.f32 %v526, %v577
      %v586 = vadd.f32 %v545, %v578
      %v587 = vadd.f32 %v528, %v579
      %v588 = vadd.f32 %v547, %v580
      %v589 = vmul.f32 %v581, 0.7978846
      %v590 = vmul.f32 %v582, 0.7978846
      %v591 = vmul.f32 %v583, 0.7978846
      %v592 = vmul.f32 %v584, 0.7978846
      %v593 = vmul.f32 %v585, 0.7978846
      %v594 = vmul.f32 %v586, 0.7978846
      %v595 = vmul.f32 %v587, 0.7978846
      %v596 = vmul.f32 %v588, 0.7978846
      %v597 = vtanh.pop %v589
      %v598 = vtanh.pop %v590
      %v599 = vtanh.pop %v591
      %v600 = vtanh.pop %v592
      %v601 = vtanh.pop %v593
      %v602 = vtanh.pop %v594
      %v603 = vtanh.pop %v595
      %v604 = vtanh.pop %v596
      %v605 = vadd.f32 %v597, 1.0
      %v606 = vadd.f32 %v598, 1.0
      %v607 = vadd.f32 %v599, 1.0
      %v608 = vadd.f32 %v600, 1.0
      %v609 = vadd.f32 %v601, 1.0
      %v610 = vadd.f32 %v602, 1.0
      %v611 = vadd.f32 %v603, 1.0
      %v612 = vadd.f32 %v604, 1.0
      %v613 = vmul.f32 %v549, %v605
      %v614 = vmul.f32 %v550, %v606
      %v615 = vmul.f32 %v551, %v607
      %v616 = vmul.f32 %v552, %v608
      %v617 = vmul.f32 %v553, %v609
      %v618 = vmul.f32 %v554, %v610
      %v619 = vmul.f32 %v555, %v611
      %v620 = vmul.f32 %v556, %v612
      %v621 = vld [vmem:[%s3] sm:$0xf]
      %v622 = vld [vmem:[%s3 + $0x4] sm:$0xf]
      %v623 = vld [vmem:[%s3 + $0x8] sm:$0xf]
      %v624 = vld [vmem:[%s3 + $0xc] sm:$0xf]
      %v625 = vld [vmem:[%s4] sm:$0xff]
      %v626 = vld [vmem:[%s4 + $0x8] sm:$0xff]
      %v627 = vld [vmem:[%s4 + $0x10] sm:$0xff]
      %v628 = vld [vmem:[%s4 + $0x18] sm:$0xff]
      %630 = vset.pattern.permute.xlu0 0
      %631 = vperm.xlu0 %630, %v625
      %v632 = vpop.permute.xlu0 %631
      %635 = vset.pattern.permute.xlu0 0
      %636 = vperm.xlu0 %635, %v626
      %v637 = vpop.permute.xlu0 %636
      %640 = vset.pattern.permute.xlu0 0
      %641 = vperm.xlu0 %640, %v627
      %v642 = vpop.permute.xlu0 %641
      %645 = vset.pattern.permute.xlu0 0
      %646 = vperm.xlu0 %645, %v628
      %v647 = vpop.permute.xlu0 %646
      %v653 = vunpack.c.l.b16 %v621
      %v654 = vunpack.c.l.b16 %v622
      %v655 = vunpack.c.l.b16 %v623
      %v656 = vunpack.c.l.b16 %v624
      %v657 = vpack.c.b16 %v654, %v653
      %v658 = vpack.c.b16 %v656, %v655
      %v660 = vsel %vm504, %v657, 0
      %v663 = vsel %vm504, %v658, 0
      %665 = vmatpush.bf16.msra.mxu0 0
      %666 = vmatpush.bf16.msra.mxu0 0
      %667 = vmatpush.bf16.msra.mxu0 0
      %668 = vmatpush.bf16.msra.mxu0 0
      %669 = vmatpush.bf16.msra.mxu0 0
      %670 = vmatpush.bf16.msra.mxu0 0
      %671 = vmatpush.bf16.msra.mxu0 %v464
      %672 = vmatpush.bf16.msra.mxu0 %v462
      %673 = vmatmul.bf16.gmra.mxu0 %v660
      %v674 = vpop.f32.mrf.mxu0
      %v675 = vadd.f32 %v632, %v674
      %v676 = vpop.f32.mrf.mxu0
      %v677 = vadd.f32 %v637, %v676
      %678 = vmatmul.bf16.gmra.mxu0 %v663
      %v679 = vpop.f32.mrf.mxu0
      %v680 = vadd.f32 %v642, %v679
      %v681 = vpop.f32.mrf.mxu0
      %v682 = vadd.f32 %v647, %v681
      %683 = vdwg.mxu0
      %684 = vmatpush.bf16.msra.mxu0 0
      %685 = vmatpush.bf16.msra.mxu0 0
      %686 = vmatpush.bf16.msra.mxu0 0
      %687 = vmatpush.bf16.msra.mxu0 0
      %688 = vmatpush.bf16.msra.mxu0 0
      %689 = vmatpush.bf16.msra.mxu0 0
      %690 = vmatpush.bf16.msra.mxu0 %v465
      %691 = vmatpush.bf16.msra.mxu0 %v463
      %692 = vmatmul.bf16.gmra.mxu0 %v660
      %v693 = vpop.f32.mrf.mxu0
      %v694 = vadd.f32 %v632, %v693
      %v695 = vpop.f32.mrf.mxu0
      %v696 = vadd.f32 %v637, %v695
      %697 = vmatmul.bf16.gmra.mxu0 %v663
      %v698 = vpop.f32.mrf.mxu0
      %v699 = vadd.f32 %v642, %v698
      %v700 = vpop.f32.mrf.mxu0
      %v701 = vadd.f32 %v647, %v700
      %702 = vdwg.mxu0
      %v703 = vld [vmem:[%s419] sm:$0xff]
      %v704 = vld [vmem:[%s419 + $0x8] sm:$0xff]
      %v705 = vld [vmem:[%s419 + $0x10] sm:$0xff]
      %v706 = vld [vmem:[%s419 + $0x18] sm:$0xff]
      %v707 = vld [vmem:[%s419 + $0x20] sm:$0xff]
      %v708 = vld [vmem:[%s419 + $0x28] sm:$0xff]
      %v709 = vld [vmem:[%s419 + $0x30] sm:$0xff]
      %v710 = vld [vmem:[%s419 + $0x38] sm:$0xff]
      %v711 = vadd.f32 %v703, %v675
      %v712 = vadd.f32 %v704, %v694
      %v713 = vadd.f32 %v705, %v677
      %v714 = vadd.f32 %v706, %v696
      %v715 = vadd.f32 %v707, %v680
      %v716 = vadd.f32 %v708, %v699
      %v717 = vadd.f32 %v709, %v682
      %v718 = vadd.f32 %v710, %v701
      %v719 = vmul.f32 %v711, 0.5
      %v720 = vmul.f32 %v712, 0.5
      %v721 = vmul.f32 %v713, 0.5
      %v722 = vmul.f32 %v714, 0.5
      %v723 = vmul.f32 %v715, 0.5
      %v724 = vmul.f32 %v716, 0.5
      %v725 = vmul.f32 %v717, 0.5
      %v726 = vmul.f32 %v718, 0.5
      %v727 = vmul.f32 %v711, 0.044715
      %v728 = vmul.f32 %v712, 0.044715
      %v729 = vmul.f32 %v713, 0.044715
      %v730 = vmul.f32 %v714, 0.044715
      %v731 = vmul.f32 %v715, 0.044715
      %v732 = vmul.f32 %v716, 0.044715
      %v733 = vmul.f32 %v717, 0.044715
      %v734 = vmul.f32 %v718, 0.044715
      %v735 = vmul.f32 %v727, %v711
      %v736 = vmul.f32 %v728, %v712
      %v737 = vmul.f32 %v729, %v713
      %v738 = vmul.f32 %v730, %v714
      %v739 = vmul.f32 %v731, %v715
      %v740 = vmul.f32 %v732, %v716
      %v741 = vmul.f32 %v733, %v717
      %v742 = vmul.f32 %v734, %v718
      %v743 = vmul.f32 %v735, %v711
      %v744 = vmul.f32 %v736, %v712
      %v745 = vmul.f32 %v737, %v713
      %v746 = vmul.f32 %v738, %v714
      %v747 = vmul.f32 %v739, %v715
      %v748 = vmul.f32 %v740, %v716
      %v749 = vmul.f32 %v741, %v717
      %v750 = vmul.f32 %v742, %v718
      %v751 = vadd.f32 %v711, %v743
      %v752 = vadd.f32 %v712, %v744
      %v753 = vadd.f32 %v713, %v745
      %v754 = vadd.f32 %v714, %v746
      %v755 = vadd.f32 %v715, %v747
      %v756 = vadd.f32 %v716, %v748
      %v757 = vadd.f32 %v717, %v749
      %v758 = vadd.f32 %v718, %v750
      %v759 = vmul.f32 %v751, 0.7978846
      %v760 = vmul.f32 %v752, 0.7978846
      %v761 = vmul.f32 %v753, 0.7978846
      %v762 = vmul.f32 %v754, 0.7978846
      %v763 = vmul.f32 %v755, 0.7978846
      %v764 = vmul.f32 %v756, 0.7978846
      %v765 = vmul.f32 %v757, 0.7978846
      %v766 = vmul.f32 %v758, 0.7978846
      %v767 = vtanh.pop %v759
      %v768 = vtanh.pop %v760
      %v769 = vtanh.pop %v761
      %v770 = vtanh.pop %v762
      %v771 = vtanh.pop %v763
      %v772 = vtanh.pop %v764
      %v773 = vtanh.pop %v765
      %v774 = vtanh.pop %v766
      %v775 = vadd.f32 %v767, 1.0
      %v776 = vadd.f32 %v768, 1.0
      %v777 = vadd.f32 %v769, 1.0
      %v778 = vadd.f32 %v770, 1.0
      %v779 = vadd.f32 %v771, 1.0
      %v780 = vadd.f32 %v772, 1.0
      %v781 = vadd.f32 %v773, 1.0
      %v782 = vadd.f32 %v774, 1.0
      %v783 = vmul.f32 %v719, %v775
      %v784 = vmul.f32 %v720, %v776
      %v785 = vmul.f32 %v721, %v777
      %v786 = vmul.f32 %v722, %v778
      %v787 = vmul.f32 %v723, %v779
      %v788 = vmul.f32 %v724, %v780
      %v789 = vmul.f32 %v725, %v781
      %v790 = vmul.f32 %v726, %v782
      %v791 = vadd.f32 %v613, %v783
      %v792 = vadd.f32 %v614, %v784
      %v793 = vadd.f32 %v615, %v785
      %v794 = vadd.f32 %v616, %v786
      %v795 = vadd.f32 %v617, %v787
      %v796 = vadd.f32 %v618, %v788
      %v797 = vadd.f32 %v619, %v789
      %v798 = vadd.f32 %v620, %v790
      %v799 = vtanh.pop %v791
      %v800 = vtanh.pop %v792
      %v801 = vtanh.pop %v793
      %v802 = vtanh.pop %v794
      %v803 = vtanh.pop %v795
      %v804 = vtanh.pop %v796
      %v805 = vtanh.pop %v797
      %v806 = vtanh.pop %v798
      %807 = vst [vmem:[%s429] sm:$0xff] %v799
      %808 = vst [vmem:[%s429 + $0x8] sm:$0xff] %v800
      %809 = vst [vmem:[%s429 + $0x10] sm:$0xff] %v801
      %810 = vst [vmem:[%s429 + $0x18] sm:$0xff] %v802
      %811 = vst [vmem:[%s429 + $0x20] sm:$0xff] %v803
      %812 = vst [vmem:[%s429 + $0x28] sm:$0xff] %v804
      %813 = vst [vmem:[%s429 + $0x30] sm:$0xff] %v805
      %814 = vst [vmem:[%s429 + $0x38] sm:$0xff] %v806
      %815 = vst [vmem:[%s439] sm:$0xff] %v791
      %816 = vst [vmem:[%s439 + $0x8] sm:$0xff] %v792
      %817 = vst [vmem:[%s439 + $0x10] sm:$0xff] %v793
      %818 = vst [vmem:[%s439 + $0x18] sm:$0xff] %v794
      %819 = vst [vmem:[%s439 + $0x20] sm:$0xff] %v795
      %820 = vst [vmem:[%s439 + $0x28] sm:$0xff] %v796
      %821 = vst [vmem:[%s439 + $0x30] sm:$0xff] %v797
      %822 = vst [vmem:[%s439 + $0x38] sm:$0xff] %v798
      %s823 = smul.u32 2, %s25
      %p824 = scmp.lt.s32.totalorder %s24, 1
      %s825 = scalar_select %p824, %s24, 1
      %p826 = scmp.lt.s32.totalorder %s823, 1
      %s827 = scalar_select %p826, %s823, 1
      %s828 = smul.addr %s825, 8
      %s829 = sadd.s32 %s827, %s828
      %s830 = smul.addr %s829, 8
      %s831 = scalar_lea.vmem %s7, %s830
      %s832 = smul.u32 2, %s25
      %p833 = scmp.lt.s32.totalorder %s24, 1
      %s834 = scalar_select %p833, %s24, 1
      %p835 = scmp.lt.s32.totalorder %s832, 1
      %s836 = scalar_select %p835, %s832, 1
      %s837 = smul.addr %s834, 8
      %s838 = sadd.s32 %s836, %s837
      %s839 = smul.addr %s838, 8
      %s840 = scalar_lea.vmem %s8, %s839
      // Predicated region
      $region49: #{frnn_cell_forward.3} parent=47 // pred_check
        %p841 = pneg %p220
      $region50: #{frnn_cell_forward.3} parent=47 // pred_check_branch
        %843 = sbr.rel (%p841) target = $region52
      $region51: #{frnn_cell_forward.3} parent=47 // pred_region
        %s844 = smul.u32 2, %s25
      $region52: #{frnn_cell_forward.3} parent=47 // pred_fallthru
        _
      // Predicated region
      $region53: #{frnn_cell_forward.3} parent=47 // pred_check
        %p845 = pneg %p248
      $region54: #{frnn_cell_forward.3} parent=47 // pred_check_branch
        %847 = sbr.rel (%p845) target = $region56
      $region55: #{frnn_cell_forward.3} parent=47 // pred_region
        %s848 = smul.u32 2, %s25
      $region56: #{frnn_cell_forward.3} parent=47 // pred_fallthru
        _
    $region48: #{frnn_cell_forward.3} parent=5 // pred_fallthru
      _
    %p849 = scmp.le.s32.totalorder 2, %s15
    // Predicated region
    $region57: #{frnn_cell_forward.3} parent=5 // pred_check
      %p850 = pneg %p849
    $region58: #{frnn_cell_forward.3} parent=5 // pred_check_branch
      %852 = sbr.rel (%p850) target = $region60
    $region59: #{frnn_cell_forward.3} parent=5 // pred_region
      %s853 = ssub.s32 %s15, 2
      // Predicated region
      $region61: #{frnn_cell_forward.3} parent=59 // pred_check
        %p854 = pneg %p226
      $region62: #{frnn_cell_forward.3} parent=59 // pred_check_branch
        %856 = sbr.rel (%p854) target = $region64
      $region63: #{frnn_cell_forward.3} parent=59 // pred_region
        %s857 = smul.u32 2, %s27
        %p858 = scmp.lt.s32.totalorder %s26, 1
        %s859 = scalar_select %p858, %s26, 1
        %p860 = scmp.lt.s32.totalorder %s857, 1
        %s861 = scalar_select %p860, %s857, 1
        %s862 = smul.addr %s859, 8
        %s863 = sadd.s32 %s861, %s862
        %s864 = smul.addr %s863, 8
        %s865 = scalar_lea.vmem %s7, %s864
      $region64: #{frnn_cell_forward.3} parent=59 // pred_fallthru
        _
      // Predicated region
      $region65: #{frnn_cell_forward.3} parent=59 // pred_check
        %p866 = pneg %p254
      $region66: #{frnn_cell_forward.3} parent=59 // pred_check_branch
        %868 = sbr.rel (%p866) target = $region68
      $region67: #{frnn_cell_forward.3} parent=59 // pred_region
        %s869 = smul.u32 2, %s27
        %p870 = scmp.lt.s32.totalorder %s26, 1
        %s871 = scalar_select %p870, %s26, 1
        %p872 = scmp.lt.s32.totalorder %s869, 1
        %s873 = scalar_select %p872, %s869, 1
        %s874 = smul.addr %s871, 8
        %s875 = sadd.s32 %s873, %s874
        %s876 = smul.addr %s875, 8
        %s877 = scalar_lea.vmem %s8, %s876
      $region68: #{frnn_cell_forward.3} parent=59 // pred_fallthru
        _
    $region60: #{frnn_cell_forward.3} parent=5 // pred_fallthru
      _
  $region6: #{frnn_cell_forward.3} parent=0 // loop_footer
    %s19 = sadd.s32 1, %s15
  $region7: #{frnn_cell_forward.3} parent=0 // loop_footer_branch
    %14 = sbr.rel target = $region3
  $region8: #{frnn_cell_forward.3} parent=0 // loop_exit
    _

</llo_original>
